<compile_context>
chip_gen: v5e
topology: v5e:2x2
jax: 0.10.0
libtpu: 0.0.40
codegen_flags: <defaults>
</compile_context>

<pallas_src>
import jax
import jax.numpy as jnp
from jax.experimental import pallas as pl
from jax.experimental.pallas import tpu as pltpu


# ----------------------------------------------------------------------------
# Fused VGG block kernel: nl x (Conv3x3 same + bias + ReLU), then MaxPool 2x2
# ----------------------------------------------------------------------------
def _make_block_kernel(nl, H, W, C, cin0p):
    HW = H * W
    Ho, Wo = H // 2, W // 2

    def kernel(*refs):
        x_ref = refs[0]                    # (1, H, W, cin0p)  block input
        o_ref = refs[1 + 2 * nl]           # (1, Ho, Wo, C)    pooled block output
        pad_ref = refs[2 + 2 * nl]         # (H+2, W+2, C) f32 padded activation scratch

        # Zero once: the 1-pixel halo stays zero for every conv of the block,
        # and channels >= cin0p of the first layer stay zero (their weight
        # rows are zero-padded too, so they contribute nothing).
        pad_ref[...] = jnp.zeros_like(pad_ref)
        pad_ref[1:H + 1, 1:W + 1, :cin0p] = x_ref[0]

        for l in range(nl):
            w_ref = refs[1 + 2 * l]        # (9, C, C) bf16, tap-major (dy, dx)
            b_ref = refs[2 + 2 * l]        # (1, C) f32

            # 9 tap-matmuls with M = H*W, K = C, N = C; bf16 operands,
            # f32 accumulation on the MXU.
            acc = jnp.zeros((HW, C), jnp.float32)
            for dy in range(3):
                for dx in range(3):
                    patch = pad_ref[dy:dy + H, dx:dx + W, :]        # (H, W, C)
                    lhs = patch.reshape(HW, C).astype(jnp.bfloat16)
                    acc = acc + jnp.dot(lhs, w_ref[dy * 3 + dx],
                                        preferred_element_type=jnp.float32)
            act = jnp.maximum(acc + b_ref[...], 0.0)                # (HW, C) f32

            if l < nl - 1:
                # Next conv reads it straight back out of VMEM (no HBM trip).
                pad_ref[1:H + 1, 1:W + 1, :] = act.reshape(H, W, C)
            else:
                # Fused 2x2 / stride-2 max-pool epilogue, then single HBM store.
                mw = jnp.max(act.reshape(H, Wo, 2, C), axis=2)      # W-pair max
                mh = mw.reshape(Ho, 2, Wo, C)
                pooled = jnp.maximum(mh[:, 0], mh[:, 1])            # H-pair max
                o_ref[0] = pooled.astype(o_ref.dtype)

    return kernel


def _vgg_block(x_nhwc, layer_params, C):
    """x_nhwc: (B, H, W, cin0p) f32. layer_params: [(w (9,C,C) bf16, b (1,C) f32), ...]."""
    B, H, W, cin0p = x_nhwc.shape
    nl = len(layer_params)
    Ho, Wo = H // 2, W // 2

    in_specs = [pl.BlockSpec((1, H, W, cin0p), lambda b: (b, 0, 0, 0))]
    args = [x_nhwc]
    for w9, bias in layer_params:
        in_specs.append(pl.BlockSpec((9, C, C), lambda b: (0, 0, 0)))
        in_specs.append(pl.BlockSpec((1, C), lambda b: (0, 0)))
        args.append(w9)
        args.append(bias)

    return pl.pallas_call(
        _make_block_kernel(nl, H, W, C, cin0p),
        out_shape=jax.ShapeDtypeStruct((B, Ho, Wo, C), jnp.float32),
        grid=(B,),
        in_specs=in_specs,
        out_specs=pl.BlockSpec((1, Ho, Wo, C), lambda b: (b, 0, 0, 0)),
        scratch_shapes=[pltpu.VMEM((H + 2, W + 2, C), jnp.float32)],
        compiler_params=pltpu.CompilerParams(
            dimension_semantics=("parallel",)),
    )(*args)


# ----------------------------------------------------------------------------
# Weight prep + VGG16FeatureExtractor.forward
# ----------------------------------------------------------------------------
def _prep_block_params(block, C):
    """OIHW f32 weights -> (9, C, C) bf16 tap-major, Cin zero-padded to C."""
    out = []
    for w_oihw, b in block:
        cout, cin = int(w_oihw.shape[0]), int(w_oihw.shape[1])
        assert cout == C
        w9 = jnp.transpose(w_oihw, (2, 3, 1, 0)).reshape(9, cin, cout)  # (dy*3+dx, Cin, Cout)
        if cin < C:
            w9 = jnp.pad(w9, ((0, 0), (0, C - cin), (0, 0)))
        out.append((w9.astype(jnp.bfloat16),
                    b.reshape(1, C).astype(jnp.float32)))
    return out


def vgg16_feature_extractor(image_nchw, params):
    """Returns [enc_1, enc_2, enc_3] feature maps, all NCHW (PyTorch convention)."""
    x = jnp.transpose(image_nchw, (0, 2, 3, 1)).astype(jnp.float32)  # NCHW -> NHWC
    # Pad the RGB channel dim once (tiny, done once for the whole network).
    cin0 = x.shape[-1]
    cin0p = max(8, cin0)
    if cin0p != cin0:
        x = jnp.pad(x, ((0, 0), (0, 0), (0, 0), (0, cin0p - cin0)))

    widths = (64, 128, 256)
    results = []
    for bi, block in enumerate(params):
        x = _vgg_block(x, _prep_block_params(block, widths[bi]), widths[bi])
        results.append(jnp.transpose(x, (0, 3, 1, 2)))  # back to NCHW
    return results


# ----------------------------------------------------------------------------
# Pure-JAX f32 reference (for correctness check)
# ----------------------------------------------------------------------------
def _ref_forward(image_nchw, params):
    x = jnp.transpose(image_nchw, (0, 2, 3, 1))
    outs = []
    for block in params:
        for (w_oihw, b) in block:
            w_hwio = jnp.transpose(w_oihw, (2, 3, 1, 0))
            y = jax.lax.conv_general_dilated(
                x, w_hwio, window_strides=(1, 1), padding="SAME",
                dimension_numbers=("NHWC", "HWIO", "NHWC"),
                precision=jax.lax.Precision.HIGHEST)
            x = jnp.maximum(y + b, 0.0)
        B, H, W, C = x.shape
        x = x.reshape(B, H // 2, 2, W // 2, 2, C).max(axis=(2, 4))
        outs.append(jnp.transpose(x, (0, 3, 1, 2)))
    return outs


# ----------------------------------------------------------------------------
def _make_params(key):
    # (Cin, Cout) per conv layer, grouped by enc block (each block ends with a pool).
    cfg = [
        [(3, 64), (64, 64)],
        [(64, 128), (128, 128)],
        [(128, 256), (256, 256), (256, 256)],
    ]
    params = []
    for block in cfg:
        bp = []
        for (cin, cout) in block:
            key, kw, kb = jax.random.split(key, 3)
            std = (2.0 / (9.0 * cin)) ** 0.5
            w = std * jax.random.normal(kw, (cout, cin, 3, 3), jnp.float32)  # OIHW
            b = 0.01 * jax.random.normal(kb, (cout,), jnp.float32)
            bp.append((w, b))
        params.append(bp)
    return params, key


if __name__ == "__main__":
    key = jax.random.PRNGKey(0)
    params, key = _make_params(key)

    B, H, W = 2, 16, 16
    key, kx = jax.random.split(key)
    x = jax.random.normal(kx, (B, 3, H, W), jnp.float32)  # NCHW, RGB

    feats = jax.block_until_ready(vgg16_feature_extractor(x, params))

    expected_shapes = [(B, 64, 8, 8), (B, 128, 4, 4), (B, 256, 2, 2)]
    for f, s in zip(feats, expected_shapes):
        assert f.shape == s, (f.shape, s)

    refs = _ref_forward(x, params)
    for i, (f, r) in enumerate(zip(feats, refs)):
        # bf16 MXU operands vs a full-f32 reference: check relative L2 error.
        rel = float(jnp.linalg.norm(f - r) / (jnp.linalg.norm(r) + 1e-12))
        assert rel < 5e-2, (i, rel)

    print("KERNEL_OK")
</pallas_src>

<mosaic_0001>
module attributes {stable_mosaic.version = 11 : i64} {
  func.func @kernel(%arg0: i32, %arg1: memref<1x16x16x8xf32, #tpu.memory_space<vmem>>, %arg2: memref<9x64x64xbf16, #tpu.memory_space<vmem>>, %arg3: memref<1x64xf32, #tpu.memory_space<vmem>>, %arg4: memref<9x64x64xbf16, #tpu.memory_space<vmem>>, %arg5: memref<1x64xf32, #tpu.memory_space<vmem>>, %arg6: memref<1x8x8x64xf32, #tpu.memory_space<vmem>>, %arg7: memref<18x18x64xf32, #tpu.memory_space<vmem>>) attributes {dimension_semantics = [#tpu.dimension_semantics<parallel>], iteration_bounds = array<i64: 2>, scalar_prefetch = 0 : i64, scratch_operands = 1 : i64, tpu.core_type = #tpu.core_type<tc>, window_params = [{transform_indices = @transform_0, window_bounds = array<i64: 1, 16, 16, 8>}, {pipeline_mode = #tpu.pipeline_mode<synchronous>, transform_indices = @transform_1, window_bounds = array<i64: 9, 64, 64>}, {pipeline_mode = #tpu.pipeline_mode<synchronous>, transform_indices = @transform_2, window_bounds = array<i64: 1, 64>}, {pipeline_mode = #tpu.pipeline_mode<synchronous>, transform_indices = @transform_3, window_bounds = array<i64: 9, 64, 64>}, {pipeline_mode = #tpu.pipeline_mode<synchronous>, transform_indices = @transform_4, window_bounds = array<i64: 1, 64>}, {transform_indices = @transform_5, window_bounds = array<i64: 1, 8, 8, 64>}]} {
    %cst = arith.constant 0.000000e+00 : f32
    %0 = vector.broadcast %cst : f32 to vector<18x18x64xf32>
    %c0 = arith.constant 0 : index
    %c0_0 = arith.constant 0 : index
    %c0_1 = arith.constant 0 : index
    %1 = vector.load %arg7[%c0, %c0_0, %c0_1] : memref<18x18x64xf32, #tpu.memory_space<vmem>>, vector<18x18x64xf32>
    tpu.vector_store %arg7[%c0, %c0_0, %c0_1], %0 {strides = array<i32>} : memref<18x18x64xf32, #tpu.memory_space<vmem>>, vector<18x18x64xf32>,
    %c0_2 = arith.constant 0 : index
    %c0_3 = arith.constant 0 : index
    %c0_4 = arith.constant 0 : index
    %c0_5 = arith.constant 0 : index
    %2 = vector.load %arg1[%c0_2, %c0_3, %c0_4, %c0_5] : memref<1x16x16x8xf32, #tpu.memory_space<vmem>>, vector<1x16x16x8xf32>
    %3 = vector.shape_cast %2 : vector<1x16x16x8xf32> to vector<16x16x8xf32>
    %c1 = arith.constant 1 : index
    %c1_6 = arith.constant 1 : index
    %c0_7 = arith.constant 0 : index
    %4 = vector.load %arg7[%c1, %c1_6, %c0_7] : memref<18x18x64xf32, #tpu.memory_space<vmem>>, vector<16x16x8xf32>
    tpu.vector_store %arg7[%c1, %c1_6, %c0_7], %3 {strides = array<i32>} : memref<18x18x64xf32, #tpu.memory_space<vmem>>, vector<16x16x8xf32>,
    %cst_8 = arith.constant 0.000000e+00 : f32
    %5 = vector.broadcast %cst_8 : f32 to vector<256x64xf32>
    %c0_9 = arith.constant 0 : index
    %c0_10 = arith.constant 0 : index
    %c0_11 = arith.constant 0 : index
    %6 = vector.load %arg7[%c0_9, %c0_10, %c0_11] : memref<18x18x64xf32, #tpu.memory_space<vmem>>, vector<16x16x64xf32>
    %7 = vector.shape_cast %6 : vector<16x16x64xf32> to vector<256x64xf32>
    %8 = arith.truncf %7 : vector<256x64xf32> to vector<256x64xbf16>
    %c0_12 = arith.constant 0 : index
    %c0_13 = arith.constant 0 : index
    %c0_14 = arith.constant 0 : index
    %9 = vector.load %arg2[%c0_12, %c0_13, %c0_14] : memref<9x64x64xbf16, #tpu.memory_space<vmem>>, vector<1x64x64xbf16>
    %10 = vector.shape_cast %9 : vector<1x64x64xbf16> to vector<64x64xbf16>
    %cst_15 = arith.constant dense<0.000000e+00> : vector<256x64xf32>
    %11 = tpu.matmul %8, %10, %cst_15 {dimension_numbers = #tpu.dot_dimension_numbers<[1], [0], [0], [1], [0, 0, 1, 1], [], []>} : vector<256x64xbf16>, vector<64x64xbf16>, vector<256x64xf32> -> vector<256x64xf32>
    %12 = arith.addf %5, %11 : vector<256x64xf32>
    %c0_16 = arith.constant 0 : index
    %c1_17 = arith.constant 1 : index
    %c0_18 = arith.constant 0 : index
    %13 = vector.load %arg7[%c0_16, %c1_17, %c0_18] : memref<18x18x64xf32, #tpu.memory_space<vmem>>, vector<16x16x64xf32>
    %14 = vector.shape_cast %13 : vector<16x16x64xf32> to vector<256x64xf32>
    %15 = arith.truncf %14 : vector<256x64xf32> to vector<256x64xbf16>
    %c1_19 = arith.constant 1 : index
    %c0_20 = arith.constant 0 : index
    %c0_21 = arith.constant 0 : index
    %16 = vector.load %arg2[%c1_19, %c0_20, %c0_21] : memref<9x64x64xbf16, #tpu.memory_space<vmem>>, vector<1x64x64xbf16>
    %17 = vector.shape_cast %16 : vector<1x64x64xbf16> to vector<64x64xbf16>
    %cst_22 = arith.constant dense<0.000000e+00> : vector<256x64xf32>
    %18 = tpu.matmul %15, %17, %cst_22 {dimension_numbers = #tpu.dot_dimension_numbers<[1], [0], [0], [1], [0, 0, 1, 1], [], []>} : vector<256x64xbf16>, vector<64x64xbf16>, vector<256x64xf32> -> vector<256x64xf32>
    %19 = arith.addf %12, %18 : vector<256x64xf32>
    %c0_23 = arith.constant 0 : index
    %c2 = arith.constant 2 : index
    %c0_24 = arith.constant 0 : index
    %20 = vector.load %arg7[%c0_23, %c2, %c0_24] : memref<18x18x64xf32, #tpu.memory_space<vmem>>, vector<16x16x64xf32>
    %21 = vector.shape_cast %20 : vector<16x16x64xf32> to vector<256x64xf32>
    %22 = arith.truncf %21 : vector<256x64xf32> to vector<256x64xbf16>
    %c2_25 = arith.constant 2 : index
    %c0_26 = arith.constant 0 : index
    %c0_27 = arith.constant 0 : index
    %23 = vector.load %arg2[%c2_25, %c0_26, %c0_27] : memref<9x64x64xbf16, #tpu.memory_space<vmem>>, vector<1x64x64xbf16>
    %24 = vector.shape_cast %23 : vector<1x64x64xbf16> to vector<64x64xbf16>
    %cst_28 = arith.constant dense<0.000000e+00> : vector<256x64xf32>
    %25 = tpu.matmul %22, %24, %cst_28 {dimension_numbers = #tpu.dot_dimension_numbers<[1], [0], [0], [1], [0, 0, 1, 1], [], []>} : vector<256x64xbf16>, vector<64x64xbf16>, vector<256x64xf32> -> vector<256x64xf32>
    %26 = arith.addf %19, %25 : vector<256x64xf32>
    %c1_29 = arith.constant 1 : index
    %c0_30 = arith.constant 0 : index
    %c0_31 = arith.constant 0 : index
    %27 = vector.load %arg7[%c1_29, %c0_30, %c0_31] : memref<18x18x64xf32, #tpu.memory_space<vmem>>, vector<16x16x64xf32>
    %28 = vector.shape_cast %27 : vector<16x16x64xf32> to vector<256x64xf32>
    %29 = arith.truncf %28 : vector<256x64xf32> to vector<256x64xbf16>
    %c3 = arith.constant 3 : index
    %c0_32 = arith.constant 0 : index
    %c0_33 = arith.constant 0 : index
    %30 = vector.load %arg2[%c3, %c0_32, %c0_33] : memref<9x64x64xbf16, #tpu.memory_space<vmem>>, vector<1x64x64xbf16>
    %31 = vector.shape_cast %30 : vector<1x64x64xbf16> to vector<64x64xbf16>
    %cst_34 = arith.constant dense<0.000000e+00> : vector<256x64xf32>
    %32 = tpu.matmul %29, %31, %cst_34 {dimension_numbers = #tpu.dot_dimension_numbers<[1], [0], [0], [1], [0, 0, 1, 1], [], []>} : vector<256x64xbf16>, vector<64x64xbf16>, vector<256x64xf32> -> vector<256x64xf32>
    %33 = arith.addf %26, %32 : vector<256x64xf32>
    %c1_35 = arith.constant 1 : index
    %c1_36 = arith.constant 1 : index
    %c0_37 = arith.constant 0 : index
    %34 = vector.load %arg7[%c1_35, %c1_36, %c0_37] : memref<18x18x64xf32, #tpu.memory_space<vmem>>, vector<16x16x64xf32>
    %35 = vector.shape_cast %34 : vector<16x16x64xf32> to vector<256x64xf32>
    %36 = arith.truncf %35 : vector<256x64xf32> to vector<256x64xbf16>
    %c4 = arith.constant 4 : index
    %c0_38 = arith.constant 0 : index
    %c0_39 = arith.constant 0 : index
    %37 = vector.load %arg2[%c4, %c0_38, %c0_39] : memref<9x64x64xbf16, #tpu.memory_space<vmem>>, vector<1x64x64xbf16>
    %38 = vector.shape_cast %37 : vector<1x64x64xbf16> to vector<64x64xbf16>
    %cst_40 = arith.constant dense<0.000000e+00> : vector<256x64xf32>
    %39 = tpu.matmul %36, %38, %cst_40 {dimension_numbers = #tpu.dot_dimension_numbers<[1], [0], [0], [1], [0, 0, 1, 1], [], []>} : vector<256x64xbf16>, vector<64x64xbf16>, vector<256x64xf32> -> vector<256x64xf32>
    %40 = arith.addf %33, %39 : vector<256x64xf32>
    %c1_41 = arith.constant 1 : index
    %c2_42 = arith.constant 2 : index
    %c0_43 = arith.constant 0 : index
    %41 = vector.load %arg7[%c1_41, %c2_42, %c0_43] : memref<18x18x64xf32, #tpu.memory_space<vmem>>, vector<16x16x64xf32>
    %42 = vector.shape_cast %41 : vector<16x16x64xf32> to vector<256x64xf32>
    %43 = arith.truncf %42 : vector<256x64xf32> to vector<256x64xbf16>
    %c5 = arith.constant 5 : index
    %c0_44 = arith.constant 0 : index
    %c0_45 = arith.constant 0 : index
    %44 = vector.load %arg2[%c5, %c0_44, %c0_45] : memref<9x64x64xbf16, #tpu.memory_space<vmem>>, vector<1x64x64xbf16>
    %45 = vector.shape_cast %44 : vector<1x64x64xbf16> to vector<64x64xbf16>
    %cst_46 = arith.constant dense<0.000000e+00> : vector<256x64xf32>
    %46 = tpu.matmul %43, %45, %cst_46 {dimension_numbers = #tpu.dot_dimension_numbers<[1], [0], [0], [1], [0, 0, 1, 1], [], []>} : vector<256x64xbf16>, vector<64x64xbf16>, vector<256x64xf32> -> vector<256x64xf32>
    %47 = arith.addf %40, %46 : vector<256x64xf32>
    %c2_47 = arith.constant 2 : index
    %c0_48 = arith.constant 0 : index
    %c0_49 = arith.constant 0 : index
    %48 = vector.load %arg7[%c2_47, %c0_48, %c0_49] : memref<18x18x64xf32, #tpu.memory_space<vmem>>, vector<16x16x64xf32>
    %49 = vector.shape_cast %48 : vector<16x16x64xf32> to vector<256x64xf32>
    %50 = arith.truncf %49 : vector<256x64xf32> to vector<256x64xbf16>
    %c6 = arith.constant 6 : index
    %c0_50 = arith.constant 0 : index
    %c0_51 = arith.constant 0 : index
    %51 = vector.load %arg2[%c6, %c0_50, %c0_51] : memref<9x64x64xbf16, #tpu.memory_space<vmem>>, vector<1x64x64xbf16>
    %52 = vector.shape_cast %51 : vector<1x64x64xbf16> to vector<64x64xbf16>
    %cst_52 = arith.constant dense<0.000000e+00> : vector<256x64xf32>
    %53 = tpu.matmul %50, %52, %cst_52 {dimension_numbers = #tpu.dot_dimension_numbers<[1], [0], [0], [1], [0, 0, 1, 1], [], []>} : vector<256x64xbf16>, vector<64x64xbf16>, vector<256x64xf32> -> vector<256x64xf32>
    %54 = arith.addf %47, %53 : vector<256x64xf32>
    %c2_53 = arith.constant 2 : index
    %c1_54 = arith.constant 1 : index
    %c0_55 = arith.constant 0 : index
    %55 = vector.load %arg7[%c2_53, %c1_54, %c0_55] : memref<18x18x64xf32, #tpu.memory_space<vmem>>, vector<16x16x64xf32>
    %56 = vector.shape_cast %55 : vector<16x16x64xf32> to vector<256x64xf32>
    %57 = arith.truncf %56 : vector<256x64xf32> to vector<256x64xbf16>
    %c7 = arith.constant 7 : index
    %c0_56 = arith.constant 0 : index
    %c0_57 = arith.constant 0 : index
    %58 = vector.load %arg2[%c7, %c0_56, %c0_57] : memref<9x64x64xbf16, #tpu.memory_space<vmem>>, vector<1x64x64xbf16>
    %59 = vector.shape_cast %58 : vector<1x64x64xbf16> to vector<64x64xbf16>
    %cst_58 = arith.constant dense<0.000000e+00> : vector<256x64xf32>
    %60 = tpu.matmul %57, %59, %cst_58 {dimension_numbers = #tpu.dot_dimension_numbers<[1], [0], [0], [1], [0, 0, 1, 1], [], []>} : vector<256x64xbf16>, vector<64x64xbf16>, vector<256x64xf32> -> vector<256x64xf32>
    %61 = arith.addf %54, %60 : vector<256x64xf32>
    %c2_59 = arith.constant 2 : index
    %c2_60 = arith.constant 2 : index
    %c0_61 = arith.constant 0 : index
    %62 = vector.load %arg7[%c2_59, %c2_60, %c0_61] : memref<18x18x64xf32, #tpu.memory_space<vmem>>, vector<16x16x64xf32>
    %63 = vector.shape_cast %62 : vector<16x16x64xf32> to vector<256x64xf32>
    %64 = arith.truncf %63 : vector<256x64xf32> to vector<256x64xbf16>
    %c8 = arith.constant 8 : index
    %c0_62 = arith.constant 0 : index
    %c0_63 = arith.constant 0 : index
    %65 = vector.load %arg2[%c8, %c0_62, %c0_63] : memref<9x64x64xbf16, #tpu.memory_space<vmem>>, vector<1x64x64xbf16>
    %66 = vector.shape_cast %65 : vector<1x64x64xbf16> to vector<64x64xbf16>
    %cst_64 = arith.constant dense<0.000000e+00> : vector<256x64xf32>
    %67 = tpu.matmul %64, %66, %cst_64 {dimension_numbers = #tpu.dot_dimension_numbers<[1], [0], [0], [1], [0, 0, 1, 1], [], []>} : vector<256x64xbf16>, vector<64x64xbf16>, vector<256x64xf32> -> vector<256x64xf32>
    %68 = arith.addf %61, %67 : vector<256x64xf32>
    %c0_65 = arith.constant 0 : index
    %c0_66 = arith.constant 0 : index
    %69 = vector.load %arg3[%c0_65, %c0_66] : memref<1x64xf32, #tpu.memory_space<vmem>>, vector<1x64xf32>
    %70 = vector.broadcast %69 : vector<1x64xf32> to vector<256x64xf32>
    %71 = arith.addf %68, %70 : vector<256x64xf32>
    %cst_67 = arith.constant 0.000000e+00 : f32
    %72 = vector.broadcast %cst_67 : f32 to vector<256x64xf32>
    %73 = arith.maximumf %71, %72 : vector<256x64xf32>
    %74 = vector.shape_cast %73 : vector<256x64xf32> to vector<16x16x64xf32>
    %c1_68 = arith.constant 1 : index
    %c1_69 = arith.constant 1 : index
    %c0_70 = arith.constant 0 : index
    %75 = vector.load %arg7[%c1_68, %c1_69, %c0_70] : memref<18x18x64xf32, #tpu.memory_space<vmem>>, vector<16x16x64xf32>
    tpu.vector_store %arg7[%c1_68, %c1_69, %c0_70], %74 {strides = array<i32>} : memref<18x18x64xf32, #tpu.memory_space<vmem>>, vector<16x16x64xf32>,
    %cst_71 = arith.constant 0.000000e+00 : f32
    %76 = vector.broadcast %cst_71 : f32 to vector<256x64xf32>
    %c0_72 = arith.constant 0 : index
    %c0_73 = arith.constant 0 : index
    %c0_74 = arith.constant 0 : index
    %77 = vector.load %arg7[%c0_72, %c0_73, %c0_74] : memref<18x18x64xf32, #tpu.memory_space<vmem>>, vector<16x16x64xf32>
    %78 = vector.shape_cast %77 : vector<16x16x64xf32> to vector<256x64xf32>
    %79 = arith.truncf %78 : vector<256x64xf32> to vector<256x64xbf16>
    %c0_75 = arith.constant 0 : index
    %c0_76 = arith.constant 0 : index
    %c0_77 = arith.constant 0 : index
    %80 = vector.load %arg4[%c0_75, %c0_76, %c0_77] : memref<9x64x64xbf16, #tpu.memory_space<vmem>>, vector<1x64x64xbf16>
    %81 = vector.shape_cast %80 : vector<1x64x64xbf16> to vector<64x64xbf16>
    %cst_78 = arith.constant dense<0.000000e+00> : vector<256x64xf32>
    %82 = tpu.matmul %79, %81, %cst_78 {dimension_numbers = #tpu.dot_dimension_numbers<[1], [0], [0], [1], [0, 0, 1, 1], [], []>} : vector<256x64xbf16>, vector<64x64xbf16>, vector<256x64xf32> -> vector<256x64xf32>
    %83 = arith.addf %76, %82 : vector<256x64xf32>
    %c0_79 = arith.constant 0 : index
    %c1_80 = arith.constant 1 : index
    %c0_81 = arith.constant 0 : index
    %84 = vector.load %arg7[%c0_79, %c1_80, %c0_81] : memref<18x18x64xf32, #tpu.memory_space<vmem>>, vector<16x16x64xf32>
    %85 = vector.shape_cast %84 : vector<16x16x64xf32> to vector<256x64xf32>
    %86 = arith.truncf %85 : vector<256x64xf32> to vector<256x64xbf16>
    %c1_82 = arith.constant 1 : index
    %c0_83 = arith.constant 0 : index
    %c0_84 = arith.constant 0 : index
    %87 = vector.load %arg4[%c1_82, %c0_83, %c0_84] : memref<9x64x64xbf16, #tpu.memory_space<vmem>>, vector<1x64x64xbf16>
    %88 = vector.shape_cast %87 : vector<1x64x64xbf16> to vector<64x64xbf16>
    %cst_85 = arith.constant dense<0.000000e+00> : vector<256x64xf32>
    %89 = tpu.matmul %86, %88, %cst_85 {dimension_numbers = #tpu.dot_dimension_numbers<[1], [0], [0], [1], [0, 0, 1, 1], [], []>} : vector<256x64xbf16>, vector<64x64xbf16>, vector<256x64xf32> -> vector<256x64xf32>
    %90 = arith.addf %83, %89 : vector<256x64xf32>
    %c0_86 = arith.constant 0 : index
    %c2_87 = arith.constant 2 : index
    %c0_88 = arith.constant 0 : index
    %91 = vector.load %arg7[%c0_86, %c2_87, %c0_88] : memref<18x18x64xf32, #tpu.memory_space<vmem>>, vector<16x16x64xf32>
    %92 = vector.shape_cast %91 : vector<16x16x64xf32> to vector<256x64xf32>
    %93 = arith.truncf %92 : vector<256x64xf32> to vector<256x64xbf16>
    %c2_89 = arith.constant 2 : index
    %c0_90 = arith.constant 0 : index
    %c0_91 = arith.constant 0 : index
    %94 = vector.load %arg4[%c2_89, %c0_90, %c0_91] : memref<9x64x64xbf16, #tpu.memory_space<vmem>>, vector<1x64x64xbf16>
    %95 = vector.shape_cast %94 : vector<1x64x64xbf16> to vector<64x64xbf16>
    %cst_92 = arith.constant dense<0.000000e+00> : vector<256x64xf32>
    %96 = tpu.matmul %93, %95, %cst_92 {dimension_numbers = #tpu.dot_dimension_numbers<[1], [0], [0], [1], [0, 0, 1, 1], [], []>} : vector<256x64xbf16>, vector<64x64xbf16>, vector<256x64xf32> -> vector<256x64xf32>
    %97 = arith.addf %90, %96 : vector<256x64xf32>
    %c1_93 = arith.constant 1 : index
    %c0_94 = arith.constant 0 : index
    %c0_95 = arith.constant 0 : index
    %98 = vector.load %arg7[%c1_93, %c0_94, %c0_95] : memref<18x18x64xf32, #tpu.memory_space<vmem>>, vector<16x16x64xf32>
    %99 = vector.shape_cast %98 : vector<16x16x64xf32> to vector<256x64xf32>
    %100 = arith.truncf %99 : vector<256x64xf32> to vector<256x64xbf16>
    %c3_96 = arith.constant 3 : index
    %c0_97 = arith.constant 0 : index
    %c0_98 = arith.constant 0 : index
    %101 = vector.load %arg4[%c3_96, %c0_97, %c0_98] : memref<9x64x64xbf16, #tpu.memory_space<vmem>>, vector<1x64x64xbf16>
    %102 = vector.shape_cast %101 : vector<1x64x64xbf16> to vector<64x64xbf16>
    %cst_99 = arith.constant dense<0.000000e+00> : vector<256x64xf32>
    %103 = tpu.matmul %100, %102, %cst_99 {dimension_numbers = #tpu.dot_dimension_numbers<[1], [0], [0], [1], [0, 0, 1, 1], [], []>} : vector<256x64xbf16>, vector<64x64xbf16>, vector<256x64xf32> -> vector<256x64xf32>
    %104 = arith.addf %97, %103 : vector<256x64xf32>
    %c1_100 = arith.constant 1 : index
    %c1_101 = arith.constant 1 : index
    %c0_102 = arith.constant 0 : index
    %105 = vector.load %arg7[%c1_100, %c1_101, %c0_102] : memref<18x18x64xf32, #tpu.memory_space<vmem>>, vector<16x16x64xf32>
    %106 = vector.shape_cast %105 : vector<16x16x64xf32> to vector<256x64xf32>
    %107 = arith.truncf %106 : vector<256x64xf32> to vector<256x64xbf16>
    %c4_103 = arith.constant 4 : index
    %c0_104 = arith.constant 0 : index
    %c0_105 = arith.constant 0 : index
    %108 = vector.load %arg4[%c4_103, %c0_104, %c0_105] : memref<9x64x64xbf16, #tpu.memory_space<vmem>>, vector<1x64x64xbf16>
    %109 = vector.shape_cast %108 : vector<1x64x64xbf16> to vector<64x64xbf16>
    %cst_106 = arith.constant dense<0.000000e+00> : vector<256x64xf32>
    %110 = tpu.matmul %107, %109, %cst_106 {dimension_numbers = #tpu.dot_dimension_numbers<[1], [0], [0], [1], [0, 0, 1, 1], [], []>} : vector<256x64xbf16>, vector<64x64xbf16>, vector<256x64xf32> -> vector<256x64xf32>
    %111 = arith.addf %104, %110 : vector<256x64xf32>
    %c1_107 = arith.constant 1 : index
    %c2_108 = arith.constant 2 : index
    %c0_109 = arith.constant 0 : index
    %112 = vector.load %arg7[%c1_107, %c2_108, %c0_109] : memref<18x18x64xf32, #tpu.memory_space<vmem>>, vector<16x16x64xf32>
    %113 = vector.shape_cast %112 : vector<16x16x64xf32> to vector<256x64xf32>
    %114 = arith.truncf %113 : vector<256x64xf32> to vector<256x64xbf16>
    %c5_110 = arith.constant 5 : index
    %c0_111 = arith.constant 0 : index
    %c0_112 = arith.constant 0 : index
    %115 = vector.load %arg4[%c5_110, %c0_111, %c0_112] : memref<9x64x64xbf16, #tpu.memory_space<vmem>>, vector<1x64x64xbf16>
    %116 = vector.shape_cast %115 : vector<1x64x64xbf16> to vector<64x64xbf16>
    %cst_113 = arith.constant dense<0.000000e+00> : vector<256x64xf32>
    %117 = tpu.matmul %114, %116, %cst_113 {dimension_numbers = #tpu.dot_dimension_numbers<[1], [0], [0], [1], [0, 0, 1, 1], [], []>} : vector<256x64xbf16>, vector<64x64xbf16>, vector<256x64xf32> -> vector<256x64xf32>
    %118 = arith.addf %111, %117 : vector<256x64xf32>
    %c2_114 = arith.constant 2 : index
    %c0_115 = arith.constant 0 : index
    %c0_116 = arith.constant 0 : index
    %119 = vector.load %arg7[%c2_114, %c0_115, %c0_116] : memref<18x18x64xf32, #tpu.memory_space<vmem>>, vector<16x16x64xf32>
    %120 = vector.shape_cast %119 : vector<16x16x64xf32> to vector<256x64xf32>
    %121 = arith.truncf %120 : vector<256x64xf32> to vector<256x64xbf16>
    %c6_117 = arith.constant 6 : index
    %c0_118 = arith.constant 0 : index
    %c0_119 = arith.constant 0 : index
    %122 = vector.load %arg4[%c6_117, %c0_118, %c0_119] : memref<9x64x64xbf16, #tpu.memory_space<vmem>>, vector<1x64x64xbf16>
    %123 = vector.shape_cast %122 : vector<1x64x64xbf16> to vector<64x64xbf16>
    %cst_120 = arith.constant dense<0.000000e+00> : vector<256x64xf32>
    %124 = tpu.matmul %121, %123, %cst_120 {dimension_numbers = #tpu.dot_dimension_numbers<[1], [0], [0], [1], [0, 0, 1, 1], [], []>} : vector<256x64xbf16>, vector<64x64xbf16>, vector<256x64xf32> -> vector<256x64xf32>
    %125 = arith.addf %118, %124 : vector<256x64xf32>
    %c2_121 = arith.constant 2 : index
    %c1_122 = arith.constant 1 : index
    %c0_123 = arith.constant 0 : index
    %126 = vector.load %arg7[%c2_121, %c1_122, %c0_123] : memref<18x18x64xf32, #tpu.memory_space<vmem>>, vector<16x16x64xf32>
    %127 = vector.shape_cast %126 : vector<16x16x64xf32> to vector<256x64xf32>
    %128 = arith.truncf %127 : vector<256x64xf32> to vector<256x64xbf16>
    %c7_124 = arith.constant 7 : index
    %c0_125 = arith.constant 0 : index
    %c0_126 = arith.constant 0 : index
    %129 = vector.load %arg4[%c7_124, %c0_125, %c0_126] : memref<9x64x64xbf16, #tpu.memory_space<vmem>>, vector<1x64x64xbf16>
    %130 = vector.shape_cast %129 : vector<1x64x64xbf16> to vector<64x64xbf16>
    %cst_127 = arith.constant dense<0.000000e+00> : vector<256x64xf32>
    %131 = tpu.matmul %128, %130, %cst_127 {dimension_numbers = #tpu.dot_dimension_numbers<[1], [0], [0], [1], [0, 0, 1, 1], [], []>} : vector<256x64xbf16>, vector<64x64xbf16>, vector<256x64xf32> -> vector<256x64xf32>
    %132 = arith.addf %125, %131 : vector<256x64xf32>
    %c2_128 = arith.constant 2 : index
    %c2_129 = arith.constant 2 : index
    %c0_130 = arith.constant 0 : index
    %133 = vector.load %arg7[%c2_128, %c2_129, %c0_130] : memref<18x18x64xf32, #tpu.memory_space<vmem>>, vector<16x16x64xf32>
    %134 = vector.shape_cast %133 : vector<16x16x64xf32> to vector<256x64xf32>
    %135 = arith.truncf %134 : vector<256x64xf32> to vector<256x64xbf16>
    %c8_131 = arith.constant 8 : index
    %c0_132 = arith.constant 0 : index
    %c0_133 = arith.constant 0 : index
    %136 = vector.load %arg4[%c8_131, %c0_132, %c0_133] : memref<9x64x64xbf16, #tpu.memory_space<vmem>>, vector<1x64x64xbf16>
    %137 = vector.shape_cast %136 : vector<1x64x64xbf16> to vector<64x64xbf16>
    %cst_134 = arith.constant dense<0.000000e+00> : vector<256x64xf32>
    %138 = tpu.matmul %135, %137, %cst_134 {dimension_numbers = #tpu.dot_dimension_numbers<[1], [0], [0], [1], [0, 0, 1, 1], [], []>} : vector<256x64xbf16>, vector<64x64xbf16>, vector<256x64xf32> -> vector<256x64xf32>
    %139 = arith.addf %132, %138 : vector<256x64xf32>
    %c0_135 = arith.constant 0 : index
    %c0_136 = arith.constant 0 : index
    %140 = vector.load %arg5[%c0_135, %c0_136] : memref<1x64xf32, #tpu.memory_space<vmem>>, vector<1x64xf32>
    %141 = vector.broadcast %140 : vector<1x64xf32> to vector<256x64xf32>
    %142 = arith.addf %139, %141 : vector<256x64xf32>
    %cst_137 = arith.constant 0.000000e+00 : f32
    %143 = vector.broadcast %cst_137 : f32 to vector<256x64xf32>
    %144 = arith.maximumf %142, %143 : vector<256x64xf32>
    %145 = vector.shape_cast %144 : vector<256x64xf32> to vector<16x8x2x64xf32>
    %cst_138 = arith.constant dense<0xFF800000> : vector<16x8x64xf32>
    %146 = vector.multi_reduction <maximumf>, %145, %cst_138 [2] : vector<16x8x2x64xf32> to vector<16x8x64xf32>
    %147 = vector.shape_cast %146 : vector<16x8x64xf32> to vector<8x2x8x64xf32>
    %148 = vector.extract_strided_slice %147 {offsets = [0, 0, 0, 0], sizes = [8, 1, 8, 64], strides = [1, 1, 1, 1]} : vector<8x2x8x64xf32> to vector<8x1x8x64xf32>
    %149 = vector.shape_cast %148 : vector<8x1x8x64xf32> to vector<8x8x64xf32>
    %150 = vector.extract_strided_slice %147 {offsets = [0, 1, 0, 0], sizes = [8, 1, 8, 64], strides = [1, 1, 1, 1]} : vector<8x2x8x64xf32> to vector<8x1x8x64xf32>
    %151 = vector.shape_cast %150 : vector<8x1x8x64xf32> to vector<8x8x64xf32>
    %152 = arith.maximumf %149, %151 : vector<8x8x64xf32>
    %c0_139 = arith.constant 0 : index
    %c0_140 = arith.constant 0 : index
    %c0_141 = arith.constant 0 : index
    %c0_142 = arith.constant 0 : index
    %153 = vector.load %arg6[%c0_139, %c0_140, %c0_141, %c0_142] : memref<1x8x8x64xf32, #tpu.memory_space<vmem>>, vector<1x8x8x64xf32>
    %154 = vector.shape_cast %153 : vector<1x8x8x64xf32> to vector<8x8x64xf32>
    %155 = vector.shape_cast %152 : vector<8x8x64xf32> to vector<1x8x8x64xf32>
    tpu.vector_store %arg6[%c0_139, %c0_140, %c0_141, %c0_142], %155 {strides = array<i32>} : memref<1x8x8x64xf32, #tpu.memory_space<vmem>>, vector<1x8x8x64xf32>,
    return
  }
  func.func @transform_0(%arg0: i32) -> (i32, i32, i32, i32) {
    %c0_i32 = arith.constant 0 : i32
    %c0_i32_0 = arith.constant 0 : i32
    %c0_i32_1 = arith.constant 0 : i32
    %c0_i32_2 = arith.constant 0 : i32
    return %arg0, %c0_i32, %c0_i32_0, %c0_i32_1 : i32, i32, i32, i32
  }
  func.func @transform_1(%arg0: i32) -> (i32, i32, i32) {
    %c0_i32 = arith.constant 0 : i32
    %c0_i32_0 = arith.constant 0 : i32
    %c0_i32_1 = arith.constant 0 : i32
    %c0_i32_2 = arith.constant 0 : i32
    return %c0_i32, %c0_i32_0, %c0_i32_1 : i32, i32, i32
  }
  func.func @transform_2(%arg0: i32) -> (i32, i32) {
    %c0_i32 = arith.constant 0 : i32
    %c0_i32_0 = arith.constant 0 : i32
    %c0_i32_1 = arith.constant 0 : i32
    return %c0_i32, %c0_i32_0 : i32, i32
  }
  func.func @transform_3(%arg0: i32) -> (i32, i32, i32) {
    %c0_i32 = arith.constant 0 : i32
    %c0_i32_0 = arith.constant 0 : i32
    %c0_i32_1 = arith.constant 0 : i32
    %c0_i32_2 = arith.constant 0 : i32
    return %c0_i32, %c0_i32_0, %c0_i32_1 : i32, i32, i32
  }
  func.func @transform_4(%arg0: i32) -> (i32, i32) {
    %c0_i32 = arith.constant 0 : i32
    %c0_i32_0 = arith.constant 0 : i32
    %c0_i32_1 = arith.constant 0 : i32
    return %c0_i32, %c0_i32_0 : i32, i32
  }
  func.func @transform_5(%arg0: i32) -> (i32, i32, i32, i32) {
    %c0_i32 = arith.constant 0 : i32
    %c0_i32_0 = arith.constant 0 : i32
    %c0_i32_1 = arith.constant 0 : i32
    %c0_i32_2 = arith.constant 0 : i32
    return %arg0, %c0_i32, %c0_i32_0, %c0_i32_1 : i32, i32, i32, i32
  }
}

</mosaic_0001>

<llo_original>
// kernel: tpu_custom_call.1
$region0: #{tpu_custom_call.1}
  #allocation0 [shape = 'u32[]', space=smem, size = 0x4, offset = 0x4, fixed_abs, tag = 'smem constant byte address 0x4 - core index']
  #allocation1 [shape = 'u32[72,128]{1,0:T(1,128)}', space=vmem, size = 0x9000, scoped, tag = 'internal scratch']
  #allocation2 [shape = 'f32[18,18,64]{2,1,0:T(8,128)}', space=vmem, size = 0x36000, scoped, tag = 'scratch operand']
  %s0 = inlined_call_operand.vmem [shape: f32[2,16,16,8], index: 0, kind: input, shape index: {}]
  %s1 = inlined_call_operand.vmem [shape: bf16[9,64,64], index: 1, kind: input, shape index: {}]
  %s2 = inlined_call_operand.vmem [shape: f32[1,64], index: 2, kind: input, shape index: {}]
  %s3 = inlined_call_operand.vmem [shape: bf16[9,64,64], index: 3, kind: input, shape index: {}]
  %s4 = inlined_call_operand.vmem [shape: f32[1,64], index: 4, kind: input, shape index: {}]
  %s5 = inlined_call_operand.hbm [shape: f32[2,8,8,64], index: 5, kind: output, shape index: {}]
  %s6 = sld [smem:[#allocation0]]
  $region53: #{tpu_custom_call.1} parent=0
    _
  %s8 = ssub.s32 1, %s6
  %s9 = scalar_select 0, %s8, %s6
  $region1: #{tpu_custom_call.1} parent=0
    #allocation3 [shape = 'u8[65536]{0}', space=vmem, size = 0x10000, scoped, tag = 'output window, operand 0']
    #allocation4 [shape = 's32[2]{0}', space=sflag, size = 0x8, scoped, tag = 'scoped memory for tpu_custom_call.1']
    %10 = vsyncpa [#allocation4], 0
    %s11 = scalar_lea.sflag [#allocation4], 1
    %12 = vsyncpa %s11, 0
    loop: start=0, step=1, limit=4
    $region2: #{tpu_custom_call.1} parent=1 // loop_pre_header
      _
    $region3: #{tpu_custom_call.1} parent=1 // loop_header
      %s14 = sphi 0, %s18
      %p15 = scmp.ge.s32.totalorder %s14, 4
      %s24 = sphi 0, %s26
      %s27 = sphi 0, %s24
      %s28 = sphi 0, %s27
      %s44 = sphi 0, %s28
      %s48 = sphi 0, %s48
      %s50 = sphi 0, %s48
      %s51 = sphi 0, %s50
      %s65 = sphi 0, %s51
      %s69 = sphi 0, %s69
      %s71 = sphi 0, %s69
      %s72 = sphi 0, %s71
      %s86 = sphi 0, %s72
      %s90 = sphi 0, %s90
      %s92 = sphi 0, %s90
      %s93 = sphi 0, %s92
      %s107 = sphi 0, %s93
      %s111 = sphi 0, %s111
      %s113 = sphi 0, %s111
      %s114 = sphi 0, %s113
      %s128 = sphi 0, %s114
      %s134 = sphi 0, %s136
      %s137 = sphi 0, %s134
      %s138 = sphi 0, %s137
      %s154 = sphi 0, %s138
    $region4: #{tpu_custom_call.1} parent=1 // loop_header_branch
      %17 = sbr.rel (%p15) target = $region8
    $region5: #{tpu_custom_call.1} parent=1 // loop_body
      %s19 = ssub.s32 %s14, 1
      %s20 = ssub.s32 %s14, 2
      %s21 = sadd.s32 %s14, 1
      %s22 = ssub.s32 %s14, %s21
      %p23 = scmp.eq.s32.totalorder %s22, 0
      %s25 = sadd.s32 %s24, 1
      %s26 = scalar_select %p23, %s24, %s25
      %p29 = pneg %p23
      %p30 = scmp.eq.s32.totalorder %s14, 1
      %p31 = por %p29, %p30
      %p32 = scmp.ne.s32.totalorder %s24, %s27
      %p33 = scmp.eq.s32.totalorder %s14, 0
      %p34 = por %p32, %p33
      %p35 = scmp.ne.s32.totalorder %s24, %s27
      %p36 = scmp.eq.s32.totalorder %s19, 1
      %p37 = por %p35, %p36
      %p38 = scmp.ne.s32.totalorder %s27, %s28
      %p39 = scmp.eq.s32.totalorder %s19, 0
      %p40 = por %p38, %p39
      %p41 = scmp.ne.s32.totalorder %s27, %s28
      %p42 = scmp.eq.s32.totalorder %s20, 1
      %p43 = por %p41, %p42
      %p45 = scmp.ne.s32.totalorder %s28, %s44
      %p46 = scmp.eq.s32.totalorder %s20, 0
      %p47 = por %p45, %p46
      %s49 = sadd.s32 %s48, 1
      %p52 = scmp.eq.s32.totalorder %s14, 1
      %p53 = scmp.ne.s32.totalorder %s48, %s50
      %p54 = scmp.eq.s32.totalorder %s14, 0
      %p55 = por %p53, %p54
      %p56 = scmp.ne.s32.totalorder %s48, %s50
      %p57 = scmp.eq.s32.totalorder %s19, 1
      %p58 = por %p56, %p57
      %p59 = scmp.ne.s32.totalorder %s50, %s51
      %p60 = scmp.eq.s32.totalorder %s19, 0
      %p61 = por %p59, %p60
      %p62 = scmp.ne.s32.totalorder %s50, %s51
      %p63 = scmp.eq.s32.totalorder %s20, 1
      %p64 = por %p62, %p63
      %p66 = scmp.ne.s32.totalorder %s51, %s65
      %p67 = scmp.eq.s32.totalorder %s20, 0
      %p68 = por %p66, %p67
      %s70 = sadd.s32 %s69, 1
      %p73 = scmp.eq.s32.totalorder %s14, 1
      %p74 = scmp.ne.s32.totalorder %s69, %s71
      %p75 = scmp.eq.s32.totalorder %s14, 0
      %p76 = por %p74, %p75
      %p77 = scmp.ne.s32.totalorder %s69, %s71
      %p78 = scmp.eq.s32.totalorder %s19, 1
      %p79 = por %p77, %p78
      %p80 = scmp.ne.s32.totalorder %s71, %s72
      %p81 = scmp.eq.s32.totalorder %s19, 0
      %p82 = por %p80, %p81
      %p83 = scmp.ne.s32.totalorder %s71, %s72
      %p84 = scmp.eq.s32.totalorder %s20, 1
      %p85 = por %p83, %p84
      %p87 = scmp.ne.s32.totalorder %s72, %s86
      %p88 = scmp.eq.s32.totalorder %s20, 0
      %p89 = por %p87, %p88
      %s91 = sadd.s32 %s90, 1
      %p94 = scmp.eq.s32.totalorder %s14, 1
      %p95 = scmp.ne.s32.totalorder %s90, %s92
      %p96 = scmp.eq.s32.totalorder %s14, 0
      %p97 = por %p95, %p96
      %p98 = scmp.ne.s32.totalorder %s90, %s92
      %p99 = scmp.eq.s32.totalorder %s19, 1
      %p100 = por %p98, %p99
      %p101 = scmp.ne.s32.totalorder %s92, %s93
      %p102 = scmp.eq.s32.totalorder %s19, 0
      %p103 = por %p101, %p102
      %p104 = scmp.ne.s32.totalorder %s92, %s93
      %p105 = scmp.eq.s32.totalorder %s20, 1
      %p106 = por %p104, %p105
      %p108 = scmp.ne.s32.totalorder %s93, %s107
      %p109 = scmp.eq.s32.totalorder %s20, 0
      %p110 = por %p108, %p109
      %s112 = sadd.s32 %s111, 1
      %p115 = scmp.eq.s32.totalorder %s14, 1
      %p116 = scmp.ne.s32.totalorder %s111, %s113
      %p117 = scmp.eq.s32.totalorder %s14, 0
      %p118 = por %p116, %p117
      %p119 = scmp.ne.s32.totalorder %s111, %s113
      %p120 = scmp.eq.s32.totalorder %s19, 1
      %p121 = por %p119, %p120
      %p122 = scmp.ne.s32.totalorder %s113, %s114
      %p123 = scmp.eq.s32.totalorder %s19, 0
      %p124 = por %p122, %p123
      %p125 = scmp.ne.s32.totalorder %s113, %s114
      %p126 = scmp.eq.s32.totalorder %s20, 1
      %p127 = por %p125, %p126
      %p129 = scmp.ne.s32.totalorder %s114, %s128
      %p130 = scmp.eq.s32.totalorder %s20, 0
      %p131 = por %p129, %p130
      %s132 = ssub.s32 %s14, %s21
      %p133 = scmp.eq.s32.totalorder %s132, 0
      %s135 = sadd.s32 %s134, 1
      %s136 = scalar_select %p133, %s134, %s135
      %p139 = pneg %p133
      %p140 = scmp.eq.s32.totalorder %s14, 1
      %p141 = por %p139, %p140
      %p142 = scmp.ne.s32.totalorder %s134, %s137
      %p143 = scmp.eq.s32.totalorder %s14, 0
      %p144 = por %p142, %p143
      %p145 = scmp.ne.s32.totalorder %s134, %s137
      %p146 = scmp.eq.s32.totalorder %s19, 1
      %p147 = por %p145, %p146
      %p148 = scmp.ne.s32.totalorder %s137, %s138
      %p149 = scmp.eq.s32.totalorder %s19, 0
      %p150 = por %p148, %p149
      %p151 = scmp.ne.s32.totalorder %s137, %s138
      %p152 = scmp.eq.s32.totalorder %s20, 1
      %p153 = por %p151, %p152
      %p155 = scmp.ne.s32.totalorder %s138, %s154
      %p156 = scmp.eq.s32.totalorder %s20, 0
      %p157 = por %p155, %p156
      %p158 = scmp.le.s32.totalorder 1, %s14
      %p159 = scmp.lt.s32.totalorder %s14, 3
      %p160 = pnand %p158, %p159
      %p161 = pneg %p160
      // Predicated region
      $region9: #{tpu_custom_call.1} parent=5 // pred_check
        _
      $region10: #{tpu_custom_call.1} parent=5 // pred_check_branch
        %163 = sbr.rel (%p160) target = $region12
      $region11: #{tpu_custom_call.1} parent=5 // pred_region
        %s164 = ssub.s32 %s14, 1
        // Predicated region
        $region13: #{tpu_custom_call.1} parent=11 // pred_check
          %p165 = pneg %p61
        $region14: #{tpu_custom_call.1} parent=11 // pred_check_branch
          %167 = sbr.rel (%p165) target = $region16
        $region15: #{tpu_custom_call.1} parent=11 // pred_region
          _
        $region16: #{tpu_custom_call.1} parent=11 // pred_fallthru
          _
        // Predicated region
        $region17: #{tpu_custom_call.1} parent=11 // pred_check
          %p168 = pneg %p82
        $region18: #{tpu_custom_call.1} parent=11 // pred_check_branch
          %170 = sbr.rel (%p168) target = $region20
        $region19: #{tpu_custom_call.1} parent=11 // pred_region
          _
        $region20: #{tpu_custom_call.1} parent=11 // pred_fallthru
          _
        // Predicated region
        $region21: #{tpu_custom_call.1} parent=11 // pred_check
          %p171 = pneg %p103
        $region22: #{tpu_custom_call.1} parent=11 // pred_check_branch
          %173 = sbr.rel (%p171) target = $region24
        $region23: #{tpu_custom_call.1} parent=11 // pred_region
          _
        $region24: #{tpu_custom_call.1} parent=11 // pred_fallthru
          _
        // Predicated region
        $region25: #{tpu_custom_call.1} parent=11 // pred_check
          %p174 = pneg %p124
        $region26: #{tpu_custom_call.1} parent=11 // pred_check_branch
          %176 = sbr.rel (%p174) target = $region28
        $region27: #{tpu_custom_call.1} parent=11 // pred_region
          _
        $region28: #{tpu_custom_call.1} parent=11 // pred_fallthru
          _
      $region12: #{tpu_custom_call.1} parent=5 // pred_fallthru
        _
      %p177 = scmp.lt.s32.totalorder %s14, 2
      // Predicated region
      $region29: #{tpu_custom_call.1} parent=5 // pred_check
        %p178 = pneg %p177
      $region30: #{tpu_custom_call.1} parent=5 // pred_check_branch
        %180 = sbr.rel (%p178) target = $region32
      $region31: #{tpu_custom_call.1} parent=5 // pred_region
        // Predicated region
        $region33: #{tpu_custom_call.1} parent=31 // pred_check
          %p181 = pneg %p34
        $region34: #{tpu_custom_call.1} parent=31 // pred_check_branch
          %183 = sbr.rel (%p181) target = $region36
        $region35: #{tpu_custom_call.1} parent=31 // pred_region
          %p184 = scmp.lt.s32.totalorder %s14, 1
          %s185 = scalar_select %p184, %s14, 1
          %s186 = smul.addr %s185, 32
          %s187 = smul.addr %s186, 8
          %s188 = scalar_lea.vmem %s0, %s187
        $region36: #{tpu_custom_call.1} parent=31 // pred_fallthru
          _
      $region32: #{tpu_custom_call.1} parent=5 // pred_fallthru
        _
      %p189 = scmp.le.s32.totalorder 1, %s14
      %p190 = scmp.lt.s32.totalorder %s14, 3
      %p191 = pnand %p189, %p190
      %p192 = pneg %p191
      // Predicated region
      $region37: #{tpu_custom_call.1} parent=5 // pred_check
        _
      $region38: #{tpu_custom_call.1} parent=5 // pred_check_branch
        %194 = sbr.rel (%p191) target = $region40
      $region39: #{tpu_custom_call.1} parent=5 // pred_region
        %s195 = ssub.s32 %s14, 1
        %p196 = scmp.lt.s32.totalorder %s19, 1
        %s197 = scalar_select %p196, %s19, 1
        %s198 = smul.addr %s197, 32
        %s199 = smul.addr %s198, 8
        %s200 = scalar_lea.vmem %s0, %s199
        %p201 = pneg %p40
        %p202 = pneg %p37
        %p203 = pneg %p61
        %p204 = pneg %p58
        %p205 = pneg %p82
        %p206 = pneg %p79
        %p207 = pneg %p103
        %p208 = pneg %p100
        %p209 = pneg %p124
        %p210 = pneg %p121
        %p211 = pneg %p150
        %p212 = pneg %p147
        %s213 = sand.u32 %s137, 1
        %s214 = scalar_lea.sflag [#allocation4], %s213
        %s215 = sand.u32 %s137, 1
        %s216 = smul.addr %s215, 64
        %s217 = scalar_lea.vmem [#allocation3], %s216
        %p218 = scmp.lt.s32.totalorder %s19, 1
        %s219 = scalar_select %p218, %s19, 1
        %s220 = smul.addr %s219, 32
        %s221 = smul.addr %s220, 8
        %s222 = scalar_lea.vmem %s0, %s221
        %vm224 = vcmask 523264
        %225 = vst.msk [vmem:[#allocation2] sm:$0xff] %vm224, 0.0
        %226 = vst.msk [vmem:[#allocation2 + $0x8] sm:$0xff] %vm224, 0.0
        %vm227 = vcmask 517120
        %228 = vst.msk [vmem:[#allocation2 + $0x10] sm:$0x3] %vm227, 0.0
        %229 = vst.msk [vmem:[#allocation2 + $0x18] sm:$0xff] %vm224, 0.0
        %230 = vst.msk [vmem:[#allocation2 + $0x20] sm:$0xff] %vm224, 0.0
        %231 = vst.msk [vmem:[#allocation2 + $0x28] sm:$0x3] %vm227, 0.0
        %232 = vst.msk [vmem:[#allocation2 + $0x30] sm:$0xff] %vm224, 0.0
        %233 = vst.msk [vmem:[#allocation2 + $0x38] sm:$0xff] %vm224, 0.0
        %234 = vst.msk [vmem:[#allocation2 + $0x40] sm:$0x3] %vm227, 0.0
        %235 = vst.msk [vmem:[#allocation2 + $0x48] sm:$0xff] %vm224, 0.0
        %236 = vst.msk [vmem:[#allocation2 + $0x50] sm:$0xff] %vm224, 0.0
        %237 = vst.msk [vmem:[#allocation2 + $0x58] sm:$0x3] %vm227, 0.0
        %238 = vst.msk [vmem:[#allocation2 + $0x60] sm:$0xff] %vm224, 0.0
        %239 = vst.msk [vmem:[#allocation2 + $0x68] sm:$0xff] %vm224, 0.0
        %240 = vst.msk [vmem:[#allocation2 + $0x70] sm:$0x3] %vm227, 0.0
        %241 = vst.msk [vmem:[#allocation2 + $0x78] sm:$0xff] %vm224, 0.0
        %242 = vst.msk [vmem:[#allocation2 + $0x80] sm:$0xff] %vm224, 0.0
        %243 = vst.msk [vmem:[#allocation2 + $0x88] sm:$0x3] %vm227, 0.0
        %244 = vst.msk [vmem:[#allocation2 + $0x90] sm:$0xff] %vm224, 0.0
        %245 = vst.msk [vmem:[#allocation2 + $0x98] sm:$0xff] %vm224, 0.0
        %246 = vst.msk [vmem:[#allocation2 + $0xa0] sm:$0x3] %vm227, 0.0
        %247 = vst.msk [vmem:[#allocation2 + $0xa8] sm:$0xff] %vm224, 0.0
        %248 = vst.msk [vmem:[#allocation2 + $0xb0] sm:$0xff] %vm224, 0.0
        %249 = vst.msk [vmem:[#allocation2 + $0xb8] sm:$0x3] %vm227, 0.0
        %250 = vst.msk [vmem:[#allocation2 + $0xc0] sm:$0xff] %vm224, 0.0
        %251 = vst.msk [vmem:[#allocation2 + $0xc8] sm:$0xff] %vm224, 0.0
        %252 = vst.msk [vmem:[#allocation2 + $0xd0] sm:$0x3] %vm227, 0.0
        %253 = vst.msk [vmem:[#allocation2 + $0xd8] sm:$0xff] %vm224, 0.0
        %254 = vst.msk [vmem:[#allocation2 + $0xe0] sm:$0xff] %vm224, 0.0
        %255 = vst.msk [vmem:[#allocation2 + $0xe8] sm:$0x3] %vm227, 0.0
        %256 = vst.msk [vmem:[#allocation2 + $0xf0] sm:$0xff] %vm224, 0.0
        %257 = vst.msk [vmem:[#allocation2 + $0xf8] sm:$0xff] %vm224, 0.0
        %258 = vst.msk [vmem:[#allocation2 + $0x100] sm:$0x3] %vm227, 0.0
        %259 = vst.msk [vmem:[#allocation2 + $0x108] sm:$0xff] %vm224, 0.0
        %260 = vst.msk [vmem:[#allocation2 + $0x110] sm:$0xff] %vm224, 0.0
        %261 = vst.msk [vmem:[#allocation2 + $0x118] sm:$0x3] %vm227, 0.0
        %262 = vst.msk [vmem:[#allocation2 + $0x120] sm:$0xff] %vm224, 0.0
        %263 = vst.msk [vmem:[#allocation2 + $0x128] sm:$0xff] %vm224, 0.0
        %264 = vst.msk [vmem:[#allocation2 + $0x130] sm:$0x3] %vm227, 0.0
        %265 = vst.msk [vmem:[#allocation2 + $0x138] sm:$0xff] %vm224, 0.0
        %266 = vst.msk [vmem:[#allocation2 + $0x140] sm:$0xff] %vm224, 0.0
        %267 = vst.msk [vmem:[#allocation2 + $0x148] sm:$0x3] %vm227, 0.0
        %268 = vst.msk [vmem:[#allocation2 + $0x150] sm:$0xff] %vm224, 0.0
        %269 = vst.msk [vmem:[#allocation2 + $0x158] sm:$0xff] %vm224, 0.0
        %270 = vst.msk [vmem:[#allocation2 + $0x160] sm:$0x3] %vm227, 0.0
        %271 = vst.msk [vmem:[#allocation2 + $0x168] sm:$0xff] %vm224, 0.0
        %272 = vst.msk [vmem:[#allocation2 + $0x170] sm:$0xff] %vm224, 0.0
        %273 = vst.msk [vmem:[#allocation2 + $0x178] sm:$0x3] %vm227, 0.0
        %274 = vst.msk [vmem:[#allocation2 + $0x180] sm:$0xff] %vm224, 0.0
        %275 = vst.msk [vmem:[#allocation2 + $0x188] sm:$0xff] %vm224, 0.0
        %276 = vst.msk [vmem:[#allocation2 + $0x190] sm:$0x3] %vm227, 0.0
        %277 = vst.msk [vmem:[#allocation2 + $0x198] sm:$0xff] %vm224, 0.0
        %278 = vst.msk [vmem:[#allocation2 + $0x1a0] sm:$0xff] %vm224, 0.0
        %279 = vst.msk [vmem:[#allocation2 + $0x1a8] sm:$0x3] %vm227, 0.0
        %v280 = vld [vmem:[%s222] sm:$0xff]
        %v281 = vld [vmem:[%s222 + $0x8] sm:$0xff]
        %v282 = vld [vmem:[%s222 + $0x10] sm:$0xff]
        %v283 = vld [vmem:[%s222 + $0x18] sm:$0xff]
        %v284 = vld [vmem:[%s222 + $0x20] sm:$0xff]
        %v285 = vld [vmem:[%s222 + $0x28] sm:$0xff]
        %v286 = vld [vmem:[%s222 + $0x30] sm:$0xff]
        %v287 = vld [vmem:[%s222 + $0x38] sm:$0xff]
        %v288 = vld [vmem:[%s222 + $0x40] sm:$0xff]
        %v289 = vld [vmem:[%s222 + $0x48] sm:$0xff]
        %v290 = vld [vmem:[%s222 + $0x50] sm:$0xff]
        %v291 = vld [vmem:[%s222 + $0x58] sm:$0xff]
        %v292 = vld [vmem:[%s222 + $0x60] sm:$0xff]
        %v293 = vld [vmem:[%s222 + $0x68] sm:$0xff]
        %v294 = vld [vmem:[%s222 + $0x70] sm:$0xff]
        %v295 = vld [vmem:[%s222 + $0x78] sm:$0xff]
        %v296 = vld [vmem:[%s222 + $0x80] sm:$0xff]
        %v297 = vld [vmem:[%s222 + $0x88] sm:$0xff]
        %v298 = vld [vmem:[%s222 + $0x90] sm:$0xff]
        %v299 = vld [vmem:[%s222 + $0x98] sm:$0xff]
        %v300 = vld [vmem:[%s222 + $0xa0] sm:$0xff]
        %v301 = vld [vmem:[%s222 + $0xa8] sm:$0xff]
        %v302 = vld [vmem:[%s222 + $0xb0] sm:$0xff]
        %v303 = vld [vmem:[%s222 + $0xb8] sm:$0xff]
        %v304 = vld [vmem:[%s222 + $0xc0] sm:$0xff]
        %v305 = vld [vmem:[%s222 + $0xc8] sm:$0xff]
        %v306 = vld [vmem:[%s222 + $0xd0] sm:$0xff]
        %v307 = vld [vmem:[%s222 + $0xd8] sm:$0xff]
        %v308 = vld [vmem:[%s222 + $0xe0] sm:$0xff]
        %v309 = vld [vmem:[%s222 + $0xe8] sm:$0xff]
        %v310 = vld [vmem:[%s222 + $0xf0] sm:$0xff]
        %v311 = vld [vmem:[%s222 + $0xf8] sm:$0xff]
        %s312 = scalar_lea.vmem [#allocation2], 24
        %vm313 = vcmask 64512
        %314 = vst.msk [vmem:[%s312 + $0x1] sm:$0xff] %vm313, %v280
        %315 = vst.msk [vmem:[%s312 + $0x9] sm:$0xff] %vm313, %v281
        %316 = vst.msk [vmem:[%s312 + $0x19] sm:$0xff] %vm313, %v282
        %317 = vst.msk [vmem:[%s312 + $0x21] sm:$0xff] %vm313, %v283
        %318 = vst.msk [vmem:[%s312 + $0x31] sm:$0xff] %vm313, %v284
        %319 = vst.msk [vmem:[%s312 + $0x39] sm:$0xff] %vm313, %v285
        %320 = vst.msk [vmem:[%s312 + $0x49] sm:$0xff] %vm313, %v286
        %321 = vst.msk [vmem:[%s312 + $0x51] sm:$0xff] %vm313, %v287
        %322 = vst.msk [vmem:[%s312 + $0x61] sm:$0xff] %vm313, %v288
        %323 = vst.msk [vmem:[%s312 + $0x69] sm:$0xff] %vm313, %v289
        %324 = vst.msk [vmem:[%s312 + $0x79] sm:$0xff] %vm313, %v290
        %325 = vst.msk [vmem:[%s312 + $0x81] sm:$0xff] %vm313, %v291
        %326 = vst.msk [vmem:[%s312 + $0x91] sm:$0xff] %vm313, %v292
        %327 = vst.msk [vmem:[%s312 + $0x99] sm:$0xff] %vm313, %v293
        %328 = vst.msk [vmem:[%s312 + $0xa9] sm:$0xff] %vm313, %v294
        %329 = vst.msk [vmem:[%s312 + $0xb1] sm:$0xff] %vm313, %v295
        %330 = vst.msk [vmem:[%s312 + $0xc1] sm:$0xff] %vm313, %v296
        %331 = vst.msk [vmem:[%s312 + $0xc9] sm:$0xff] %vm313, %v297
        %332 = vst.msk [vmem:[%s312 + $0xd9] sm:$0xff] %vm313, %v298
        %333 = vst.msk [vmem:[%s312 + $0xe1] sm:$0xff] %vm313, %v299
        %334 = vst.msk [vmem:[%s312 + $0xf1] sm:$0xff] %vm313, %v300
        %335 = vst.msk [vmem:[%s312 + $0xf9] sm:$0xff] %vm313, %v301
        %336 = vst.msk [vmem:[%s312 + $0x109] sm:$0xff] %vm313, %v302
        %337 = vst.msk [vmem:[%s312 + $0x111] sm:$0xff] %vm313, %v303
        %338 = vst.msk [vmem:[%s312 + $0x121] sm:$0xff] %vm313, %v304
        %339 = vst.msk [vmem:[%s312 + $0x129] sm:$0xff] %vm313, %v305
        %340 = vst.msk [vmem:[%s312 + $0x139] sm:$0xff] %vm313, %v306
        %341 = vst.msk [vmem:[%s312 + $0x141] sm:$0xff] %vm313, %v307
        %342 = vst.msk [vmem:[%s312 + $0x151] sm:$0xff] %vm313, %v308
        %343 = vst.msk [vmem:[%s312 + $0x159] sm:$0xff] %vm313, %v309
        %344 = vst.msk [vmem:[%s312 + $0x169] sm:$0xff] %vm313, %v310
        %345 = vst.msk [vmem:[%s312 + $0x171] sm:$0xff] %vm313, %v311
        %v346 = vld [vmem:[#allocation2] sm:$0xff]
        %v347 = vld [vmem:[#allocation2 + $0x8] sm:$0xff]
        %v348 = vld [vmem:[#allocation2 + $0x18] sm:$0xff]
        %v349 = vld [vmem:[#allocation2 + $0x20] sm:$0xff]
        %v350 = vld [vmem:[#allocation2 + $0x30] sm:$0xff]
        %v351 = vld [vmem:[#allocation2 + $0x38] sm:$0xff]
        %v352 = vld [vmem:[#allocation2 + $0x48] sm:$0xff]
        %v353 = vld [vmem:[#allocation2 + $0x50] sm:$0xff]
        %v354 = vld [vmem:[#allocation2 + $0x60] sm:$0xff]
        %v355 = vld [vmem:[#allocation2 + $0x68] sm:$0xff]
        %v356 = vld [vmem:[#allocation2 + $0x78] sm:$0xff]
        %v357 = vld [vmem:[#allocation2 + $0x80] sm:$0xff]
        %v358 = vld [vmem:[#allocation2 + $0x90] sm:$0xff]
        %v359 = vld [vmem:[#allocation2 + $0x98] sm:$0xff]
        %v360 = vld [vmem:[#allocation2 + $0xa8] sm:$0xff]
        %v361 = vld [vmem:[#allocation2 + $0xb0] sm:$0xff]
        %v362 = vld [vmem:[#allocation2 + $0xc0] sm:$0xff]
        %v363 = vld [vmem:[#allocation2 + $0xc8] sm:$0xff]
        %v364 = vld [vmem:[#allocation2 + $0xd8] sm:$0xff]
        %v365 = vld [vmem:[#allocation2 + $0xe0] sm:$0xff]
        %v366 = vld [vmem:[#allocation2 + $0xf0] sm:$0xff]
        %v367 = vld [vmem:[#allocation2 + $0xf8] sm:$0xff]
        %v368 = vld [vmem:[#allocation2 + $0x108] sm:$0xff]
        %v369 = vld [vmem:[#allocation2 + $0x110] sm:$0xff]
        %v370 = vld [vmem:[#allocation2 + $0x120] sm:$0xff]
        %v371 = vld [vmem:[#allocation2 + $0x128] sm:$0xff]
        %v372 = vld [vmem:[#allocation2 + $0x138] sm:$0xff]
        %v373 = vld [vmem:[#allocation2 + $0x140] sm:$0xff]
        %v374 = vld [vmem:[#allocation2 + $0x150] sm:$0xff]
        %v375 = vld [vmem:[#allocation2 + $0x158] sm:$0xff]
        %v376 = vld [vmem:[#allocation2 + $0x168] sm:$0xff]
        %v377 = vld [vmem:[#allocation2 + $0x170] sm:$0xff]
        %v378 = vpack.c.bf16 %v347, %v346
        %v379 = vpack.c.bf16 %v349, %v348
        %v380 = vpack.c.bf16 %v351, %v350
        %v381 = vpack.c.bf16 %v353, %v352
        %v382 = vpack.c.bf16 %v355, %v354
        %v383 = vpack.c.bf16 %v357, %v356
        %v384 = vpack.c.bf16 %v359, %v358
        %v385 = vpack.c.bf16 %v361, %v360
        %v386 = vpack.c.bf16 %v363, %v362
        %v387 = vpack.c.bf16 %v365, %v364
        %v388 = vpack.c.bf16 %v367, %v366
        %v389 = vpack.c.bf16 %v369, %v368
        %v390 = vpack.c.bf16 %v371, %v370
        %v391 = vpack.c.bf16 %v373, %v372
        %v392 = vpack.c.bf16 %v375, %v374
        %v393 = vpack.c.bf16 %v377, %v376
        %v394 = vld [vmem:[%s1] sm:$0xf]
        %v395 = vld [vmem:[%s1 + $0x4] sm:$0xf]
        %v396 = vld [vmem:[%s1 + $0x8] sm:$0xf]
        %v397 = vld [vmem:[%s1 + $0xc] sm:$0xf]
        %v398 = vld [vmem:[%s1 + $0x10] sm:$0xf]
        %v399 = vld [vmem:[%s1 + $0x14] sm:$0xf]
        %v400 = vld [vmem:[%s1 + $0x18] sm:$0xf]
        %v401 = vld [vmem:[%s1 + $0x1c] sm:$0xf]
        %v402 = vld [vmem:[#allocation2 + $0x1] sm:$0xff]
        %v403 = vld [vmem:[#allocation2 + $0x9] sm:$0xff]
        %v404 = vld [vmem:[#allocation2 + $0x19] sm:$0xff]
        %v405 = vld [vmem:[#allocation2 + $0x21] sm:$0xff]
        %v406 = vld [vmem:[#allocation2 + $0x31] sm:$0xff]
        %v407 = vld [vmem:[#allocation2 + $0x39] sm:$0xff]
        %v408 = vld [vmem:[#allocation2 + $0x49] sm:$0xff]
        %v409 = vld [vmem:[#allocation2 + $0x51] sm:$0xff]
        %v410 = vld [vmem:[#allocation2 + $0x61] sm:$0xff]
        %v411 = vld [vmem:[#allocation2 + $0x69] sm:$0xff]
        %v412 = vld [vmem:[#allocation2 + $0x79] sm:$0xff]
        %v413 = vld [vmem:[#allocation2 + $0x81] sm:$0xff]
        %v414 = vld [vmem:[#allocation2 + $0x91] sm:$0xff]
        %v415 = vld [vmem:[#allocation2 + $0x99] sm:$0xff]
        %v416 = vld [vmem:[#allocation2 + $0xa9] sm:$0xff]
        %v417 = vld [vmem:[#allocation2 + $0xb1] sm:$0xff]
        %v418 = vld [vmem:[#allocation2 + $0xc1] sm:$0xff]
        %v419 = vld [vmem:[#allocation2 + $0xc9] sm:$0xff]
        %v420 = vld [vmem:[#allocation2 + $0xd9] sm:$0xff]
        %v421 = vld [vmem:[#allocation2 + $0xe1] sm:$0xff]
        %v422 = vld [vmem:[#allocation2 + $0xf1] sm:$0xff]
        %v423 = vld [vmem:[#allocation2 + $0xf9] sm:$0xff]
        %v424 = vld [vmem:[#allocation2 + $0x109] sm:$0xff]
        %v425 = vld [vmem:[#allocation2 + $0x111] sm:$0xff]
        %v426 = vld [vmem:[#allocation2 + $0x121] sm:$0xff]
        %v427 = vld [vmem:[#allocation2 + $0x129] sm:$0xff]
        %v428 = vld [vmem:[#allocation2 + $0x139] sm:$0xff]
        %v429 = vld [vmem:[#allocation2 + $0x141] sm:$0xff]
        %v430 = vld [vmem:[#allocation2 + $0x151] sm:$0xff]
        %v431 = vld [vmem:[#allocation2 + $0x159] sm:$0xff]
        %v432 = vld [vmem:[#allocation2 + $0x169] sm:$0xff]
        %v433 = vld [vmem:[#allocation2 + $0x171] sm:$0xff]
        %v434 = vpack.c.bf16 %v403, %v402
        %v435 = vpack.c.bf16 %v405, %v404
        %v436 = vpack.c.bf16 %v407, %v406
        %v437 = vpack.c.bf16 %v409, %v408
        %v438 = vpack.c.bf16 %v411, %v410
        %v439 = vpack.c.bf16 %v413, %v412
        %v440 = vpack.c.bf16 %v415, %v414
        %v441 = vpack.c.bf16 %v417, %v416
        %v442 = vpack.c.bf16 %v419, %v418
        %v443 = vpack.c.bf16 %v421, %v420
        %v444 = vpack.c.bf16 %v423, %v422
        %v445 = vpack.c.bf16 %v425, %v424
        %v446 = vpack.c.bf16 %v427, %v426
        %v447 = vpack.c.bf16 %v429, %v428
        %v448 = vpack.c.bf16 %v431, %v430
        %v449 = vpack.c.bf16 %v433, %v432
        %s450 = scalar_lea.vmem %s1, 32
        %v451 = vld [vmem:[%s450] sm:$0xf]
        %v452 = vld [vmem:[%s450 + $0x4] sm:$0xf]
        %v453 = vld [vmem:[%s450 + $0x8] sm:$0xf]
        %v454 = vld [vmem:[%s450 + $0xc] sm:$0xf]
        %v455 = vld [vmem:[%s450 + $0x10] sm:$0xf]
        %v456 = vld [vmem:[%s450 + $0x14] sm:$0xf]
        %v457 = vld [vmem:[%s450 + $0x18] sm:$0xf]
        %v458 = vld [vmem:[%s450 + $0x1c] sm:$0xf]
        %v467 = vunpack.c.l.b16 %v451
        %v468 = vunpack.c.l.b16 %v452
        %v469 = vunpack.c.l.b16 %v453
        %v470 = vunpack.c.l.b16 %v454
        %v471 = vunpack.c.l.b16 %v455
        %v472 = vunpack.c.l.b16 %v456
        %v473 = vunpack.c.l.b16 %v457
        %v474 = vunpack.c.l.b16 %v458
        %v475 = vpack.c.b16 %v468, %v467
        %v476 = vpack.c.b16 %v470, %v469
        %v477 = vpack.c.b16 %v472, %v471
        %v478 = vpack.c.b16 %v474, %v473
        %v484 = vsel %vm224, %v434, 0
        %v487 = vsel %vm224, %v435, 0
        %v490 = vsel %vm224, %v436, 0
        %v493 = vsel %vm224, %v437, 0
        %v496 = vsel %vm224, %v438, 0
        %v499 = vsel %vm224, %v439, 0
        %v502 = vsel %vm224, %v440, 0
        %v505 = vsel %vm224, %v441, 0
        %v508 = vsel %vm224, %v442, 0
        %v511 = vsel %vm224, %v443, 0
        %v514 = vsel %vm224, %v444, 0
        %v517 = vsel %vm224, %v445, 0
        %v520 = vsel %vm224, %v446, 0
        %v523 = vsel %vm224, %v447, 0
        %v526 = vsel %vm224, %v448, 0
        %v529 = vsel %vm224, %v449, 0
        %531 = vmatpush.bf16.msra.mxu0 0
        %532 = vmatpush.bf16.msra.mxu0 0
        %533 = vmatpush.bf16.msra.mxu0 0
        %534 = vmatpush.bf16.msra.mxu0 0
        %535 = vmatpush.bf16.msra.mxu0 %v478
        %536 = vmatpush.bf16.msra.mxu0 %v477
        %537 = vmatpush.bf16.msra.mxu0 %v476
        %538 = vmatpush.bf16.msra.mxu0 %v475
        %539 = vmatmul.bf16.gmra.mxu0 %v484
        %v540 = vpop.f32.mrf.mxu0
        %v541 = vadd.f32 0.0, %v540
        %v542 = vpop.f32.mrf.mxu0
        %v543 = vadd.f32 0.0, %v542
        %544 = vmatmul.bf16.gmra.mxu0 %v487
        %v545 = vpop.f32.mrf.mxu0
        %v546 = vadd.f32 0.0, %v545
        %v547 = vpop.f32.mrf.mxu0
        %v548 = vadd.f32 0.0, %v547
        %549 = vmatmul.bf16.gmra.mxu0 %v490
        %v550 = vpop.f32.mrf.mxu0
        %v551 = vadd.f32 0.0, %v550
        %v552 = vpop.f32.mrf.mxu0
        %v553 = vadd.f32 0.0, %v552
        %554 = vmatmul.bf16.gmra.mxu0 %v493
        %v555 = vpop.f32.mrf.mxu0
        %v556 = vadd.f32 0.0, %v555
        %v557 = vpop.f32.mrf.mxu0
        %v558 = vadd.f32 0.0, %v557
        %559 = vmatmul.bf16.gmra.mxu0 %v496
        %v560 = vpop.f32.mrf.mxu0
        %v561 = vadd.f32 0.0, %v560
        %v562 = vpop.f32.mrf.mxu0
        %v563 = vadd.f32 0.0, %v562
        %564 = vmatmul.bf16.gmra.mxu0 %v499
        %v565 = vpop.f32.mrf.mxu0
        %v566 = vadd.f32 0.0, %v565
        %v567 = vpop.f32.mrf.mxu0
        %v568 = vadd.f32 0.0, %v567
        %569 = vmatmul.bf16.gmra.mxu0 %v502
        %v570 = vpop.f32.mrf.mxu0
        %v571 = vadd.f32 0.0, %v570
        %v572 = vpop.f32.mrf.mxu0
        %v573 = vadd.f32 0.0, %v572
        %574 = vmatmul.bf16.gmra.mxu0 %v505
        %v575 = vpop.f32.mrf.mxu0
        %v576 = vadd.f32 0.0, %v575
        %v577 = vpop.f32.mrf.mxu0
        %v578 = vadd.f32 0.0, %v577
        %579 = vmatmul.bf16.gmra.mxu0 %v508
        %v580 = vpop.f32.mrf.mxu0
        %v581 = vadd.f32 0.0, %v580
        %v582 = vpop.f32.mrf.mxu0
        %v583 = vadd.f32 0.0, %v582
        %584 = vmatmul.bf16.gmra.mxu0 %v511
        %v585 = vpop.f32.mrf.mxu0
        %v586 = vadd.f32 0.0, %v585
        %v587 = vpop.f32.mrf.mxu0
        %v588 = vadd.f32 0.0, %v587
        %589 = vmatmul.bf16.gmra.mxu0 %v514
        %v590 = vpop.f32.mrf.mxu0
        %v591 = vadd.f32 0.0, %v590
        %v592 = vpop.f32.mrf.mxu0
        %v593 = vadd.f32 0.0, %v592
        %594 = vmatmul.bf16.gmra.mxu0 %v517
        %v595 = vpop.f32.mrf.mxu0
        %v596 = vadd.f32 0.0, %v595
        %v597 = vpop.f32.mrf.mxu0
        %v598 = vadd.f32 0.0, %v597
        %599 = vmatmul.bf16.gmra.mxu0 %v520
        %v600 = vpop.f32.mrf.mxu0
        %v601 = vadd.f32 0.0, %v600
        %v602 = vpop.f32.mrf.mxu0
        %v603 = vadd.f32 0.0, %v602
        %604 = vmatmul.bf16.gmra.mxu0 %v523
        %v605 = vpop.f32.mrf.mxu0
        %v606 = vadd.f32 0.0, %v605
        %v607 = vpop.f32.mrf.mxu0
        %v608 = vadd.f32 0.0, %v607
        %609 = vmatmul.bf16.gmra.mxu0 %v526
        %v610 = vpop.f32.mrf.mxu0
        %v611 = vadd.f32 0.0, %v610
        %v612 = vpop.f32.mrf.mxu0
        %v613 = vadd.f32 0.0, %v612
        %614 = vmatmul.bf16.gmra.mxu0 %v529
        %v615 = vpop.f32.mrf.mxu0
        %v616 = vadd.f32 0.0, %v615
        %v617 = vpop.f32.mrf.mxu0
        %v618 = vadd.f32 0.0, %v617
        %619 = vdwg.mxu0
        %v628 = vunpack.c.l.b16 %v394
        %v629 = vunpack.c.l.b16 %v395
        %v630 = vunpack.c.l.b16 %v396
        %v631 = vunpack.c.l.b16 %v397
        %v632 = vunpack.c.l.b16 %v398
        %v633 = vunpack.c.l.b16 %v399
        %v634 = vunpack.c.l.b16 %v400
        %v635 = vunpack.c.l.b16 %v401
        %v636 = vpack.c.b16 %v629, %v628
        %v637 = vpack.c.b16 %v631, %v630
        %v638 = vpack.c.b16 %v633, %v632
        %v639 = vpack.c.b16 %v635, %v634
        %v645 = vsel %vm224, %v378, 0
        %v648 = vsel %vm224, %v379, 0
        %v651 = vsel %vm224, %v380, 0
        %v654 = vsel %vm224, %v381, 0
        %v657 = vsel %vm224, %v382, 0
        %v660 = vsel %vm224, %v383, 0
        %v663 = vsel %vm224, %v384, 0
        %v666 = vsel %vm224, %v385, 0
        %v669 = vsel %vm224, %v386, 0
        %v672 = vsel %vm224, %v387, 0
        %v675 = vsel %vm224, %v388, 0
        %v678 = vsel %vm224, %v389, 0
        %v681 = vsel %vm224, %v390, 0
        %v684 = vsel %vm224, %v391, 0
        %v687 = vsel %vm224, %v392, 0
        %v690 = vsel %vm224, %v393, 0
        %692 = vmatpush.bf16.msra.mxu0 0
        %693 = vmatpush.bf16.msra.mxu0 0
        %694 = vmatpush.bf16.msra.mxu0 0
        %695 = vmatpush.bf16.msra.mxu0 0
        %696 = vmatpush.bf16.msra.mxu0 %v639
        %697 = vmatpush.bf16.msra.mxu0 %v638
        %698 = vmatpush.bf16.msra.mxu0 %v637
        %699 = vmatpush.bf16.msra.mxu0 %v636
        %700 = vmatmul.bf16.gmra.mxu0 %v645
        %v701 = vpop.f32.mrf.mxu0
        %v702 = vadd.f32 %v541, %v701
        %v703 = vpop.f32.mrf.mxu0
        %v704 = vadd.f32 %v543, %v703
        %705 = vmatmul.bf16.gmra.mxu0 %v648
        %v706 = vpop.f32.mrf.mxu0
        %v707 = vadd.f32 %v546, %v706
        %v708 = vpop.f32.mrf.mxu0
        %v709 = vadd.f32 %v548, %v708
        %710 = vmatmul.bf16.gmra.mxu0 %v651
        %v711 = vpop.f32.mrf.mxu0
        %v712 = vadd.f32 %v551, %v711
        %v713 = vpop.f32.mrf.mxu0
        %v714 = vadd.f32 %v553, %v713
        %715 = vmatmul.bf16.gmra.mxu0 %v654
        %v716 = vpop.f32.mrf.mxu0
        %v717 = vadd.f32 %v556, %v716
        %v718 = vpop.f32.mrf.mxu0
        %v719 = vadd.f32 %v558, %v718
        %720 = vmatmul.bf16.gmra.mxu0 %v657
        %v721 = vpop.f32.mrf.mxu0
        %v722 = vadd.f32 %v561, %v721
        %v723 = vpop.f32.mrf.mxu0
        %v724 = vadd.f32 %v563, %v723
        %725 = vmatmul.bf16.gmra.mxu0 %v660
        %v726 = vpop.f32.mrf.mxu0
        %v727 = vadd.f32 %v566, %v726
        %v728 = vpop.f32.mrf.mxu0
        %v729 = vadd.f32 %v568, %v728
        %730 = vmatmul.bf16.gmra.mxu0 %v663
        %v731 = vpop.f32.mrf.mxu0
        %v732 = vadd.f32 %v571, %v731
        %v733 = vpop.f32.mrf.mxu0
        %v734 = vadd.f32 %v573, %v733
        %735 = vmatmul.bf16.gmra.mxu0 %v666
        %v736 = vpop.f32.mrf.mxu0
        %v737 = vadd.f32 %v576, %v736
        %v738 = vpop.f32.mrf.mxu0
        %v739 = vadd.f32 %v578, %v738
        %740 = vmatmul.bf16.gmra.mxu0 %v669
        %v741 = vpop.f32.mrf.mxu0
        %v742 = vadd.f32 %v581, %v741
        %v743 = vpop.f32.mrf.mxu0
        %v744 = vadd.f32 %v583, %v743
        %745 = vmatmul.bf16.gmra.mxu0 %v672
        %v746 = vpop.f32.mrf.mxu0
        %v747 = vadd.f32 %v586, %v746
        %v748 = vpop.f32.mrf.mxu0
        %v749 = vadd.f32 %v588, %v748
        %750 = vmatmul.bf16.gmra.mxu0 %v675
        %v751 = vpop.f32.mrf.mxu0
        %v752 = vadd.f32 %v591, %v751
        %v753 = vpop.f32.mrf.mxu0
        %v754 = vadd.f32 %v593, %v753
        %755 = vmatmul.bf16.gmra.mxu0 %v678
        %v756 = vpop.f32.mrf.mxu0
        %v757 = vadd.f32 %v596, %v756
        %v758 = vpop.f32.mrf.mxu0
        %v759 = vadd.f32 %v598, %v758
        %760 = vmatmul.bf16.gmra.mxu0 %v681
        %v761 = vpop.f32.mrf.mxu0
        %v762 = vadd.f32 %v601, %v761
        %v763 = vpop.f32.mrf.mxu0
        %v764 = vadd.f32 %v603, %v763
        %765 = vmatmul.bf16.gmra.mxu0 %v684
        %v766 = vpop.f32.mrf.mxu0
        %v767 = vadd.f32 %v606, %v766
        %v768 = vpop.f32.mrf.mxu0
        %v769 = vadd.f32 %v608, %v768
        %770 = vmatmul.bf16.gmra.mxu0 %v687
        %v771 = vpop.f32.mrf.mxu0
        %v772 = vadd.f32 %v611, %v771
        %v773 = vpop.f32.mrf.mxu0
        %v774 = vadd.f32 %v613, %v773
        %775 = vmatmul.bf16.gmra.mxu0 %v690
        %v776 = vpop.f32.mrf.mxu0
        %v777 = vadd.f32 %v616, %v776
        %v778 = vpop.f32.mrf.mxu0
        %v779 = vadd.f32 %v618, %v778
        %780 = vdwg.mxu0
        %v781 = vld [vmem:[#allocation2 + $0x2] sm:$0xff]
        %v782 = vld [vmem:[#allocation2 + $0xa] sm:$0xff]
        %v783 = vld [vmem:[#allocation2 + $0x1a] sm:$0xff]
        %v784 = vld [vmem:[#allocation2 + $0x22] sm:$0xff]
        %v785 = vld [vmem:[#allocation2 + $0x32] sm:$0xff]
        %v786 = vld [vmem:[#allocation2 + $0x3a] sm:$0xff]
        %v787 = vld [vmem:[#allocation2 + $0x4a] sm:$0xff]
        %v788 = vld [vmem:[#allocation2 + $0x52] sm:$0xff]
        %v789 = vld [vmem:[#allocation2 + $0x62] sm:$0xff]
        %v790 = vld [vmem:[#allocation2 + $0x6a] sm:$0xff]
        %v791 = vld [vmem:[#allocation2 + $0x7a] sm:$0xff]
        %v792 = vld [vmem:[#allocation2 + $0x82] sm:$0xff]
        %v793 = vld [vmem:[#allocation2 + $0x92] sm:$0xff]
        %v794 = vld [vmem:[#allocation2 + $0x9a] sm:$0xff]
        %v795 = vld [vmem:[#allocation2 + $0xaa] sm:$0xff]
        %v796 = vld [vmem:[#allocation2 + $0xb2] sm:$0xff]
        %v797 = vld [vmem:[#allocation2 + $0xc2] sm:$0xff]
        %v798 = vld [vmem:[#allocation2 + $0xca] sm:$0xff]
        %v799 = vld [vmem:[#allocation2 + $0xda] sm:$0xff]
        %v800 = vld [vmem:[#allocation2 + $0xe2] sm:$0xff]
        %v801 = vld [vmem:[#allocation2 + $0xf2] sm:$0xff]
        %v802 = vld [vmem:[#allocation2 + $0xfa] sm:$0xff]
        %v803 = vld [vmem:[#allocation2 + $0x10a] sm:$0xff]
        %v804 = vld [vmem:[#allocation2 + $0x112] sm:$0xff]
        %v805 = vld [vmem:[#allocation2 + $0x122] sm:$0xff]
        %v806 = vld [vmem:[#allocation2 + $0x12a] sm:$0xff]
        %v807 = vld [vmem:[#allocation2 + $0x13a] sm:$0xff]
        %v808 = vld [vmem:[#allocation2 + $0x142] sm:$0xff]
        %v809 = vld [vmem:[#allocation2 + $0x152] sm:$0xff]
        %v810 = vld [vmem:[#allocation2 + $0x15a] sm:$0xff]
        %v811 = vld [vmem:[#allocation2 + $0x16a] sm:$0xff]
        %v812 = vld [vmem:[#allocation2 + $0x172] sm:$0xff]
        %v813 = vpack.c.bf16 %v782, %v781
        %v814 = vpack.c.bf16 %v784, %v783
        %v815 = vpack.c.bf16 %v786, %v785
        %v816 = vpack.c.bf16 %v788, %v787
        %v817 = vpack.c.bf16 %v790, %v789
        %v818 = vpack.c.bf16 %v792, %v791
        %v819 = vpack.c.bf16 %v794, %v793
        %v820 = vpack.c.bf16 %v796, %v795
        %v821 = vpack.c.bf16 %v798, %v797
        %v822 = vpack.c.bf16 %v800, %v799
        %v823 = vpack.c.bf16 %v802, %v801
        %v824 = vpack.c.bf16 %v804, %v803
        %v825 = vpack.c.bf16 %v806, %v805
        %v826 = vpack.c.bf16 %v808, %v807
        %v827 = vpack.c.bf16 %v810, %v809
        %v828 = vpack.c.bf16 %v812, %v811
        %s829 = scalar_lea.vmem %s1, 64
        %v830 = vld [vmem:[%s829] sm:$0xf]
        %v831 = vld [vmem:[%s829 + $0x4] sm:$0xf]
        %v832 = vld [vmem:[%s829 + $0x8] sm:$0xf]
        %v833 = vld [vmem:[%s829 + $0xc] sm:$0xf]
        %v834 = vld [vmem:[%s829 + $0x10] sm:$0xf]
        %v835 = vld [vmem:[%s829 + $0x14] sm:$0xf]
        %v836 = vld [vmem:[%s829 + $0x18] sm:$0xf]
        %v837 = vld [vmem:[%s829 + $0x1c] sm:$0xf]
        %v846 = vunpack.c.l.b16 %v830
        %v847 = vunpack.c.l.b16 %v831
        %v848 = vunpack.c.l.b16 %v832
        %v849 = vunpack.c.l.b16 %v833
        %v850 = vunpack.c.l.b16 %v834
        %v851 = vunpack.c.l.b16 %v835
        %v852 = vunpack.c.l.b16 %v836
        %v853 = vunpack.c.l.b16 %v837
        %v854 = vpack.c.b16 %v847, %v846
        %v855 = vpack.c.b16 %v849, %v848
        %v856 = vpack.c.b16 %v851, %v850
        %v857 = vpack.c.b16 %v853, %v852
        %v863 = vsel %vm224, %v813, 0
        %v866 = vsel %vm224, %v814, 0
        %v869 = vsel %vm224, %v815, 0
        %v872 = vsel %vm224, %v816, 0
        %v875 = vsel %vm224, %v817, 0
        %v878 = vsel %vm224, %v818, 0
        %v881 = vsel %vm224, %v819, 0
        %v884 = vsel %vm224, %v820, 0
        %v887 = vsel %vm224, %v821, 0
        %v890 = vsel %vm224, %v822, 0
        %v893 = vsel %vm224, %v823, 0
        %v896 = vsel %vm224, %v824, 0
        %v899 = vsel %vm224, %v825, 0
        %v902 = vsel %vm224, %v826, 0
        %v905 = vsel %vm224, %v827, 0
        %v908 = vsel %vm224, %v828, 0
        %910 = vmatpush.bf16.msra.mxu0 0
        %911 = vmatpush.bf16.msra.mxu0 0
        %912 = vmatpush.bf16.msra.mxu0 0
        %913 = vmatpush.bf16.msra.mxu0 0
        %914 = vmatpush.bf16.msra.mxu0 %v857
        %915 = vmatpush.bf16.msra.mxu0 %v856
        %916 = vmatpush.bf16.msra.mxu0 %v855
        %917 = vmatpush.bf16.msra.mxu0 %v854
        %918 = vmatmul.bf16.gmra.mxu0 %v863
        %v919 = vpop.f32.mrf.mxu0
        %v920 = vadd.f32 0.0, %v919
        %v921 = vpop.f32.mrf.mxu0
        %v922 = vadd.f32 0.0, %v921
        %923 = vmatmul.bf16.gmra.mxu0 %v866
        %v924 = vpop.f32.mrf.mxu0
        %v925 = vadd.f32 0.0, %v924
        %v926 = vpop.f32.mrf.mxu0
        %v927 = vadd.f32 0.0, %v926
        %928 = vmatmul.bf16.gmra.mxu0 %v869
        %v929 = vpop.f32.mrf.mxu0
        %v930 = vadd.f32 0.0, %v929
        %v931 = vpop.f32.mrf.mxu0
        %v932 = vadd.f32 0.0, %v931
        %933 = vmatmul.bf16.gmra.mxu0 %v872
        %v934 = vpop.f32.mrf.mxu0
        %v935 = vadd.f32 0.0, %v934
        %v936 = vpop.f32.mrf.mxu0
        %v937 = vadd.f32 0.0, %v936
        %938 = vmatmul.bf16.gmra.mxu0 %v875
        %v939 = vpop.f32.mrf.mxu0
        %v940 = vadd.f32 0.0, %v939
        %v941 = vpop.f32.mrf.mxu0
        %v942 = vadd.f32 0.0, %v941
        %943 = vmatmul.bf16.gmra.mxu0 %v878
        %v944 = vpop.f32.mrf.mxu0
        %v945 = vadd.f32 0.0, %v944
        %v946 = vpop.f32.mrf.mxu0
        %v947 = vadd.f32 0.0, %v946
        %948 = vmatmul.bf16.gmra.mxu0 %v881
        %v949 = vpop.f32.mrf.mxu0
        %v950 = vadd.f32 0.0, %v949
        %v951 = vpop.f32.mrf.mxu0
        %v952 = vadd.f32 0.0, %v951
        %953 = vmatmul.bf16.gmra.mxu0 %v884
        %v954 = vpop.f32.mrf.mxu0
        %v955 = vadd.f32 0.0, %v954
        %v956 = vpop.f32.mrf.mxu0
        %v957 = vadd.f32 0.0, %v956
        %958 = vmatmul.bf16.gmra.mxu0 %v887
        %v959 = vpop.f32.mrf.mxu0
        %v960 = vadd.f32 0.0, %v959
        %v961 = vpop.f32.mrf.mxu0
        %v962 = vadd.f32 0.0, %v961
        %963 = vmatmul.bf16.gmra.mxu0 %v890
        %v964 = vpop.f32.mrf.mxu0
        %v965 = vadd.f32 0.0, %v964
        %v966 = vpop.f32.mrf.mxu0
        %v967 = vadd.f32 0.0, %v966
        %968 = vmatmul.bf16.gmra.mxu0 %v893
        %v969 = vpop.f32.mrf.mxu0
        %v970 = vadd.f32 0.0, %v969
        %v971 = vpop.f32.mrf.mxu0
        %v972 = vadd.f32 0.0, %v971
        %973 = vmatmul.bf16.gmra.mxu0 %v896
        %v974 = vpop.f32.mrf.mxu0
        %v975 = vadd.f32 0.0, %v974
        %v976 = vpop.f32.mrf.mxu0
        %v977 = vadd.f32 0.0, %v976
        %978 = vmatmul.bf16.gmra.mxu0 %v899
        %v979 = vpop.f32.mrf.mxu0
        %v980 = vadd.f32 0.0, %v979
        %v981 = vpop.f32.mrf.mxu0
        %v982 = vadd.f32 0.0, %v981
        %983 = vmatmul.bf16.gmra.mxu0 %v902
        %v984 = vpop.f32.mrf.mxu0
        %v985 = vadd.f32 0.0, %v984
        %v986 = vpop.f32.mrf.mxu0
        %v987 = vadd.f32 0.0, %v986
        %988 = vmatmul.bf16.gmra.mxu0 %v905
        %v989 = vpop.f32.mrf.mxu0
        %v990 = vadd.f32 0.0, %v989
        %v991 = vpop.f32.mrf.mxu0
        %v992 = vadd.f32 0.0, %v991
        %993 = vmatmul.bf16.gmra.mxu0 %v908
        %v994 = vpop.f32.mrf.mxu0
        %v995 = vadd.f32 0.0, %v994
        %v996 = vpop.f32.mrf.mxu0
        %v997 = vadd.f32 0.0, %v996
        %998 = vdwg.mxu0
        %v999 = vadd.f32 %v702, %v920
        %v1000 = vadd.f32 %v704, %v922
        %v1001 = vadd.f32 %v707, %v925
        %v1002 = vadd.f32 %v709, %v927
        %v1003 = vadd.f32 %v712, %v930
        %v1004 = vadd.f32 %v714, %v932
        %v1005 = vadd.f32 %v717, %v935
        %v1006 = vadd.f32 %v719, %v937
        %v1007 = vadd.f32 %v722, %v940
        %v1008 = vadd.f32 %v724, %v942
        %v1009 = vadd.f32 %v727, %v945
        %v1010 = vadd.f32 %v729, %v947
        %v1011 = vadd.f32 %v732, %v950
        %v1012 = vadd.f32 %v734, %v952
        %v1013 = vadd.f32 %v737, %v955
        %v1014 = vadd.f32 %v739, %v957
        %v1015 = vadd.f32 %v742, %v960
        %v1016 = vadd.f32 %v744, %v962
        %v1017 = vadd.f32 %v747, %v965
        %v1018 = vadd.f32 %v749, %v967
        %v1019 = vadd.f32 %v752, %v970
        %v1020 = vadd.f32 %v754, %v972
        %v1021 = vadd.f32 %v757, %v975
        %v1022 = vadd.f32 %v759, %v977
        %v1023 = vadd.f32 %v762, %v980
        %v1024 = vadd.f32 %v764, %v982
        %v1025 = vadd.f32 %v767, %v985
        %v1026 = vadd.f32 %v769, %v987
        %v1027 = vadd.f32 %v772, %v990
        %v1028 = vadd.f32 %v774, %v992
        %v1029 = vadd.f32 %v777, %v995
        %v1030 = vadd.f32 %v779, %v997
        %v1031 = vld [vmem:[%s312] sm:$0xff]
        %v1032 = vld [vmem:[%s312 + $0x8] sm:$0xff]
        %v1033 = vld [vmem:[%s312 + $0x18] sm:$0xff]
        %v1034 = vld [vmem:[%s312 + $0x20] sm:$0xff]
        %v1035 = vld [vmem:[%s312 + $0x30] sm:$0xff]
        %v1036 = vld [vmem:[%s312 + $0x38] sm:$0xff]
        %v1037 = vld [vmem:[%s312 + $0x48] sm:$0xff]
        %v1038 = vld [vmem:[%s312 + $0x50] sm:$0xff]
        %v1039 = vld [vmem:[%s312 + $0x60] sm:$0xff]
        %v1040 = vld [vmem:[%s312 + $0x68] sm:$0xff]
        %v1041 = vld [vmem:[%s312 + $0x78] sm:$0xff]
        %v1042 = vld [vmem:[%s312 + $0x80] sm:$0xff]
        %v1043 = vld [vmem:[%s312 + $0x90] sm:$0xff]
        %v1044 = vld [vmem:[%s312 + $0x98] sm:$0xff]
        %v1045 = vld [vmem:[%s312 + $0xa8] sm:$0xff]
        %v1046 = vld [vmem:[%s312 + $0xb0] sm:$0xff]
        %v1047 = vld [vmem:[%s312 + $0xc0] sm:$0xff]
        %v1048 = vld [vmem:[%s312 + $0xc8] sm:$0xff]
        %v1049 = vld [vmem:[%s312 + $0xd8] sm:$0xff]
        %v1050 = vld [vmem:[%s312 + $0xe0] sm:$0xff]
        %v1051 = vld [vmem:[%s312 + $0xf0] sm:$0xff]
        %v1052 = vld [vmem:[%s312 + $0xf8] sm:$0xff]
        %v1053 = vld [vmem:[%s312 + $0x108] sm:$0xff]
        %v1054 = vld [vmem:[%s312 + $0x110] sm:$0xff]
        %v1055 = vld [vmem:[%s312 + $0x120] sm:$0xff]
        %v1056 = vld [vmem:[%s312 + $0x128] sm:$0xff]
        %v1057 = vld [vmem:[%s312 + $0x138] sm:$0xff]
        %v1058 = vld [vmem:[%s312 + $0x140] sm:$0xff]
        %v1059 = vld [vmem:[%s312 + $0x150] sm:$0xff]
        %v1060 = vld [vmem:[%s312 + $0x158] sm:$0xff]
        %v1061 = vld [vmem:[%s312 + $0x168] sm:$0xff]
        %v1062 = vld [vmem:[%s312 + $0x170] sm:$0xff]
        %v1063 = vpack.c.bf16 %v1032, %v1031
        %v1064 = vpack.c.bf16 %v1034, %v1033
        %v1065 = vpack.c.bf16 %v1036, %v1035
        %v1066 = vpack.c.bf16 %v1038, %v1037
        %v1067 = vpack.c.bf16 %v1040, %v1039
        %v1068 = vpack.c.bf16 %v1042, %v1041
        %v1069 = vpack.c.bf16 %v1044, %v1043
        %v1070 = vpack.c.bf16 %v1046, %v1045
        %v1071 = vpack.c.bf16 %v1048, %v1047
        %v1072 = vpack.c.bf16 %v1050, %v1049
        %v1073 = vpack.c.bf16 %v1052, %v1051
        %v1074 = vpack.c.bf16 %v1054, %v1053
        %v1075 = vpack.c.bf16 %v1056, %v1055
        %v1076 = vpack.c.bf16 %v1058, %v1057
        %v1077 = vpack.c.bf16 %v1060, %v1059
        %v1078 = vpack.c.bf16 %v1062, %v1061
        %s1079 = scalar_lea.vmem %s1, 96
        %v1080 = vld [vmem:[%s1079] sm:$0xf]
        %v1081 = vld [vmem:[%s1079 + $0x4] sm:$0xf]
        %v1082 = vld [vmem:[%s1079 + $0x8] sm:$0xf]
        %v1083 = vld [vmem:[%s1079 + $0xc] sm:$0xf]
        %v1084 = vld [vmem:[%s1079 + $0x10] sm:$0xf]
        %v1085 = vld [vmem:[%s1079 + $0x14] sm:$0xf]
        %v1086 = vld [vmem:[%s1079 + $0x18] sm:$0xf]
        %v1087 = vld [vmem:[%s1079 + $0x1c] sm:$0xf]
        %v1096 = vunpack.c.l.b16 %v1080
        %v1097 = vunpack.c.l.b16 %v1081
        %v1098 = vunpack.c.l.b16 %v1082
        %v1099 = vunpack.c.l.b16 %v1083
        %v1100 = vunpack.c.l.b16 %v1084
        %v1101 = vunpack.c.l.b16 %v1085
        %v1102 = vunpack.c.l.b16 %v1086
        %v1103 = vunpack.c.l.b16 %v1087
        %v1104 = vpack.c.b16 %v1097, %v1096
        %v1105 = vpack.c.b16 %v1099, %v1098
        %v1106 = vpack.c.b16 %v1101, %v1100
        %v1107 = vpack.c.b16 %v1103, %v1102
        %v1113 = vsel %vm224, %v1063, 0
        %v1116 = vsel %vm224, %v1064, 0
        %v1119 = vsel %vm224, %v1065, 0
        %v1122 = vsel %vm224, %v1066, 0
        %v1125 = vsel %vm224, %v1067, 0
        %v1128 = vsel %vm224, %v1068, 0
        %v1131 = vsel %vm224, %v1069, 0
        %v1134 = vsel %vm224, %v1070, 0
        %v1137 = vsel %vm224, %v1071, 0
        %v1140 = vsel %vm224, %v1072, 0
        %v1143 = vsel %vm224, %v1073, 0
        %v1146 = vsel %vm224, %v1074, 0
        %v1149 = vsel %vm224, %v1075, 0
        %v1152 = vsel %vm224, %v1076, 0
        %v1155 = vsel %vm224, %v1077, 0
        %v1158 = vsel %vm224, %v1078, 0
        %1160 = vmatpush.bf16.msra.mxu0 0
        %1161 = vmatpush.bf16.msra.mxu0 0
        %1162 = vmatpush.bf16.msra.mxu0 0
        %1163 = vmatpush.bf16.msra.mxu0 0
        %1164 = vmatpush.bf16.msra.mxu0 %v1107
        %1165 = vmatpush.bf16.msra.mxu0 %v1106
        %1166 = vmatpush.bf16.msra.mxu0 %v1105
        %1167 = vmatpush.bf16.msra.mxu0 %v1104
        %1168 = vmatmul.bf16.gmra.mxu0 %v1113
        %v1169 = vpop.f32.mrf.mxu0
        %v1170 = vadd.f32 0.0, %v1169
        %v1171 = vpop.f32.mrf.mxu0
        %v1172 = vadd.f32 0.0, %v1171
        %1173 = vmatmul.bf16.gmra.mxu0 %v1116
        %v1174 = vpop.f32.mrf.mxu0
        %v1175 = vadd.f32 0.0, %v1174
        %v1176 = vpop.f32.mrf.mxu0
        %v1177 = vadd.f32 0.0, %v1176
        %1178 = vmatmul.bf16.gmra.mxu0 %v1119
        %v1179 = vpop.f32.mrf.mxu0
        %v1180 = vadd.f32 0.0, %v1179
        %v1181 = vpop.f32.mrf.mxu0
        %v1182 = vadd.f32 0.0, %v1181
        %1183 = vmatmul.bf16.gmra.mxu0 %v1122
        %v1184 = vpop.f32.mrf.mxu0
        %v1185 = vadd.f32 0.0, %v1184
        %v1186 = vpop.f32.mrf.mxu0
        %v1187 = vadd.f32 0.0, %v1186
        %1188 = vmatmul.bf16.gmra.mxu0 %v1125
        %v1189 = vpop.f32.mrf.mxu0
        %v1190 = vadd.f32 0.0, %v1189
        %v1191 = vpop.f32.mrf.mxu0
        %v1192 = vadd.f32 0.0, %v1191
        %1193 = vmatmul.bf16.gmra.mxu0 %v1128
        %v1194 = vpop.f32.mrf.mxu0
        %v1195 = vadd.f32 0.0, %v1194
        %v1196 = vpop.f32.mrf.mxu0
        %v1197 = vadd.f32 0.0, %v1196
        %1198 = vmatmul.bf16.gmra.mxu0 %v1131
        %v1199 = vpop.f32.mrf.mxu0
        %v1200 = vadd.f32 0.0, %v1199
        %v1201 = vpop.f32.mrf.mxu0
        %v1202 = vadd.f32 0.0, %v1201
        %1203 = vmatmul.bf16.gmra.mxu0 %v1134
        %v1204 = vpop.f32.mrf.mxu0
        %v1205 = vadd.f32 0.0, %v1204
        %v1206 = vpop.f32.mrf.mxu0
        %v1207 = vadd.f32 0.0, %v1206
        %1208 = vmatmul.bf16.gmra.mxu0 %v1137
        %v1209 = vpop.f32.mrf.mxu0
        %v1210 = vadd.f32 0.0, %v1209
        %v1211 = vpop.f32.mrf.mxu0
        %v1212 = vadd.f32 0.0, %v1211
        %1213 = vmatmul.bf16.gmra.mxu0 %v1140
        %v1214 = vpop.f32.mrf.mxu0
        %v1215 = vadd.f32 0.0, %v1214
        %v1216 = vpop.f32.mrf.mxu0
        %v1217 = vadd.f32 0.0, %v1216
        %1218 = vmatmul.bf16.gmra.mxu0 %v1143
        %v1219 = vpop.f32.mrf.mxu0
        %v1220 = vadd.f32 0.0, %v1219
        %v1221 = vpop.f32.mrf.mxu0
        %v1222 = vadd.f32 0.0, %v1221
        %1223 = vmatmul.bf16.gmra.mxu0 %v1146
        %v1224 = vpop.f32.mrf.mxu0
        %v1225 = vadd.f32 0.0, %v1224
        %v1226 = vpop.f32.mrf.mxu0
        %v1227 = vadd.f32 0.0, %v1226
        %1228 = vmatmul.bf16.gmra.mxu0 %v1149
        %v1229 = vpop.f32.mrf.mxu0
        %v1230 = vadd.f32 0.0, %v1229
        %v1231 = vpop.f32.mrf.mxu0
        %v1232 = vadd.f32 0.0, %v1231
        %1233 = vmatmul.bf16.gmra.mxu0 %v1152
        %v1234 = vpop.f32.mrf.mxu0
        %v1235 = vadd.f32 0.0, %v1234
        %v1236 = vpop.f32.mrf.mxu0
        %v1237 = vadd.f32 0.0, %v1236
        %1238 = vmatmul.bf16.gmra.mxu0 %v1155
        %v1239 = vpop.f32.mrf.mxu0
        %v1240 = vadd.f32 0.0, %v1239
        %v1241 = vpop.f32.mrf.mxu0
        %v1242 = vadd.f32 0.0, %v1241
        %1243 = vmatmul.bf16.gmra.mxu0 %v1158
        %v1244 = vpop.f32.mrf.mxu0
        %v1245 = vadd.f32 0.0, %v1244
        %v1246 = vpop.f32.mrf.mxu0
        %v1247 = vadd.f32 0.0, %v1246
        %1248 = vdwg.mxu0
        %v1249 = vadd.f32 %v999, %v1170
        %v1250 = vadd.f32 %v1000, %v1172
        %v1251 = vadd.f32 %v1001, %v1175
        %v1252 = vadd.f32 %v1002, %v1177
        %v1253 = vadd.f32 %v1003, %v1180
        %v1254 = vadd.f32 %v1004, %v1182
        %v1255 = vadd.f32 %v1005, %v1185
        %v1256 = vadd.f32 %v1006, %v1187
        %v1257 = vadd.f32 %v1007, %v1190
        %v1258 = vadd.f32 %v1008, %v1192
        %v1259 = vadd.f32 %v1009, %v1195
        %v1260 = vadd.f32 %v1010, %v1197
        %v1261 = vadd.f32 %v1011, %v1200
        %v1262 = vadd.f32 %v1012, %v1202
        %v1263 = vadd.f32 %v1013, %v1205
        %v1264 = vadd.f32 %v1014, %v1207
        %v1265 = vadd.f32 %v1015, %v1210
        %v1266 = vadd.f32 %v1016, %v1212
        %v1267 = vadd.f32 %v1017, %v1215
        %v1268 = vadd.f32 %v1018, %v1217
        %v1269 = vadd.f32 %v1019, %v1220
        %v1270 = vadd.f32 %v1020, %v1222
        %v1271 = vadd.f32 %v1021, %v1225
        %v1272 = vadd.f32 %v1022, %v1227
        %v1273 = vadd.f32 %v1023, %v1230
        %v1274 = vadd.f32 %v1024, %v1232
        %v1275 = vadd.f32 %v1025, %v1235
        %v1276 = vadd.f32 %v1026, %v1237
        %v1277 = vadd.f32 %v1027, %v1240
        %v1278 = vadd.f32 %v1028, %v1242
        %v1279 = vadd.f32 %v1029, %v1245
        %v1280 = vadd.f32 %v1030, %v1247
        %v1281 = vld [vmem:[%s312 + $0x1] sm:$0xff]
        %v1282 = vld [vmem:[%s312 + $0x9] sm:$0xff]
        %v1283 = vld [vmem:[%s312 + $0x19] sm:$0xff]
        %v1284 = vld [vmem:[%s312 + $0x21] sm:$0xff]
        %v1285 = vld [vmem:[%s312 + $0x31] sm:$0xff]
        %v1286 = vld [vmem:[%s312 + $0x39] sm:$0xff]
        %v1287 = vld [vmem:[%s312 + $0x49] sm:$0xff]
        %v1288 = vld [vmem:[%s312 + $0x51] sm:$0xff]
        %v1289 = vld [vmem:[%s312 + $0x61] sm:$0xff]
        %v1290 = vld [vmem:[%s312 + $0x69] sm:$0xff]
        %v1291 = vld [vmem:[%s312 + $0x79] sm:$0xff]
        %v1292 = vld [vmem:[%s312 + $0x81] sm:$0xff]
        %v1293 = vld [vmem:[%s312 + $0x91] sm:$0xff]
        %v1294 = vld [vmem:[%s312 + $0x99] sm:$0xff]
        %v1295 = vld [vmem:[%s312 + $0xa9] sm:$0xff]
        %v1296 = vld [vmem:[%s312 + $0xb1] sm:$0xff]
        %v1297 = vld [vmem:[%s312 + $0xc1] sm:$0xff]
        %v1298 = vld [vmem:[%s312 + $0xc9] sm:$0xff]
        %v1299 = vld [vmem:[%s312 + $0xd9] sm:$0xff]
        %v1300 = vld [vmem:[%s312 + $0xe1] sm:$0xff]
        %v1301 = vld [vmem:[%s312 + $0xf1] sm:$0xff]
        %v1302 = vld [vmem:[%s312 + $0xf9] sm:$0xff]
        %v1303 = vld [vmem:[%s312 + $0x109] sm:$0xff]
        %v1304 = vld [vmem:[%s312 + $0x111] sm:$0xff]
        %v1305 = vld [vmem:[%s312 + $0x121] sm:$0xff]
        %v1306 = vld [vmem:[%s312 + $0x129] sm:$0xff]
        %v1307 = vld [vmem:[%s312 + $0x139] sm:$0xff]
        %v1308 = vld [vmem:[%s312 + $0x141] sm:$0xff]
        %v1309 = vld [vmem:[%s312 + $0x151] sm:$0xff]
        %v1310 = vld [vmem:[%s312 + $0x159] sm:$0xff]
        %v1311 = vld [vmem:[%s312 + $0x169] sm:$0xff]
        %v1312 = vld [vmem:[%s312 + $0x171] sm:$0xff]
        %v1313 = vpack.c.bf16 %v1282, %v1281
        %v1314 = vpack.c.bf16 %v1284, %v1283
        %v1315 = vpack.c.bf16 %v1286, %v1285
        %v1316 = vpack.c.bf16 %v1288, %v1287
        %v1317 = vpack.c.bf16 %v1290, %v1289
        %v1318 = vpack.c.bf16 %v1292, %v1291
        %v1319 = vpack.c.bf16 %v1294, %v1293
        %v1320 = vpack.c.bf16 %v1296, %v1295
        %v1321 = vpack.c.bf16 %v1298, %v1297
        %v1322 = vpack.c.bf16 %v1300, %v1299
        %v1323 = vpack.c.bf16 %v1302, %v1301
        %v1324 = vpack.c.bf16 %v1304, %v1303
        %v1325 = vpack.c.bf16 %v1306, %v1305
        %v1326 = vpack.c.bf16 %v1308, %v1307
        %v1327 = vpack.c.bf16 %v1310, %v1309
        %v1328 = vpack.c.bf16 %v1312, %v1311
        %s1329 = scalar_lea.vmem %s1, 128
        %v1330 = vld [vmem:[%s1329] sm:$0xf]
        %v1331 = vld [vmem:[%s1329 + $0x4] sm:$0xf]
        %v1332 = vld [vmem:[%s1329 + $0x8] sm:$0xf]
        %v1333 = vld [vmem:[%s1329 + $0xc] sm:$0xf]
        %v1334 = vld [vmem:[%s1329 + $0x10] sm:$0xf]
        %v1335 = vld [vmem:[%s1329 + $0x14] sm:$0xf]
        %v1336 = vld [vmem:[%s1329 + $0x18] sm:$0xf]
        %v1337 = vld [vmem:[%s1329 + $0x1c] sm:$0xf]
        %v1346 = vunpack.c.l.b16 %v1330
        %v1347 = vunpack.c.l.b16 %v1331
        %v1348 = vunpack.c.l.b16 %v1332
        %v1349 = vunpack.c.l.b16 %v1333
        %v1350 = vunpack.c.l.b16 %v1334
        %v1351 = vunpack.c.l.b16 %v1335
        %v1352 = vunpack.c.l.b16 %v1336
        %v1353 = vunpack.c.l.b16 %v1337
        %v1354 = vpack.c.b16 %v1347, %v1346
        %v1355 = vpack.c.b16 %v1349, %v1348
        %v1356 = vpack.c.b16 %v1351, %v1350
        %v1357 = vpack.c.b16 %v1353, %v1352
        %v1363 = vsel %vm224, %v1313, 0
        %v1366 = vsel %vm224, %v1314, 0
        %v1369 = vsel %vm224, %v1315, 0
        %v1372 = vsel %vm224, %v1316, 0
        %v1375 = vsel %vm224, %v1317, 0
        %v1378 = vsel %vm224, %v1318, 0
        %v1381 = vsel %vm224, %v1319, 0
        %v1384 = vsel %vm224, %v1320, 0
        %v1387 = vsel %vm224, %v1321, 0
        %v1390 = vsel %vm224, %v1322, 0
        %v1393 = vsel %vm224, %v1323, 0
        %v1396 = vsel %vm224, %v1324, 0
        %v1399 = vsel %vm224, %v1325, 0
        %v1402 = vsel %vm224, %v1326, 0
        %v1405 = vsel %vm224, %v1327, 0
        %v1408 = vsel %vm224, %v1328, 0
        %1410 = vmatpush.bf16.msra.mxu0 0
        %1411 = vmatpush.bf16.msra.mxu0 0
        %1412 = vmatpush.bf16.msra.mxu0 0
        %1413 = vmatpush.bf16.msra.mxu0 0
        %1414 = vmatpush.bf16.msra.mxu0 %v1357
        %1415 = vmatpush.bf16.msra.mxu0 %v1356
        %1416 = vmatpush.bf16.msra.mxu0 %v1355
        %1417 = vmatpush.bf16.msra.mxu0 %v1354
        %1418 = vmatmul.bf16.gmra.mxu0 %v1363
        %v1419 = vpop.f32.mrf.mxu0
        %v1420 = vadd.f32 0.0, %v1419
        %v1421 = vpop.f32.mrf.mxu0
        %v1422 = vadd.f32 0.0, %v1421
        %1423 = vmatmul.bf16.gmra.mxu0 %v1366
        %v1424 = vpop.f32.mrf.mxu0
        %v1425 = vadd.f32 0.0, %v1424
        %v1426 = vpop.f32.mrf.mxu0
        %v1427 = vadd.f32 0.0, %v1426
        %1428 = vmatmul.bf16.gmra.mxu0 %v1369
        %v1429 = vpop.f32.mrf.mxu0
        %v1430 = vadd.f32 0.0, %v1429
        %v1431 = vpop.f32.mrf.mxu0
        %v1432 = vadd.f32 0.0, %v1431
        %1433 = vmatmul.bf16.gmra.mxu0 %v1372
        %v1434 = vpop.f32.mrf.mxu0
        %v1435 = vadd.f32 0.0, %v1434
        %v1436 = vpop.f32.mrf.mxu0
        %v1437 = vadd.f32 0.0, %v1436
        %1438 = vmatmul.bf16.gmra.mxu0 %v1375
        %v1439 = vpop.f32.mrf.mxu0
        %v1440 = vadd.f32 0.0, %v1439
        %v1441 = vpop.f32.mrf.mxu0
        %v1442 = vadd.f32 0.0, %v1441
        %1443 = vmatmul.bf16.gmra.mxu0 %v1378
        %v1444 = vpop.f32.mrf.mxu0
        %v1445 = vadd.f32 0.0, %v1444
        %v1446 = vpop.f32.mrf.mxu0
        %v1447 = vadd.f32 0.0, %v1446
        %1448 = vmatmul.bf16.gmra.mxu0 %v1381
        %v1449 = vpop.f32.mrf.mxu0
        %v1450 = vadd.f32 0.0, %v1449
        %v1451 = vpop.f32.mrf.mxu0
        %v1452 = vadd.f32 0.0, %v1451
        %1453 = vmatmul.bf16.gmra.mxu0 %v1384
        %v1454 = vpop.f32.mrf.mxu0
        %v1455 = vadd.f32 0.0, %v1454
        %v1456 = vpop.f32.mrf.mxu0
        %v1457 = vadd.f32 0.0, %v1456
        %1458 = vmatmul.bf16.gmra.mxu0 %v1387
        %v1459 = vpop.f32.mrf.mxu0
        %v1460 = vadd.f32 0.0, %v1459
        %v1461 = vpop.f32.mrf.mxu0
        %v1462 = vadd.f32 0.0, %v1461
        %1463 = vmatmul.bf16.gmra.mxu0 %v1390
        %v1464 = vpop.f32.mrf.mxu0
        %v1465 = vadd.f32 0.0, %v1464
        %v1466 = vpop.f32.mrf.mxu0
        %v1467 = vadd.f32 0.0, %v1466
        %1468 = vmatmul.bf16.gmra.mxu0 %v1393
        %v1469 = vpop.f32.mrf.mxu0
        %v1470 = vadd.f32 0.0, %v1469
        %v1471 = vpop.f32.mrf.mxu0
        %v1472 = vadd.f32 0.0, %v1471
        %1473 = vmatmul.bf16.gmra.mxu0 %v1396
        %v1474 = vpop.f32.mrf.mxu0
        %v1475 = vadd.f32 0.0, %v1474
        %v1476 = vpop.f32.mrf.mxu0
        %v1477 = vadd.f32 0.0, %v1476
        %1478 = vmatmul.bf16.gmra.mxu0 %v1399
        %v1479 = vpop.f32.mrf.mxu0
        %v1480 = vadd.f32 0.0, %v1479
        %v1481 = vpop.f32.mrf.mxu0
        %v1482 = vadd.f32 0.0, %v1481
        %1483 = vmatmul.bf16.gmra.mxu0 %v1402
        %v1484 = vpop.f32.mrf.mxu0
        %v1485 = vadd.f32 0.0, %v1484
        %v1486 = vpop.f32.mrf.mxu0
        %v1487 = vadd.f32 0.0, %v1486
        %1488 = vmatmul.bf16.gmra.mxu0 %v1405
        %v1489 = vpop.f32.mrf.mxu0
        %v1490 = vadd.f32 0.0, %v1489
        %v1491 = vpop.f32.mrf.mxu0
        %v1492 = vadd.f32 0.0, %v1491
        %1493 = vmatmul.bf16.gmra.mxu0 %v1408
        %v1494 = vpop.f32.mrf.mxu0
        %v1495 = vadd.f32 0.0, %v1494
        %v1496 = vpop.f32.mrf.mxu0
        %v1497 = vadd.f32 0.0, %v1496
        %1498 = vdwg.mxu0
        %v1499 = vadd.f32 %v1249, %v1420
        %v1500 = vadd.f32 %v1250, %v1422
        %v1501 = vadd.f32 %v1251, %v1425
        %v1502 = vadd.f32 %v1252, %v1427
        %v1503 = vadd.f32 %v1253, %v1430
        %v1504 = vadd.f32 %v1254, %v1432
        %v1505 = vadd.f32 %v1255, %v1435
        %v1506 = vadd.f32 %v1256, %v1437
        %v1507 = vadd.f32 %v1257, %v1440
        %v1508 = vadd.f32 %v1258, %v1442
        %v1509 = vadd.f32 %v1259, %v1445
        %v1510 = vadd.f32 %v1260, %v1447
        %v1511 = vadd.f32 %v1261, %v1450
        %v1512 = vadd.f32 %v1262, %v1452
        %v1513 = vadd.f32 %v1263, %v1455
        %v1514 = vadd.f32 %v1264, %v1457
        %v1515 = vadd.f32 %v1265, %v1460
        %v1516 = vadd.f32 %v1266, %v1462
        %v1517 = vadd.f32 %v1267, %v1465
        %v1518 = vadd.f32 %v1268, %v1467
        %v1519 = vadd.f32 %v1269, %v1470
        %v1520 = vadd.f32 %v1270, %v1472
        %v1521 = vadd.f32 %v1271, %v1475
        %v1522 = vadd.f32 %v1272, %v1477
        %v1523 = vadd.f32 %v1273, %v1480
        %v1524 = vadd.f32 %v1274, %v1482
        %v1525 = vadd.f32 %v1275, %v1485
        %v1526 = vadd.f32 %v1276, %v1487
        %v1527 = vadd.f32 %v1277, %v1490
        %v1528 = vadd.f32 %v1278, %v1492
        %v1529 = vadd.f32 %v1279, %v1495
        %v1530 = vadd.f32 %v1280, %v1497
        %v1531 = vld [vmem:[%s312 + $0x2] sm:$0xff]
        %v1532 = vld [vmem:[%s312 + $0xa] sm:$0xff]
        %v1533 = vld [vmem:[%s312 + $0x1a] sm:$0xff]
        %v1534 = vld [vmem:[%s312 + $0x22] sm:$0xff]
        %v1535 = vld [vmem:[%s312 + $0x32] sm:$0xff]
        %v1536 = vld [vmem:[%s312 + $0x3a] sm:$0xff]
        %v1537 = vld [vmem:[%s312 + $0x4a] sm:$0xff]
        %v1538 = vld [vmem:[%s312 + $0x52] sm:$0xff]
        %v1539 = vld [vmem:[%s312 + $0x62] sm:$0xff]
        %v1540 = vld [vmem:[%s312 + $0x6a] sm:$0xff]
        %v1541 = vld [vmem:[%s312 + $0x7a] sm:$0xff]
        %v1542 = vld [vmem:[%s312 + $0x82] sm:$0xff]
        %v1543 = vld [vmem:[%s312 + $0x92] sm:$0xff]
        %v1544 = vld [vmem:[%s312 + $0x9a] sm:$0xff]
        %v1545 = vld [vmem:[%s312 + $0xaa] sm:$0xff]
        %v1546 = vld [vmem:[%s312 + $0xb2] sm:$0xff]
        %v1547 = vld [vmem:[%s312 + $0xc2] sm:$0xff]
        %v1548 = vld [vmem:[%s312 + $0xca] sm:$0xff]
        %v1549 = vld [vmem:[%s312 + $0xda] sm:$0xff]
        %v1550 = vld [vmem:[%s312 + $0xe2] sm:$0xff]
        %v1551 = vld [vmem:[%s312 + $0xf2] sm:$0xff]
        %v1552 = vld [vmem:[%s312 + $0xfa] sm:$0xff]
        %v1553 = vld [vmem:[%s312 + $0x10a] sm:$0xff]
        %v1554 = vld [vmem:[%s312 + $0x112] sm:$0xff]
        %v1555 = vld [vmem:[%s312 + $0x122] sm:$0xff]
        %v1556 = vld [vmem:[%s312 + $0x12a] sm:$0xff]
        %v1557 = vld [vmem:[%s312 + $0x13a] sm:$0xff]
        %v1558 = vld [vmem:[%s312 + $0x142] sm:$0xff]
        %v1559 = vld [vmem:[%s312 + $0x152] sm:$0xff]
        %v1560 = vld [vmem:[%s312 + $0x15a] sm:$0xff]
        %v1561 = vld [vmem:[%s312 + $0x16a] sm:$0xff]
        %v1562 = vld [vmem:[%s312 + $0x172] sm:$0xff]
        %v1563 = vpack.c.bf16 %v1532, %v1531
        %v1564 = vpack.c.bf16 %v1534, %v1533
        %v1565 = vpack.c.bf16 %v1536, %v1535
        %v1566 = vpack.c.bf16 %v1538, %v1537
        %v1567 = vpack.c.bf16 %v1540, %v1539
        %v1568 = vpack.c.bf16 %v1542, %v1541
        %v1569 = vpack.c.bf16 %v1544, %v1543
        %v1570 = vpack.c.bf16 %v1546, %v1545
        %v1571 = vpack.c.bf16 %v1548, %v1547
        %v1572 = vpack.c.bf16 %v1550, %v1549
        %v1573 = vpack.c.bf16 %v1552, %v1551
        %v1574 = vpack.c.bf16 %v1554, %v1553
        %v1575 = vpack.c.bf16 %v1556, %v1555
        %v1576 = vpack.c.bf16 %v1558, %v1557
        %v1577 = vpack.c.bf16 %v1560, %v1559
        %v1578 = vpack.c.bf16 %v1562, %v1561
        %s1579 = scalar_lea.vmem %s1, 160
        %v1580 = vld [vmem:[%s1579] sm:$0xf]
        %v1581 = vld [vmem:[%s1579 + $0x4] sm:$0xf]
        %v1582 = vld [vmem:[%s1579 + $0x8] sm:$0xf]
        %v1583 = vld [vmem:[%s1579 + $0xc] sm:$0xf]
        %v1584 = vld [vmem:[%s1579 + $0x10] sm:$0xf]
        %v1585 = vld [vmem:[%s1579 + $0x14] sm:$0xf]
        %v1586 = vld [vmem:[%s1579 + $0x18] sm:$0xf]
        %v1587 = vld [vmem:[%s1579 + $0x1c] sm:$0xf]
        %v1596 = vunpack.c.l.b16 %v1580
        %v1597 = vunpack.c.l.b16 %v1581
        %v1598 = vunpack.c.l.b16 %v1582
        %v1599 = vunpack.c.l.b16 %v1583
        %v1600 = vunpack.c.l.b16 %v1584
        %v1601 = vunpack.c.l.b16 %v1585
        %v1602 = vunpack.c.l.b16 %v1586
        %v1603 = vunpack.c.l.b16 %v1587
        %v1604 = vpack.c.b16 %v1597, %v1596
        %v1605 = vpack.c.b16 %v1599, %v1598
        %v1606 = vpack.c.b16 %v1601, %v1600
        %v1607 = vpack.c.b16 %v1603, %v1602
        %v1613 = vsel %vm224, %v1563, 0
        %v1616 = vsel %vm224, %v1564, 0
        %v1619 = vsel %vm224, %v1565, 0
        %v1622 = vsel %vm224, %v1566, 0
        %v1625 = vsel %vm224, %v1567, 0
        %v1628 = vsel %vm224, %v1568, 0
        %v1631 = vsel %vm224, %v1569, 0
        %v1634 = vsel %vm224, %v1570, 0
        %v1637 = vsel %vm224, %v1571, 0
        %v1640 = vsel %vm224, %v1572, 0
        %v1643 = vsel %vm224, %v1573, 0
        %v1646 = vsel %vm224, %v1574, 0
        %v1649 = vsel %vm224, %v1575, 0
        %v1652 = vsel %vm224, %v1576, 0
        %v1655 = vsel %vm224, %v1577, 0
        %v1658 = vsel %vm224, %v1578, 0
        %1660 = vmatpush.bf16.msra.mxu0 0
        %1661 = vmatpush.bf16.msra.mxu0 0
        %1662 = vmatpush.bf16.msra.mxu0 0
        %1663 = vmatpush.bf16.msra.mxu0 0
        %1664 = vmatpush.bf16.msra.mxu0 %v1607
        %1665 = vmatpush.bf16.msra.mxu0 %v1606
        %1666 = vmatpush.bf16.msra.mxu0 %v1605
        %1667 = vmatpush.bf16.msra.mxu0 %v1604
        %1668 = vmatmul.bf16.gmra.mxu0 %v1613
        %v1669 = vpop.f32.mrf.mxu0
        %v1670 = vadd.f32 0.0, %v1669
        %v1671 = vpop.f32.mrf.mxu0
        %v1672 = vadd.f32 0.0, %v1671
        %1673 = vmatmul.bf16.gmra.mxu0 %v1616
        %v1674 = vpop.f32.mrf.mxu0
        %v1675 = vadd.f32 0.0, %v1674
        %v1676 = vpop.f32.mrf.mxu0
        %v1677 = vadd.f32 0.0, %v1676
        %1678 = vmatmul.bf16.gmra.mxu0 %v1619
        %v1679 = vpop.f32.mrf.mxu0
        %v1680 = vadd.f32 0.0, %v1679
        %v1681 = vpop.f32.mrf.mxu0
        %v1682 = vadd.f32 0.0, %v1681
        %1683 = vmatmul.bf16.gmra.mxu0 %v1622
        %v1684 = vpop.f32.mrf.mxu0
        %v1685 = vadd.f32 0.0, %v1684
        %v1686 = vpop.f32.mrf.mxu0
        %v1687 = vadd.f32 0.0, %v1686
        %1688 = vmatmul.bf16.gmra.mxu0 %v1625
        %v1689 = vpop.f32.mrf.mxu0
        %v1690 = vadd.f32 0.0, %v1689
        %v1691 = vpop.f32.mrf.mxu0
        %v1692 = vadd.f32 0.0, %v1691
        %1693 = vmatmul.bf16.gmra.mxu0 %v1628
        %v1694 = vpop.f32.mrf.mxu0
        %v1695 = vadd.f32 0.0, %v1694
        %v1696 = vpop.f32.mrf.mxu0
        %v1697 = vadd.f32 0.0, %v1696
        %1698 = vmatmul.bf16.gmra.mxu0 %v1631
        %v1699 = vpop.f32.mrf.mxu0
        %v1700 = vadd.f32 0.0, %v1699
        %v1701 = vpop.f32.mrf.mxu0
        %v1702 = vadd.f32 0.0, %v1701
        %1703 = vmatmul.bf16.gmra.mxu0 %v1634
        %v1704 = vpop.f32.mrf.mxu0
        %v1705 = vadd.f32 0.0, %v1704
        %v1706 = vpop.f32.mrf.mxu0
        %v1707 = vadd.f32 0.0, %v1706
        %1708 = vmatmul.bf16.gmra.mxu0 %v1637
        %v1709 = vpop.f32.mrf.mxu0
        %v1710 = vadd.f32 0.0, %v1709
        %v1711 = vpop.f32.mrf.mxu0
        %v1712 = vadd.f32 0.0, %v1711
        %1713 = vmatmul.bf16.gmra.mxu0 %v1640
        %v1714 = vpop.f32.mrf.mxu0
        %v1715 = vadd.f32 0.0, %v1714
        %v1716 = vpop.f32.mrf.mxu0
        %v1717 = vadd.f32 0.0, %v1716
        %1718 = vmatmul.bf16.gmra.mxu0 %v1643
        %v1719 = vpop.f32.mrf.mxu0
        %v1720 = vadd.f32 0.0, %v1719
        %v1721 = vpop.f32.mrf.mxu0
        %v1722 = vadd.f32 0.0, %v1721
        %1723 = vmatmul.bf16.gmra.mxu0 %v1646
        %v1724 = vpop.f32.mrf.mxu0
        %v1725 = vadd.f32 0.0, %v1724
        %v1726 = vpop.f32.mrf.mxu0
        %v1727 = vadd.f32 0.0, %v1726
        %1728 = vmatmul.bf16.gmra.mxu0 %v1649
        %v1729 = vpop.f32.mrf.mxu0
        %v1730 = vadd.f32 0.0, %v1729
        %v1731 = vpop.f32.mrf.mxu0
        %v1732 = vadd.f32 0.0, %v1731
        %1733 = vmatmul.bf16.gmra.mxu0 %v1652
        %v1734 = vpop.f32.mrf.mxu0
        %v1735 = vadd.f32 0.0, %v1734
        %v1736 = vpop.f32.mrf.mxu0
        %v1737 = vadd.f32 0.0, %v1736
        %1738 = vmatmul.bf16.gmra.mxu0 %v1655
        %v1739 = vpop.f32.mrf.mxu0
        %v1740 = vadd.f32 0.0, %v1739
        %v1741 = vpop.f32.mrf.mxu0
        %v1742 = vadd.f32 0.0, %v1741
        %1743 = vmatmul.bf16.gmra.mxu0 %v1658
        %v1744 = vpop.f32.mrf.mxu0
        %v1745 = vadd.f32 0.0, %v1744
        %v1746 = vpop.f32.mrf.mxu0
        %v1747 = vadd.f32 0.0, %v1746
        %1748 = vdwg.mxu0
        %v1749 = vadd.f32 %v1499, %v1670
        %v1750 = vadd.f32 %v1500, %v1672
        %v1751 = vadd.f32 %v1501, %v1675
        %v1752 = vadd.f32 %v1502, %v1677
        %v1753 = vadd.f32 %v1503, %v1680
        %v1754 = vadd.f32 %v1504, %v1682
        %v1755 = vadd.f32 %v1505, %v1685
        %v1756 = vadd.f32 %v1506, %v1687
        %v1757 = vadd.f32 %v1507, %v1690
        %v1758 = vadd.f32 %v1508, %v1692
        %v1759 = vadd.f32 %v1509, %v1695
        %v1760 = vadd.f32 %v1510, %v1697
        %v1761 = vadd.f32 %v1511, %v1700
        %v1762 = vadd.f32 %v1512, %v1702
        %v1763 = vadd.f32 %v1513, %v1705
        %v1764 = vadd.f32 %v1514, %v1707
        %v1765 = vadd.f32 %v1515, %v1710
        %v1766 = vadd.f32 %v1516, %v1712
        %v1767 = vadd.f32 %v1517, %v1715
        %v1768 = vadd.f32 %v1518, %v1717
        %v1769 = vadd.f32 %v1519, %v1720
        %v1770 = vadd.f32 %v1520, %v1722
        %v1771 = vadd.f32 %v1521, %v1725
        %v1772 = vadd.f32 %v1522, %v1727
        %v1773 = vadd.f32 %v1523, %v1730
        %v1774 = vadd.f32 %v1524, %v1732
        %v1775 = vadd.f32 %v1525, %v1735
        %v1776 = vadd.f32 %v1526, %v1737
        %v1777 = vadd.f32 %v1527, %v1740
        %v1778 = vadd.f32 %v1528, %v1742
        %v1779 = vadd.f32 %v1529, %v1745
        %v1780 = vadd.f32 %v1530, %v1747
        %s1781 = scalar_lea.vmem [#allocation2], 48
        %v1782 = vld [vmem:[%s1781] sm:$0xff]
        %v1783 = vld [vmem:[%s1781 + $0x8] sm:$0xff]
        %v1784 = vld [vmem:[%s1781 + $0x18] sm:$0xff]
        %v1785 = vld [vmem:[%s1781 + $0x20] sm:$0xff]
        %v1786 = vld [vmem:[%s1781 + $0x30] sm:$0xff]
        %v1787 = vld [vmem:[%s1781 + $0x38] sm:$0xff]
        %v1788 = vld [vmem:[%s1781 + $0x48] sm:$0xff]
        %v1789 = vld [vmem:[%s1781 + $0x50] sm:$0xff]
        %v1790 = vld [vmem:[%s1781 + $0x60] sm:$0xff]
        %v1791 = vld [vmem:[%s1781 + $0x68] sm:$0xff]
        %v1792 = vld [vmem:[%s1781 + $0x78] sm:$0xff]
        %v1793 = vld [vmem:[%s1781 + $0x80] sm:$0xff]
        %v1794 = vld [vmem:[%s1781 + $0x90] sm:$0xff]
        %v1795 = vld [vmem:[%s1781 + $0x98] sm:$0xff]
        %v1796 = vld [vmem:[%s1781 + $0xa8] sm:$0xff]
        %v1797 = vld [vmem:[%s1781 + $0xb0] sm:$0xff]
        %v1798 = vld [vmem:[%s1781 + $0xc0] sm:$0xff]
        %v1799 = vld [vmem:[%s1781 + $0xc8] sm:$0xff]
        %v1800 = vld [vmem:[%s1781 + $0xd8] sm:$0xff]
        %v1801 = vld [vmem:[%s1781 + $0xe0] sm:$0xff]
        %v1802 = vld [vmem:[%s1781 + $0xf0] sm:$0xff]
        %v1803 = vld [vmem:[%s1781 + $0xf8] sm:$0xff]
        %v1804 = vld [vmem:[%s1781 + $0x108] sm:$0xff]
        %v1805 = vld [vmem:[%s1781 + $0x110] sm:$0xff]
        %v1806 = vld [vmem:[%s1781 + $0x120] sm:$0xff]
        %v1807 = vld [vmem:[%s1781 + $0x128] sm:$0xff]
        %v1808 = vld [vmem:[%s1781 + $0x138] sm:$0xff]
        %v1809 = vld [vmem:[%s1781 + $0x140] sm:$0xff]
        %v1810 = vld [vmem:[%s1781 + $0x150] sm:$0xff]
        %v1811 = vld [vmem:[%s1781 + $0x158] sm:$0xff]
        %v1812 = vld [vmem:[%s1781 + $0x168] sm:$0xff]
        %v1813 = vld [vmem:[%s1781 + $0x170] sm:$0xff]
        %v1814 = vpack.c.bf16 %v1783, %v1782
        %v1815 = vpack.c.bf16 %v1785, %v1784
        %v1816 = vpack.c.bf16 %v1787, %v1786
        %v1817 = vpack.c.bf16 %v1789, %v1788
        %v1818 = vpack.c.bf16 %v1791, %v1790
        %v1819 = vpack.c.bf16 %v1793, %v1792
        %v1820 = vpack.c.bf16 %v1795, %v1794
        %v1821 = vpack.c.bf16 %v1797, %v1796
        %v1822 = vpack.c.bf16 %v1799, %v1798
        %v1823 = vpack.c.bf16 %v1801, %v1800
        %v1824 = vpack.c.bf16 %v1803, %v1802
        %v1825 = vpack.c.bf16 %v1805, %v1804
        %v1826 = vpack.c.bf16 %v1807, %v1806
        %v1827 = vpack.c.bf16 %v1809, %v1808
        %v1828 = vpack.c.bf16 %v1811, %v1810
        %v1829 = vpack.c.bf16 %v1813, %v1812
        %s1830 = scalar_lea.vmem %s1, 192
        %v1831 = vld [vmem:[%s1830] sm:$0xf]
        %v1832 = vld [vmem:[%s1830 + $0x4] sm:$0xf]
        %v1833 = vld [vmem:[%s1830 + $0x8] sm:$0xf]
        %v1834 = vld [vmem:[%s1830 + $0xc] sm:$0xf]
        %v1835 = vld [vmem:[%s1830 + $0x10] sm:$0xf]
        %v1836 = vld [vmem:[%s1830 + $0x14] sm:$0xf]
        %v1837 = vld [vmem:[%s1830 + $0x18] sm:$0xf]
        %v1838 = vld [vmem:[%s1830 + $0x1c] sm:$0xf]
        %v1847 = vunpack.c.l.b16 %v1831
        %v1848 = vunpack.c.l.b16 %v1832
        %v1849 = vunpack.c.l.b16 %v1833
        %v1850 = vunpack.c.l.b16 %v1834
        %v1851 = vunpack.c.l.b16 %v1835
        %v1852 = vunpack.c.l.b16 %v1836
        %v1853 = vunpack.c.l.b16 %v1837
        %v1854 = vunpack.c.l.b16 %v1838
        %v1855 = vpack.c.b16 %v1848, %v1847
        %v1856 = vpack.c.b16 %v1850, %v1849
        %v1857 = vpack.c.b16 %v1852, %v1851
        %v1858 = vpack.c.b16 %v1854, %v1853
        %v1864 = vsel %vm224, %v1814, 0
        %v1867 = vsel %vm224, %v1815, 0
        %v1870 = vsel %vm224, %v1816, 0
        %v1873 = vsel %vm224, %v1817, 0
        %v1876 = vsel %vm224, %v1818, 0
        %v1879 = vsel %vm224, %v1819, 0
        %v1882 = vsel %vm224, %v1820, 0
        %v1885 = vsel %vm224, %v1821, 0
        %v1888 = vsel %vm224, %v1822, 0
        %v1891 = vsel %vm224, %v1823, 0
        %v1894 = vsel %vm224, %v1824, 0
        %v1897 = vsel %vm224, %v1825, 0
        %v1900 = vsel %vm224, %v1826, 0
        %v1903 = vsel %vm224, %v1827, 0
        %v1906 = vsel %vm224, %v1828, 0
        %v1909 = vsel %vm224, %v1829, 0
        %1911 = vmatpush.bf16.msra.mxu0 0
        %1912 = vmatpush.bf16.msra.mxu0 0
        %1913 = vmatpush.bf16.msra.mxu0 0
        %1914 = vmatpush.bf16.msra.mxu0 0
        %1915 = vmatpush.bf16.msra.mxu0 %v1858
        %1916 = vmatpush.bf16.msra.mxu0 %v1857
        %1917 = vmatpush.bf16.msra.mxu0 %v1856
        %1918 = vmatpush.bf16.msra.mxu0 %v1855
        %1919 = vmatmul.bf16.gmra.mxu0 %v1864
        %v1920 = vpop.f32.mrf.mxu0
        %v1921 = vadd.f32 0.0, %v1920
        %v1922 = vpop.f32.mrf.mxu0
        %v1923 = vadd.f32 0.0, %v1922
        %1924 = vmatmul.bf16.gmra.mxu0 %v1867
        %v1925 = vpop.f32.mrf.mxu0
        %v1926 = vadd.f32 0.0, %v1925
        %v1927 = vpop.f32.mrf.mxu0
        %v1928 = vadd.f32 0.0, %v1927
        %1929 = vmatmul.bf16.gmra.mxu0 %v1870
        %v1930 = vpop.f32.mrf.mxu0
        %v1931 = vadd.f32 0.0, %v1930
        %v1932 = vpop.f32.mrf.mxu0
        %v1933 = vadd.f32 0.0, %v1932
        %1934 = vmatmul.bf16.gmra.mxu0 %v1873
        %v1935 = vpop.f32.mrf.mxu0
        %v1936 = vadd.f32 0.0, %v1935
        %v1937 = vpop.f32.mrf.mxu0
        %v1938 = vadd.f32 0.0, %v1937
        %1939 = vmatmul.bf16.gmra.mxu0 %v1876
        %v1940 = vpop.f32.mrf.mxu0
        %v1941 = vadd.f32 0.0, %v1940
        %v1942 = vpop.f32.mrf.mxu0
        %v1943 = vadd.f32 0.0, %v1942
        %1944 = vmatmul.bf16.gmra.mxu0 %v1879
        %v1945 = vpop.f32.mrf.mxu0
        %v1946 = vadd.f32 0.0, %v1945
        %v1947 = vpop.f32.mrf.mxu0
        %v1948 = vadd.f32 0.0, %v1947
        %1949 = vmatmul.bf16.gmra.mxu0 %v1882
        %v1950 = vpop.f32.mrf.mxu0
        %v1951 = vadd.f32 0.0, %v1950
        %v1952 = vpop.f32.mrf.mxu0
        %v1953 = vadd.f32 0.0, %v1952
        %1954 = vmatmul.bf16.gmra.mxu0 %v1885
        %v1955 = vpop.f32.mrf.mxu0
        %v1956 = vadd.f32 0.0, %v1955
        %v1957 = vpop.f32.mrf.mxu0
        %v1958 = vadd.f32 0.0, %v1957
        %1959 = vmatmul.bf16.gmra.mxu0 %v1888
        %v1960 = vpop.f32.mrf.mxu0
        %v1961 = vadd.f32 0.0, %v1960
        %v1962 = vpop.f32.mrf.mxu0
        %v1963 = vadd.f32 0.0, %v1962
        %1964 = vmatmul.bf16.gmra.mxu0 %v1891
        %v1965 = vpop.f32.mrf.mxu0
        %v1966 = vadd.f32 0.0, %v1965
        %v1967 = vpop.f32.mrf.mxu0
        %v1968 = vadd.f32 0.0, %v1967
        %1969 = vmatmul.bf16.gmra.mxu0 %v1894
        %v1970 = vpop.f32.mrf.mxu0
        %v1971 = vadd.f32 0.0, %v1970
        %v1972 = vpop.f32.mrf.mxu0
        %v1973 = vadd.f32 0.0, %v1972
        %1974 = vmatmul.bf16.gmra.mxu0 %v1897
        %v1975 = vpop.f32.mrf.mxu0
        %v1976 = vadd.f32 0.0, %v1975
        %v1977 = vpop.f32.mrf.mxu0
        %v1978 = vadd.f32 0.0, %v1977
        %1979 = vmatmul.bf16.gmra.mxu0 %v1900
        %v1980 = vpop.f32.mrf.mxu0
        %v1981 = vadd.f32 0.0, %v1980
        %v1982 = vpop.f32.mrf.mxu0
        %v1983 = vadd.f32 0.0, %v1982
        %1984 = vmatmul.bf16.gmra.mxu0 %v1903
        %v1985 = vpop.f32.mrf.mxu0
        %v1986 = vadd.f32 0.0, %v1985
        %v1987 = vpop.f32.mrf.mxu0
        %v1988 = vadd.f32 0.0, %v1987
        %1989 = vmatmul.bf16.gmra.mxu0 %v1906
        %v1990 = vpop.f32.mrf.mxu0
        %v1991 = vadd.f32 0.0, %v1990
        %v1992 = vpop.f32.mrf.mxu0
        %v1993 = vadd.f32 0.0, %v1992
        %1994 = vmatmul.bf16.gmra.mxu0 %v1909
        %v1995 = vpop.f32.mrf.mxu0
        %v1996 = vadd.f32 0.0, %v1995
        %v1997 = vpop.f32.mrf.mxu0
        %v1998 = vadd.f32 0.0, %v1997
        %1999 = vdwg.mxu0
        %v2000 = vadd.f32 %v1749, %v1921
        %v2001 = vadd.f32 %v1750, %v1923
        %v2002 = vadd.f32 %v1751, %v1926
        %v2003 = vadd.f32 %v1752, %v1928
        %v2004 = vadd.f32 %v1753, %v1931
        %v2005 = vadd.f32 %v1754, %v1933
        %v2006 = vadd.f32 %v1755, %v1936
        %v2007 = vadd.f32 %v1756, %v1938
        %v2008 = vadd.f32 %v1757, %v1941
        %v2009 = vadd.f32 %v1758, %v1943
        %v2010 = vadd.f32 %v1759, %v1946
        %v2011 = vadd.f32 %v1760, %v1948
        %v2012 = vadd.f32 %v1761, %v1951
        %v2013 = vadd.f32 %v1762, %v1953
        %v2014 = vadd.f32 %v1763, %v1956
        %v2015 = vadd.f32 %v1764, %v1958
        %v2016 = vadd.f32 %v1765, %v1961
        %v2017 = vadd.f32 %v1766, %v1963
        %v2018 = vadd.f32 %v1767, %v1966
        %v2019 = vadd.f32 %v1768, %v1968
        %v2020 = vadd.f32 %v1769, %v1971
        %v2021 = vadd.f32 %v1770, %v1973
        %v2022 = vadd.f32 %v1771, %v1976
        %v2023 = vadd.f32 %v1772, %v1978
        %v2024 = vadd.f32 %v1773, %v1981
        %v2025 = vadd.f32 %v1774, %v1983
        %v2026 = vadd.f32 %v1775, %v1986
        %v2027 = vadd.f32 %v1776, %v1988
        %v2028 = vadd.f32 %v1777, %v1991
        %v2029 = vadd.f32 %v1778, %v1993
        %v2030 = vadd.f32 %v1779, %v1996
        %v2031 = vadd.f32 %v1780, %v1998
        %v2032 = vld [vmem:[%s1781 + $0x1] sm:$0xff]
        %v2033 = vld [vmem:[%s1781 + $0x9] sm:$0xff]
        %v2034 = vld [vmem:[%s1781 + $0x19] sm:$0xff]
        %v2035 = vld [vmem:[%s1781 + $0x21] sm:$0xff]
        %v2036 = vld [vmem:[%s1781 + $0x31] sm:$0xff]
        %v2037 = vld [vmem:[%s1781 + $0x39] sm:$0xff]
        %v2038 = vld [vmem:[%s1781 + $0x49] sm:$0xff]
        %v2039 = vld [vmem:[%s1781 + $0x51] sm:$0xff]
        %v2040 = vld [vmem:[%s1781 + $0x61] sm:$0xff]
        %v2041 = vld [vmem:[%s1781 + $0x69] sm:$0xff]
        %v2042 = vld [vmem:[%s1781 + $0x79] sm:$0xff]
        %v2043 = vld [vmem:[%s1781 + $0x81] sm:$0xff]
        %v2044 = vld [vmem:[%s1781 + $0x91] sm:$0xff]
        %v2045 = vld [vmem:[%s1781 + $0x99] sm:$0xff]
        %v2046 = vld [vmem:[%s1781 + $0xa9] sm:$0xff]
        %v2047 = vld [vmem:[%s1781 + $0xb1] sm:$0xff]
        %v2048 = vld [vmem:[%s1781 + $0xc1] sm:$0xff]
        %v2049 = vld [vmem:[%s1781 + $0xc9] sm:$0xff]
        %v2050 = vld [vmem:[%s1781 + $0xd9] sm:$0xff]
        %v2051 = vld [vmem:[%s1781 + $0xe1] sm:$0xff]
        %v2052 = vld [vmem:[%s1781 + $0xf1] sm:$0xff]
        %v2053 = vld [vmem:[%s1781 + $0xf9] sm:$0xff]
        %v2054 = vld [vmem:[%s1781 + $0x109] sm:$0xff]
        %v2055 = vld [vmem:[%s1781 + $0x111] sm:$0xff]
        %v2056 = vld [vmem:[%s1781 + $0x121] sm:$0xff]
        %v2057 = vld [vmem:[%s1781 + $0x129] sm:$0xff]
        %v2058 = vld [vmem:[%s1781 + $0x139] sm:$0xff]
        %v2059 = vld [vmem:[%s1781 + $0x141] sm:$0xff]
        %v2060 = vld [vmem:[%s1781 + $0x151] sm:$0xff]
        %v2061 = vld [vmem:[%s1781 + $0x159] sm:$0xff]
        %v2062 = vld [vmem:[%s1781 + $0x169] sm:$0xff]
        %v2063 = vld [vmem:[%s1781 + $0x171] sm:$0xff]
        %v2064 = vpack.c.bf16 %v2033, %v2032
        %v2065 = vpack.c.bf16 %v2035, %v2034
        %v2066 = vpack.c.bf16 %v2037, %v2036
        %v2067 = vpack.c.bf16 %v2039, %v2038
        %v2068 = vpack.c.bf16 %v2041, %v2040
        %v2069 = vpack.c.bf16 %v2043, %v2042
        %v2070 = vpack.c.bf16 %v2045, %v2044
        %v2071 = vpack.c.bf16 %v2047, %v2046
        %v2072 = vpack.c.bf16 %v2049, %v2048
        %v2073 = vpack.c.bf16 %v2051, %v2050
        %v2074 = vpack.c.bf16 %v2053, %v2052
        %v2075 = vpack.c.bf16 %v2055, %v2054
        %v2076 = vpack.c.bf16 %v2057, %v2056
        %v2077 = vpack.c.bf16 %v2059, %v2058
        %v2078 = vpack.c.bf16 %v2061, %v2060
        %v2079 = vpack.c.bf16 %v2063, %v2062
        %s2080 = scalar_lea.vmem %s1, 224
        %v2081 = vld [vmem:[%s2080] sm:$0xf]
        %v2082 = vld [vmem:[%s2080 + $0x4] sm:$0xf]
        %v2083 = vld [vmem:[%s2080 + $0x8] sm:$0xf]
        %v2084 = vld [vmem:[%s2080 + $0xc] sm:$0xf]
        %v2085 = vld [vmem:[%s2080 + $0x10] sm:$0xf]
        %v2086 = vld [vmem:[%s2080 + $0x14] sm:$0xf]
        %v2087 = vld [vmem:[%s2080 + $0x18] sm:$0xf]
        %v2088 = vld [vmem:[%s2080 + $0x1c] sm:$0xf]
        %v2097 = vunpack.c.l.b16 %v2081
        %v2098 = vunpack.c.l.b16 %v2082
        %v2099 = vunpack.c.l.b16 %v2083
        %v2100 = vunpack.c.l.b16 %v2084
        %v2101 = vunpack.c.l.b16 %v2085
        %v2102 = vunpack.c.l.b16 %v2086
        %v2103 = vunpack.c.l.b16 %v2087
        %v2104 = vunpack.c.l.b16 %v2088
        %v2105 = vpack.c.b16 %v2098, %v2097
        %v2106 = vpack.c.b16 %v2100, %v2099
        %v2107 = vpack.c.b16 %v2102, %v2101
        %v2108 = vpack.c.b16 %v2104, %v2103
        %v2114 = vsel %vm224, %v2064, 0
        %v2117 = vsel %vm224, %v2065, 0
        %v2120 = vsel %vm224, %v2066, 0
        %v2123 = vsel %vm224, %v2067, 0
        %v2126 = vsel %vm224, %v2068, 0
        %v2129 = vsel %vm224, %v2069, 0
        %v2132 = vsel %vm224, %v2070, 0
        %v2135 = vsel %vm224, %v2071, 0
        %v2138 = vsel %vm224, %v2072, 0
        %v2141 = vsel %vm224, %v2073, 0
        %v2144 = vsel %vm224, %v2074, 0
        %v2147 = vsel %vm224, %v2075, 0
        %v2150 = vsel %vm224, %v2076, 0
        %v2153 = vsel %vm224, %v2077, 0
        %v2156 = vsel %vm224, %v2078, 0
        %v2159 = vsel %vm224, %v2079, 0
        %2161 = vmatpush.bf16.msra.mxu0 0
        %2162 = vmatpush.bf16.msra.mxu0 0
        %2163 = vmatpush.bf16.msra.mxu0 0
        %2164 = vmatpush.bf16.msra.mxu0 0
        %2165 = vmatpush.bf16.msra.mxu0 %v2108
        %2166 = vmatpush.bf16.msra.mxu0 %v2107
        %2167 = vmatpush.bf16.msra.mxu0 %v2106
        %2168 = vmatpush.bf16.msra.mxu0 %v2105
        %2169 = vmatmul.bf16.gmra.mxu0 %v2114
        %v2170 = vpop.f32.mrf.mxu0
        %v2171 = vadd.f32 0.0, %v2170
        %v2172 = vpop.f32.mrf.mxu0
        %v2173 = vadd.f32 0.0, %v2172
        %2174 = vmatmul.bf16.gmra.mxu0 %v2117
        %v2175 = vpop.f32.mrf.mxu0
        %v2176 = vadd.f32 0.0, %v2175
        %v2177 = vpop.f32.mrf.mxu0
        %v2178 = vadd.f32 0.0, %v2177
        %2179 = vmatmul.bf16.gmra.mxu0 %v2120
        %v2180 = vpop.f32.mrf.mxu0
        %v2181 = vadd.f32 0.0, %v2180
        %v2182 = vpop.f32.mrf.mxu0
        %v2183 = vadd.f32 0.0, %v2182
        %2184 = vmatmul.bf16.gmra.mxu0 %v2123
        %v2185 = vpop.f32.mrf.mxu0
        %v2186 = vadd.f32 0.0, %v2185
        %v2187 = vpop.f32.mrf.mxu0
        %v2188 = vadd.f32 0.0, %v2187
        %2189 = vmatmul.bf16.gmra.mxu0 %v2126
        %v2190 = vpop.f32.mrf.mxu0
        %v2191 = vadd.f32 0.0, %v2190
        %v2192 = vpop.f32.mrf.mxu0
        %v2193 = vadd.f32 0.0, %v2192
        %2194 = vmatmul.bf16.gmra.mxu0 %v2129
        %v2195 = vpop.f32.mrf.mxu0
        %v2196 = vadd.f32 0.0, %v2195
        %v2197 = vpop.f32.mrf.mxu0
        %v2198 = vadd.f32 0.0, %v2197
        %2199 = vmatmul.bf16.gmra.mxu0 %v2132
        %v2200 = vpop.f32.mrf.mxu0
        %v2201 = vadd.f32 0.0, %v2200
        %v2202 = vpop.f32.mrf.mxu0
        %v2203 = vadd.f32 0.0, %v2202
        %2204 = vmatmul.bf16.gmra.mxu0 %v2135
        %v2205 = vpop.f32.mrf.mxu0
        %v2206 = vadd.f32 0.0, %v2205
        %v2207 = vpop.f32.mrf.mxu0
        %v2208 = vadd.f32 0.0, %v2207
        %2209 = vmatmul.bf16.gmra.mxu0 %v2138
        %v2210 = vpop.f32.mrf.mxu0
        %v2211 = vadd.f32 0.0, %v2210
        %v2212 = vpop.f32.mrf.mxu0
        %v2213 = vadd.f32 0.0, %v2212
        %2214 = vmatmul.bf16.gmra.mxu0 %v2141
        %v2215 = vpop.f32.mrf.mxu0
        %v2216 = vadd.f32 0.0, %v2215
        %v2217 = vpop.f32.mrf.mxu0
        %v2218 = vadd.f32 0.0, %v2217
        %2219 = vmatmul.bf16.gmra.mxu0 %v2144
        %v2220 = vpop.f32.mrf.mxu0
        %v2221 = vadd.f32 0.0, %v2220
        %v2222 = vpop.f32.mrf.mxu0
        %v2223 = vadd.f32 0.0, %v2222
        %2224 = vmatmul.bf16.gmra.mxu0 %v2147
        %v2225 = vpop.f32.mrf.mxu0
        %v2226 = vadd.f32 0.0, %v2225
        %v2227 = vpop.f32.mrf.mxu0
        %v2228 = vadd.f32 0.0, %v2227
        %2229 = vmatmul.bf16.gmra.mxu0 %v2150
        %v2230 = vpop.f32.mrf.mxu0
        %v2231 = vadd.f32 0.0, %v2230
        %v2232 = vpop.f32.mrf.mxu0
        %v2233 = vadd.f32 0.0, %v2232
        %2234 = vmatmul.bf16.gmra.mxu0 %v2153
        %v2235 = vpop.f32.mrf.mxu0
        %v2236 = vadd.f32 0.0, %v2235
        %v2237 = vpop.f32.mrf.mxu0
        %v2238 = vadd.f32 0.0, %v2237
        %2239 = vmatmul.bf16.gmra.mxu0 %v2156
        %v2240 = vpop.f32.mrf.mxu0
        %v2241 = vadd.f32 0.0, %v2240
        %v2242 = vpop.f32.mrf.mxu0
        %v2243 = vadd.f32 0.0, %v2242
        %2244 = vmatmul.bf16.gmra.mxu0 %v2159
        %v2245 = vpop.f32.mrf.mxu0
        %v2246 = vadd.f32 0.0, %v2245
        %v2247 = vpop.f32.mrf.mxu0
        %v2248 = vadd.f32 0.0, %v2247
        %2249 = vdwg.mxu0
        %v2250 = vadd.f32 %v2000, %v2171
        %v2251 = vadd.f32 %v2001, %v2173
        %v2252 = vadd.f32 %v2002, %v2176
        %v2253 = vadd.f32 %v2003, %v2178
        %v2254 = vadd.f32 %v2004, %v2181
        %v2255 = vadd.f32 %v2005, %v2183
        %v2256 = vadd.f32 %v2006, %v2186
        %v2257 = vadd.f32 %v2007, %v2188
        %v2258 = vadd.f32 %v2008, %v2191
        %v2259 = vadd.f32 %v2009, %v2193
        %v2260 = vadd.f32 %v2010, %v2196
        %v2261 = vadd.f32 %v2011, %v2198
        %v2262 = vadd.f32 %v2012, %v2201
        %v2263 = vadd.f32 %v2013, %v2203
        %v2264 = vadd.f32 %v2014, %v2206
        %v2265 = vadd.f32 %v2015, %v2208
        %v2266 = vadd.f32 %v2016, %v2211
        %v2267 = vadd.f32 %v2017, %v2213
        %v2268 = vadd.f32 %v2018, %v2216
        %v2269 = vadd.f32 %v2019, %v2218
        %v2270 = vadd.f32 %v2020, %v2221
        %v2271 = vadd.f32 %v2021, %v2223
        %v2272 = vadd.f32 %v2022, %v2226
        %v2273 = vadd.f32 %v2023, %v2228
        %v2274 = vadd.f32 %v2024, %v2231
        %v2275 = vadd.f32 %v2025, %v2233
        %v2276 = vadd.f32 %v2026, %v2236
        %v2277 = vadd.f32 %v2027, %v2238
        %v2278 = vadd.f32 %v2028, %v2241
        %v2279 = vadd.f32 %v2029, %v2243
        %v2280 = vadd.f32 %v2030, %v2246
        %v2281 = vadd.f32 %v2031, %v2248
        %v2282 = vld [vmem:[%s1781 + $0x2] sm:$0xff]
        %v2283 = vld [vmem:[%s1781 + $0xa] sm:$0xff]
        %v2284 = vld [vmem:[%s1781 + $0x1a] sm:$0xff]
        %v2285 = vld [vmem:[%s1781 + $0x22] sm:$0xff]
        %v2286 = vld [vmem:[%s1781 + $0x32] sm:$0xff]
        %v2287 = vld [vmem:[%s1781 + $0x3a] sm:$0xff]
        %v2288 = vld [vmem:[%s1781 + $0x4a] sm:$0xff]
        %v2289 = vld [vmem:[%s1781 + $0x52] sm:$0xff]
        %v2290 = vld [vmem:[%s1781 + $0x62] sm:$0xff]
        %v2291 = vld [vmem:[%s1781 + $0x6a] sm:$0xff]
        %v2292 = vld [vmem:[%s1781 + $0x7a] sm:$0xff]
        %v2293 = vld [vmem:[%s1781 + $0x82] sm:$0xff]
        %v2294 = vld [vmem:[%s1781 + $0x92] sm:$0xff]
        %v2295 = vld [vmem:[%s1781 + $0x9a] sm:$0xff]
        %v2296 = vld [vmem:[%s1781 + $0xaa] sm:$0xff]
        %v2297 = vld [vmem:[%s1781 + $0xb2] sm:$0xff]
        %v2298 = vld [vmem:[%s1781 + $0xc2] sm:$0xff]
        %v2299 = vld [vmem:[%s1781 + $0xca] sm:$0xff]
        %v2300 = vld [vmem:[%s1781 + $0xda] sm:$0xff]
        %v2301 = vld [vmem:[%s1781 + $0xe2] sm:$0xff]
        %v2302 = vld [vmem:[%s1781 + $0xf2] sm:$0xff]
        %v2303 = vld [vmem:[%s1781 + $0xfa] sm:$0xff]
        %v2304 = vld [vmem:[%s1781 + $0x10a] sm:$0xff]
        %v2305 = vld [vmem:[%s1781 + $0x112] sm:$0xff]
        %v2306 = vld [vmem:[%s1781 + $0x122] sm:$0xff]
        %v2307 = vld [vmem:[%s1781 + $0x12a] sm:$0xff]
        %v2308 = vld [vmem:[%s1781 + $0x13a] sm:$0xff]
        %v2309 = vld [vmem:[%s1781 + $0x142] sm:$0xff]
        %v2310 = vld [vmem:[%s1781 + $0x152] sm:$0xff]
        %v2311 = vld [vmem:[%s1781 + $0x15a] sm:$0xff]
        %v2312 = vld [vmem:[%s1781 + $0x16a] sm:$0xff]
        %v2313 = vld [vmem:[%s1781 + $0x172] sm:$0xff]
        %v2314 = vpack.c.bf16 %v2283, %v2282
        %v2315 = vpack.c.bf16 %v2285, %v2284
        %v2316 = vpack.c.bf16 %v2287, %v2286
        %v2317 = vpack.c.bf16 %v2289, %v2288
        %v2318 = vpack.c.bf16 %v2291, %v2290
        %v2319 = vpack.c.bf16 %v2293, %v2292
        %v2320 = vpack.c.bf16 %v2295, %v2294
        %v2321 = vpack.c.bf16 %v2297, %v2296
        %v2322 = vpack.c.bf16 %v2299, %v2298
        %v2323 = vpack.c.bf16 %v2301, %v2300
        %v2324 = vpack.c.bf16 %v2303, %v2302
        %v2325 = vpack.c.bf16 %v2305, %v2304
        %v2326 = vpack.c.bf16 %v2307, %v2306
        %v2327 = vpack.c.bf16 %v2309, %v2308
        %v2328 = vpack.c.bf16 %v2311, %v2310
        %v2329 = vpack.c.bf16 %v2313, %v2312
        %s2330 = scalar_lea.vmem %s1, 256
        %v2331 = vld [vmem:[%s2330] sm:$0xf]
        %v2332 = vld [vmem:[%s2330 + $0x4] sm:$0xf]
        %v2333 = vld [vmem:[%s2330 + $0x8] sm:$0xf]
        %v2334 = vld [vmem:[%s2330 + $0xc] sm:$0xf]
        %v2335 = vld [vmem:[%s2330 + $0x10] sm:$0xf]
        %v2336 = vld [vmem:[%s2330 + $0x14] sm:$0xf]
        %v2337 = vld [vmem:[%s2330 + $0x18] sm:$0xf]
        %v2338 = vld [vmem:[%s2330 + $0x1c] sm:$0xf]
        %v2347 = vunpack.c.l.b16 %v2331
        %v2348 = vunpack.c.l.b16 %v2332
        %v2349 = vunpack.c.l.b16 %v2333
        %v2350 = vunpack.c.l.b16 %v2334
        %v2351 = vunpack.c.l.b16 %v2335
        %v2352 = vunpack.c.l.b16 %v2336
        %v2353 = vunpack.c.l.b16 %v2337
        %v2354 = vunpack.c.l.b16 %v2338
        %v2355 = vpack.c.b16 %v2348, %v2347
        %v2356 = vpack.c.b16 %v2350, %v2349
        %v2357 = vpack.c.b16 %v2352, %v2351
        %v2358 = vpack.c.b16 %v2354, %v2353
        %v2364 = vsel %vm224, %v2314, 0
        %v2367 = vsel %vm224, %v2315, 0
        %v2370 = vsel %vm224, %v2316, 0
        %v2373 = vsel %vm224, %v2317, 0
        %v2376 = vsel %vm224, %v2318, 0
        %v2379 = vsel %vm224, %v2319, 0
        %v2382 = vsel %vm224, %v2320, 0
        %v2385 = vsel %vm224, %v2321, 0
        %v2388 = vsel %vm224, %v2322, 0
        %v2391 = vsel %vm224, %v2323, 0
        %v2394 = vsel %vm224, %v2324, 0
        %v2397 = vsel %vm224, %v2325, 0
        %v2400 = vsel %vm224, %v2326, 0
        %v2403 = vsel %vm224, %v2327, 0
        %v2406 = vsel %vm224, %v2328, 0
        %v2409 = vsel %vm224, %v2329, 0
        %2411 = vmatpush.bf16.msra.mxu0 0
        %2412 = vmatpush.bf16.msra.mxu0 0
        %2413 = vmatpush.bf16.msra.mxu0 0
        %2414 = vmatpush.bf16.msra.mxu0 0
        %2415 = vmatpush.bf16.msra.mxu0 %v2358
        %2416 = vmatpush.bf16.msra.mxu0 %v2357
        %2417 = vmatpush.bf16.msra.mxu0 %v2356
        %2418 = vmatpush.bf16.msra.mxu0 %v2355
        %2419 = vmatmul.bf16.gmra.mxu0 %v2364
        %v2420 = vpop.f32.mrf.mxu0
        %v2421 = vadd.f32 0.0, %v2420
        %v2422 = vpop.f32.mrf.mxu0
        %v2423 = vadd.f32 0.0, %v2422
        %2424 = vmatmul.bf16.gmra.mxu0 %v2367
        %v2425 = vpop.f32.mrf.mxu0
        %v2426 = vadd.f32 0.0, %v2425
        %v2427 = vpop.f32.mrf.mxu0
        %v2428 = vadd.f32 0.0, %v2427
        %2429 = vmatmul.bf16.gmra.mxu0 %v2370
        %v2430 = vpop.f32.mrf.mxu0
        %v2431 = vadd.f32 0.0, %v2430
        %v2432 = vpop.f32.mrf.mxu0
        %v2433 = vadd.f32 0.0, %v2432
        %2434 = vmatmul.bf16.gmra.mxu0 %v2373
        %v2435 = vpop.f32.mrf.mxu0
        %v2436 = vadd.f32 0.0, %v2435
        %v2437 = vpop.f32.mrf.mxu0
        %v2438 = vadd.f32 0.0, %v2437
        %2439 = vmatmul.bf16.gmra.mxu0 %v2376
        %v2440 = vpop.f32.mrf.mxu0
        %v2441 = vadd.f32 0.0, %v2440
        %v2442 = vpop.f32.mrf.mxu0
        %v2443 = vadd.f32 0.0, %v2442
        %2444 = vmatmul.bf16.gmra.mxu0 %v2379
        %v2445 = vpop.f32.mrf.mxu0
        %v2446 = vadd.f32 0.0, %v2445
        %v2447 = vpop.f32.mrf.mxu0
        %v2448 = vadd.f32 0.0, %v2447
        %2449 = vmatmul.bf16.gmra.mxu0 %v2382
        %v2450 = vpop.f32.mrf.mxu0
        %v2451 = vadd.f32 0.0, %v2450
        %v2452 = vpop.f32.mrf.mxu0
        %v2453 = vadd.f32 0.0, %v2452
        %2454 = vmatmul.bf16.gmra.mxu0 %v2385
        %v2455 = vpop.f32.mrf.mxu0
        %v2456 = vadd.f32 0.0, %v2455
        %v2457 = vpop.f32.mrf.mxu0
        %v2458 = vadd.f32 0.0, %v2457
        %2459 = vmatmul.bf16.gmra.mxu0 %v2388
        %v2460 = vpop.f32.mrf.mxu0
        %v2461 = vadd.f32 0.0, %v2460
        %v2462 = vpop.f32.mrf.mxu0
        %v2463 = vadd.f32 0.0, %v2462
        %2464 = vmatmul.bf16.gmra.mxu0 %v2391
        %v2465 = vpop.f32.mrf.mxu0
        %v2466 = vadd.f32 0.0, %v2465
        %v2467 = vpop.f32.mrf.mxu0
        %v2468 = vadd.f32 0.0, %v2467
        %2469 = vmatmul.bf16.gmra.mxu0 %v2394
        %v2470 = vpop.f32.mrf.mxu0
        %v2471 = vadd.f32 0.0, %v2470
        %v2472 = vpop.f32.mrf.mxu0
        %v2473 = vadd.f32 0.0, %v2472
        %2474 = vmatmul.bf16.gmra.mxu0 %v2397
        %v2475 = vpop.f32.mrf.mxu0
        %v2476 = vadd.f32 0.0, %v2475
        %v2477 = vpop.f32.mrf.mxu0
        %v2478 = vadd.f32 0.0, %v2477
        %2479 = vmatmul.bf16.gmra.mxu0 %v2400
        %v2480 = vpop.f32.mrf.mxu0
        %v2481 = vadd.f32 0.0, %v2480
        %v2482 = vpop.f32.mrf.mxu0
        %v2483 = vadd.f32 0.0, %v2482
        %2484 = vmatmul.bf16.gmra.mxu0 %v2403
        %v2485 = vpop.f32.mrf.mxu0
        %v2486 = vadd.f32 0.0, %v2485
        %v2487 = vpop.f32.mrf.mxu0
        %v2488 = vadd.f32 0.0, %v2487
        %2489 = vmatmul.bf16.gmra.mxu0 %v2406
        %v2490 = vpop.f32.mrf.mxu0
        %v2491 = vadd.f32 0.0, %v2490
        %v2492 = vpop.f32.mrf.mxu0
        %v2493 = vadd.f32 0.0, %v2492
        %2494 = vmatmul.bf16.gmra.mxu0 %v2409
        %v2495 = vpop.f32.mrf.mxu0
        %v2496 = vadd.f32 0.0, %v2495
        %v2497 = vpop.f32.mrf.mxu0
        %v2498 = vadd.f32 0.0, %v2497
        %2499 = vdwg.mxu0
        %v2500 = vadd.f32 %v2250, %v2421
        %v2501 = vadd.f32 %v2251, %v2423
        %v2502 = vadd.f32 %v2252, %v2426
        %v2503 = vadd.f32 %v2253, %v2428
        %v2504 = vadd.f32 %v2254, %v2431
        %v2505 = vadd.f32 %v2255, %v2433
        %v2506 = vadd.f32 %v2256, %v2436
        %v2507 = vadd.f32 %v2257, %v2438
        %v2508 = vadd.f32 %v2258, %v2441
        %v2509 = vadd.f32 %v2259, %v2443
        %v2510 = vadd.f32 %v2260, %v2446
        %v2511 = vadd.f32 %v2261, %v2448
        %v2512 = vadd.f32 %v2262, %v2451
        %v2513 = vadd.f32 %v2263, %v2453
        %v2514 = vadd.f32 %v2264, %v2456
        %v2515 = vadd.f32 %v2265, %v2458
        %v2516 = vadd.f32 %v2266, %v2461
        %v2517 = vadd.f32 %v2267, %v2463
        %v2518 = vadd.f32 %v2268, %v2466
        %v2519 = vadd.f32 %v2269, %v2468
        %v2520 = vadd.f32 %v2270, %v2471
        %v2521 = vadd.f32 %v2271, %v2473
        %v2522 = vadd.f32 %v2272, %v2476
        %v2523 = vadd.f32 %v2273, %v2478
        %v2524 = vadd.f32 %v2274, %v2481
        %v2525 = vadd.f32 %v2275, %v2483
        %v2526 = vadd.f32 %v2276, %v2486
        %v2527 = vadd.f32 %v2277, %v2488
        %v2528 = vadd.f32 %v2278, %v2491
        %v2529 = vadd.f32 %v2279, %v2493
        %v2530 = vadd.f32 %v2280, %v2496
        %v2531 = vadd.f32 %v2281, %v2498
        %v2532 = vld [vmem:[%s2] sm:$0x1]
        %v2534 = vperm.slane %v2532, 0
        %v2536 = vadd.f32 %v2500, %v2534
        %v2537 = vadd.f32 %v2501, %v2534
        %v2538 = vadd.f32 %v2502, %v2534
        %v2539 = vadd.f32 %v2503, %v2534
        %v2540 = vadd.f32 %v2504, %v2534
        %v2541 = vadd.f32 %v2505, %v2534
        %v2542 = vadd.f32 %v2506, %v2534
        %v2543 = vadd.f32 %v2507, %v2534
        %v2544 = vadd.f32 %v2508, %v2534
        %v2545 = vadd.f32 %v2509, %v2534
        %v2546 = vadd.f32 %v2510, %v2534
        %v2547 = vadd.f32 %v2511, %v2534
        %v2548 = vadd.f32 %v2512, %v2534
        %v2549 = vadd.f32 %v2513, %v2534
        %v2550 = vadd.f32 %v2514, %v2534
        %v2551 = vadd.f32 %v2515, %v2534
        %v2552 = vadd.f32 %v2516, %v2534
        %v2553 = vadd.f32 %v2517, %v2534
        %v2554 = vadd.f32 %v2518, %v2534
        %v2555 = vadd.f32 %v2519, %v2534
        %v2556 = vadd.f32 %v2520, %v2534
        %v2557 = vadd.f32 %v2521, %v2534
        %v2558 = vadd.f32 %v2522, %v2534
        %v2559 = vadd.f32 %v2523, %v2534
        %v2560 = vadd.f32 %v2524, %v2534
        %v2561 = vadd.f32 %v2525, %v2534
        %v2562 = vadd.f32 %v2526, %v2534
        %v2563 = vadd.f32 %v2527, %v2534
        %v2564 = vadd.f32 %v2528, %v2534
        %v2565 = vadd.f32 %v2529, %v2534
        %v2566 = vadd.f32 %v2530, %v2534
        %v2567 = vadd.f32 %v2531, %v2534
        %v2568 = vmax.f32 %v2536, 0.0
        %v2569 = vmax.f32 %v2537, 0.0
        %v2570 = vmax.f32 %v2538, 0.0
        %v2571 = vmax.f32 %v2539, 0.0
        %v2572 = vmax.f32 %v2540, 0.0
        %v2573 = vmax.f32 %v2541, 0.0
        %v2574 = vmax.f32 %v2542, 0.0
        %v2575 = vmax.f32 %v2543, 0.0
        %v2576 = vmax.f32 %v2544, 0.0
        %v2577 = vmax.f32 %v2545, 0.0
        %v2578 = vmax.f32 %v2546, 0.0
        %v2579 = vmax.f32 %v2547, 0.0
        %v2580 = vmax.f32 %v2548, 0.0
        %v2581 = vmax.f32 %v2549, 0.0
        %v2582 = vmax.f32 %v2550, 0.0
        %v2583 = vmax.f32 %v2551, 0.0
        %v2584 = vmax.f32 %v2552, 0.0
        %v2585 = vmax.f32 %v2553, 0.0
        %v2586 = vmax.f32 %v2554, 0.0
        %v2587 = vmax.f32 %v2555, 0.0
        %v2588 = vmax.f32 %v2556, 0.0
        %v2589 = vmax.f32 %v2557, 0.0
        %v2590 = vmax.f32 %v2558, 0.0
        %v2591 = vmax.f32 %v2559, 0.0
        %v2592 = vmax.f32 %v2560, 0.0
        %v2593 = vmax.f32 %v2561, 0.0
        %v2594 = vmax.f32 %v2562, 0.0
        %v2595 = vmax.f32 %v2563, 0.0
        %v2596 = vmax.f32 %v2564, 0.0
        %v2597 = vmax.f32 %v2565, 0.0
        %v2598 = vmax.f32 %v2566, 0.0
        %v2599 = vmax.f32 %v2567, 0.0
        %2600 = vst.msk [vmem:[%s312 + $0x1] sm:$0xff] %vm224, %v2568
        %2601 = vst.msk [vmem:[%s312 + $0x9] sm:$0xff] %vm224, %v2569
        %2602 = vst.msk [vmem:[%s312 + $0x19] sm:$0xff] %vm224, %v2570
        %2603 = vst.msk [vmem:[%s312 + $0x21] sm:$0xff] %vm224, %v2571
        %2604 = vst.msk [vmem:[%s312 + $0x31] sm:$0xff] %vm224, %v2572
        %2605 = vst.msk [vmem:[%s312 + $0x39] sm:$0xff] %vm224, %v2573
        %2606 = vst.msk [vmem:[%s312 + $0x49] sm:$0xff] %vm224, %v2574
        %2607 = vst.msk [vmem:[%s312 + $0x51] sm:$0xff] %vm224, %v2575
        %2608 = vst.msk [vmem:[%s312 + $0x61] sm:$0xff] %vm224, %v2576
        %2609 = vst.msk [vmem:[%s312 + $0x69] sm:$0xff] %vm224, %v2577
        %2610 = vst.msk [vmem:[%s312 + $0x79] sm:$0xff] %vm224, %v2578
        %2611 = vst.msk [vmem:[%s312 + $0x81] sm:$0xff] %vm224, %v2579
        %2612 = vst.msk [vmem:[%s312 + $0x91] sm:$0xff] %vm224, %v2580
        %2613 = vst.msk [vmem:[%s312 + $0x99] sm:$0xff] %vm224, %v2581
        %2614 = vst.msk [vmem:[%s312 + $0xa9] sm:$0xff] %vm224, %v2582
        %2615 = vst.msk [vmem:[%s312 + $0xb1] sm:$0xff] %vm224, %v2583
        %2616 = vst.msk [vmem:[%s312 + $0xc1] sm:$0xff] %vm224, %v2584
        %2617 = vst.msk [vmem:[%s312 + $0xc9] sm:$0xff] %vm224, %v2585
        %2618 = vst.msk [vmem:[%s312 + $0xd9] sm:$0xff] %vm224, %v2586
        %2619 = vst.msk [vmem:[%s312 + $0xe1] sm:$0xff] %vm224, %v2587
        %2620 = vst.msk [vmem:[%s312 + $0xf1] sm:$0xff] %vm224, %v2588
        %2621 = vst.msk [vmem:[%s312 + $0xf9] sm:$0xff] %vm224, %v2589
        %2622 = vst.msk [vmem:[%s312 + $0x109] sm:$0xff] %vm224, %v2590
        %2623 = vst.msk [vmem:[%s312 + $0x111] sm:$0xff] %vm224, %v2591
        %2624 = vst.msk [vmem:[%s312 + $0x121] sm:$0xff] %vm224, %v2592
        %2625 = vst.msk [vmem:[%s312 + $0x129] sm:$0xff] %vm224, %v2593
        %2626 = vst.msk [vmem:[%s312 + $0x139] sm:$0xff] %vm224, %v2594
        %2627 = vst.msk [vmem:[%s312 + $0x141] sm:$0xff] %vm224, %v2595
        %2628 = vst.msk [vmem:[%s312 + $0x151] sm:$0xff] %vm224, %v2596
        %2629 = vst.msk [vmem:[%s312 + $0x159] sm:$0xff] %vm224, %v2597
        %2630 = vst.msk [vmem:[%s312 + $0x169] sm:$0xff] %vm224, %v2598
        %2631 = vst.msk [vmem:[%s312 + $0x171] sm:$0xff] %vm224, %v2599
        %v2632 = vld [vmem:[#allocation2] sm:$0xff]
        %v2633 = vld [vmem:[#allocation2 + $0x8] sm:$0xff]
        %v2634 = vld [vmem:[#allocation2 + $0x18] sm:$0xff]
        %v2635 = vld [vmem:[#allocation2 + $0x20] sm:$0xff]
        %v2636 = vld [vmem:[#allocation2 + $0x30] sm:$0xff]
        %v2637 = vld [vmem:[#allocation2 + $0x38] sm:$0xff]
        %v2638 = vld [vmem:[#allocation2 + $0x48] sm:$0xff]
        %v2639 = vld [vmem:[#allocation2 + $0x50] sm:$0xff]
        %v2640 = vld [vmem:[#allocation2 + $0x60] sm:$0xff]
        %v2641 = vld [vmem:[#allocation2 + $0x68] sm:$0xff]
        %v2642 = vld [vmem:[#allocation2 + $0x78] sm:$0xff]
        %v2643 = vld [vmem:[#allocation2 + $0x80] sm:$0xff]
        %v2644 = vld [vmem:[#allocation2 + $0x90] sm:$0xff]
        %v2645 = vld [vmem:[#allocation2 + $0x98] sm:$0xff]
        %v2646 = vld [vmem:[#allocation2 + $0xa8] sm:$0xff]
        %v2647 = vld [vmem:[#allocation2 + $0xb0] sm:$0xff]
        %v2648 = vld [vmem:[#allocation2 + $0xc0] sm:$0xff]
        %v2649 = vld [vmem:[#allocation2 + $0xc8] sm:$0xff]
        %v2650 = vld [vmem:[#allocation2 + $0xd8] sm:$0xff]
        %v2651 = vld [vmem:[#allocation2 + $0xe0] sm:$0xff]
        %v2652 = vld [vmem:[#allocation2 + $0xf0] sm:$0xff]
        %v2653 = vld [vmem:[#allocation2 + $0xf8] sm:$0xff]
        %v2654 = vld [vmem:[#allocation2 + $0x108] sm:$0xff]
        %v2655 = vld [vmem:[#allocation2 + $0x110] sm:$0xff]
        %v2656 = vld [vmem:[#allocation2 + $0x120] sm:$0xff]
        %v2657 = vld [vmem:[#allocation2 + $0x128] sm:$0xff]
        %v2658 = vld [vmem:[#allocation2 + $0x138] sm:$0xff]
        %v2659 = vld [vmem:[#allocation2 + $0x140] sm:$0xff]
        %v2660 = vld [vmem:[#allocation2 + $0x150] sm:$0xff]
        %v2661 = vld [vmem:[#allocation2 + $0x158] sm:$0xff]
        %v2662 = vld [vmem:[#allocation2 + $0x168] sm:$0xff]
        %v2663 = vld [vmem:[#allocation2 + $0x170] sm:$0xff]
        %v2664 = vpack.c.bf16 %v2633, %v2632
        %v2665 = vpack.c.bf16 %v2635, %v2634
        %v2666 = vpack.c.bf16 %v2637, %v2636
        %v2667 = vpack.c.bf16 %v2639, %v2638
        %v2668 = vpack.c.bf16 %v2641, %v2640
        %v2669 = vpack.c.bf16 %v2643, %v2642
        %v2670 = vpack.c.bf16 %v2645, %v2644
        %v2671 = vpack.c.bf16 %v2647, %v2646
        %v2672 = vpack.c.bf16 %v2649, %v2648
        %v2673 = vpack.c.bf16 %v2651, %v2650
        %v2674 = vpack.c.bf16 %v2653, %v2652
        %v2675 = vpack.c.bf16 %v2655, %v2654
        %v2676 = vpack.c.bf16 %v2657, %v2656
        %v2677 = vpack.c.bf16 %v2659, %v2658
        %v2678 = vpack.c.bf16 %v2661, %v2660
        %v2679 = vpack.c.bf16 %v2663, %v2662
        %v2680 = vld [vmem:[%s3] sm:$0xf]
        %v2681 = vld [vmem:[%s3 + $0x4] sm:$0xf]
        %v2682 = vld [vmem:[%s3 + $0x8] sm:$0xf]
        %v2683 = vld [vmem:[%s3 + $0xc] sm:$0xf]
        %v2684 = vld [vmem:[%s3 + $0x10] sm:$0xf]
        %v2685 = vld [vmem:[%s3 + $0x14] sm:$0xf]
        %v2686 = vld [vmem:[%s3 + $0x18] sm:$0xf]
        %v2687 = vld [vmem:[%s3 + $0x1c] sm:$0xf]
        %v2688 = vld [vmem:[#allocation2 + $0x1] sm:$0xff]
        %v2689 = vld [vmem:[#allocation2 + $0x9] sm:$0xff]
        %v2690 = vld [vmem:[#allocation2 + $0x19] sm:$0xff]
        %v2691 = vld [vmem:[#allocation2 + $0x21] sm:$0xff]
        %v2692 = vld [vmem:[#allocation2 + $0x31] sm:$0xff]
        %v2693 = vld [vmem:[#allocation2 + $0x39] sm:$0xff]
        %v2694 = vld [vmem:[#allocation2 + $0x49] sm:$0xff]
        %v2695 = vld [vmem:[#allocation2 + $0x51] sm:$0xff]
        %v2696 = vld [vmem:[#allocation2 + $0x61] sm:$0xff]
        %v2697 = vld [vmem:[#allocation2 + $0x69] sm:$0xff]
        %v2698 = vld [vmem:[#allocation2 + $0x79] sm:$0xff]
        %v2699 = vld [vmem:[#allocation2 + $0x81] sm:$0xff]
        %v2700 = vld [vmem:[#allocation2 + $0x91] sm:$0xff]
        %v2701 = vld [vmem:[#allocation2 + $0x99] sm:$0xff]
        %v2702 = vld [vmem:[#allocation2 + $0xa9] sm:$0xff]
        %v2703 = vld [vmem:[#allocation2 + $0xb1] sm:$0xff]
        %v2704 = vld [vmem:[#allocation2 + $0xc1] sm:$0xff]
        %v2705 = vld [vmem:[#allocation2 + $0xc9] sm:$0xff]
        %v2706 = vld [vmem:[#allocation2 + $0xd9] sm:$0xff]
        %v2707 = vld [vmem:[#allocation2 + $0xe1] sm:$0xff]
        %v2708 = vld [vmem:[#allocation2 + $0xf1] sm:$0xff]
        %v2709 = vld [vmem:[#allocation2 + $0xf9] sm:$0xff]
        %v2710 = vld [vmem:[#allocation2 + $0x109] sm:$0xff]
        %v2711 = vld [vmem:[#allocation2 + $0x111] sm:$0xff]
        %v2712 = vld [vmem:[#allocation2 + $0x121] sm:$0xff]
        %v2713 = vld [vmem:[#allocation2 + $0x129] sm:$0xff]
        %v2714 = vld [vmem:[#allocation2 + $0x139] sm:$0xff]
        %v2715 = vld [vmem:[#allocation2 + $0x141] sm:$0xff]
        %v2716 = vld [vmem:[#allocation2 + $0x151] sm:$0xff]
        %v2717 = vld [vmem:[#allocation2 + $0x159] sm:$0xff]
        %v2718 = vld [vmem:[#allocation2 + $0x169] sm:$0xff]
        %v2719 = vld [vmem:[#allocation2 + $0x171] sm:$0xff]
        %v2720 = vpack.c.bf16 %v2689, %v2688
        %v2721 = vpack.c.bf16 %v2691, %v2690
        %v2722 = vpack.c.bf16 %v2693, %v2692
        %v2723 = vpack.c.bf16 %v2695, %v2694
        %v2724 = vpack.c.bf16 %v2697, %v2696
        %v2725 = vpack.c.bf16 %v2699, %v2698
        %v2726 = vpack.c.bf16 %v2701, %v2700
        %v2727 = vpack.c.bf16 %v2703, %v2702
        %v2728 = vpack.c.bf16 %v2705, %v2704
        %v2729 = vpack.c.bf16 %v2707, %v2706
        %v2730 = vpack.c.bf16 %v2709, %v2708
        %v2731 = vpack.c.bf16 %v2711, %v2710
        %v2732 = vpack.c.bf16 %v2713, %v2712
        %v2733 = vpack.c.bf16 %v2715, %v2714
        %v2734 = vpack.c.bf16 %v2717, %v2716
        %v2735 = vpack.c.bf16 %v2719, %v2718
        %s2736 = scalar_lea.vmem %s3, 32
        %v2737 = vld [vmem:[%s2736] sm:$0xf]
        %v2738 = vld [vmem:[%s2736 + $0x4] sm:$0xf]
        %v2739 = vld [vmem:[%s2736 + $0x8] sm:$0xf]
        %v2740 = vld [vmem:[%s2736 + $0xc] sm:$0xf]
        %v2741 = vld [vmem:[%s2736 + $0x10] sm:$0xf]
        %v2742 = vld [vmem:[%s2736 + $0x14] sm:$0xf]
        %v2743 = vld [vmem:[%s2736 + $0x18] sm:$0xf]
        %v2744 = vld [vmem:[%s2736 + $0x1c] sm:$0xf]
        %v2753 = vunpack.c.l.b16 %v2737
        %v2754 = vunpack.c.l.b16 %v2738
        %v2755 = vunpack.c.l.b16 %v2739
        %v2756 = vunpack.c.l.b16 %v2740
        %v2757 = vunpack.c.l.b16 %v2741
        %v2758 = vunpack.c.l.b16 %v2742
        %v2759 = vunpack.c.l.b16 %v2743
        %v2760 = vunpack.c.l.b16 %v2744
        %v2761 = vpack.c.b16 %v2754, %v2753
        %v2762 = vpack.c.b16 %v2756, %v2755
        %v2763 = vpack.c.b16 %v2758, %v2757
        %v2764 = vpack.c.b16 %v2760, %v2759
        %v2770 = vsel %vm224, %v2720, 0
        %v2773 = vsel %vm224, %v2721, 0
        %v2776 = vsel %vm224, %v2722, 0
        %v2779 = vsel %vm224, %v2723, 0
        %v2782 = vsel %vm224, %v2724, 0
        %v2785 = vsel %vm224, %v2725, 0
        %v2788 = vsel %vm224, %v2726, 0
        %v2791 = vsel %vm224, %v2727, 0
        %v2794 = vsel %vm224, %v2728, 0
        %v2797 = vsel %vm224, %v2729, 0
        %v2800 = vsel %vm224, %v2730, 0
        %v2803 = vsel %vm224, %v2731, 0
        %v2806 = vsel %vm224, %v2732, 0
        %v2809 = vsel %vm224, %v2733, 0
        %v2812 = vsel %vm224, %v2734, 0
        %v2815 = vsel %vm224, %v2735, 0
        %2817 = vmatpush.bf16.msra.mxu0 0
        %2818 = vmatpush.bf16.msra.mxu0 0
        %2819 = vmatpush.bf16.msra.mxu0 0
        %2820 = vmatpush.bf16.msra.mxu0 0
        %2821 = vmatpush.bf16.msra.mxu0 %v2764
        %2822 = vmatpush.bf16.msra.mxu0 %v2763
        %2823 = vmatpush.bf16.msra.mxu0 %v2762
        %2824 = vmatpush.bf16.msra.mxu0 %v2761
        %2825 = vmatmul.bf16.gmra.mxu0 %v2770
        %v2826 = vpop.f32.mrf.mxu0
        %v2827 = vadd.f32 0.0, %v2826
        %v2828 = vpop.f32.mrf.mxu0
        %v2829 = vadd.f32 0.0, %v2828
        %2830 = vmatmul.bf16.gmra.mxu0 %v2773
        %v2831 = vpop.f32.mrf.mxu0
        %v2832 = vadd.f32 0.0, %v2831
        %v2833 = vpop.f32.mrf.mxu0
        %v2834 = vadd.f32 0.0, %v2833
        %2835 = vmatmul.bf16.gmra.mxu0 %v2776
        %v2836 = vpop.f32.mrf.mxu0
        %v2837 = vadd.f32 0.0, %v2836
        %v2838 = vpop.f32.mrf.mxu0
        %v2839 = vadd.f32 0.0, %v2838
        %2840 = vmatmul.bf16.gmra.mxu0 %v2779
        %v2841 = vpop.f32.mrf.mxu0
        %v2842 = vadd.f32 0.0, %v2841
        %v2843 = vpop.f32.mrf.mxu0
        %v2844 = vadd.f32 0.0, %v2843
        %2845 = vmatmul.bf16.gmra.mxu0 %v2782
        %v2846 = vpop.f32.mrf.mxu0
        %v2847 = vadd.f32 0.0, %v2846
        %v2848 = vpop.f32.mrf.mxu0
        %v2849 = vadd.f32 0.0, %v2848
        %2850 = vmatmul.bf16.gmra.mxu0 %v2785
        %v2851 = vpop.f32.mrf.mxu0
        %v2852 = vadd.f32 0.0, %v2851
        %v2853 = vpop.f32.mrf.mxu0
        %v2854 = vadd.f32 0.0, %v2853
        %2855 = vmatmul.bf16.gmra.mxu0 %v2788
        %v2856 = vpop.f32.mrf.mxu0
        %v2857 = vadd.f32 0.0, %v2856
        %v2858 = vpop.f32.mrf.mxu0
        %v2859 = vadd.f32 0.0, %v2858
        %2860 = vmatmul.bf16.gmra.mxu0 %v2791
        %v2861 = vpop.f32.mrf.mxu0
        %v2862 = vadd.f32 0.0, %v2861
        %v2863 = vpop.f32.mrf.mxu0
        %v2864 = vadd.f32 0.0, %v2863
        %2865 = vmatmul.bf16.gmra.mxu0 %v2794
        %v2866 = vpop.f32.mrf.mxu0
        %v2867 = vadd.f32 0.0, %v2866
        %v2868 = vpop.f32.mrf.mxu0
        %v2869 = vadd.f32 0.0, %v2868
        %2870 = vmatmul.bf16.gmra.mxu0 %v2797
        %v2871 = vpop.f32.mrf.mxu0
        %v2872 = vadd.f32 0.0, %v2871
        %v2873 = vpop.f32.mrf.mxu0
        %v2874 = vadd.f32 0.0, %v2873
        %2875 = vmatmul.bf16.gmra.mxu0 %v2800
        %v2876 = vpop.f32.mrf.mxu0
        %v2877 = vadd.f32 0.0, %v2876
        %v2878 = vpop.f32.mrf.mxu0
        %v2879 = vadd.f32 0.0, %v2878
        %2880 = vmatmul.bf16.gmra.mxu0 %v2803
        %v2881 = vpop.f32.mrf.mxu0
        %v2882 = vadd.f32 0.0, %v2881
        %v2883 = vpop.f32.mrf.mxu0
        %v2884 = vadd.f32 0.0, %v2883
        %2885 = vmatmul.bf16.gmra.mxu0 %v2806
        %v2886 = vpop.f32.mrf.mxu0
        %v2887 = vadd.f32 0.0, %v2886
        %v2888 = vpop.f32.mrf.mxu0
        %v2889 = vadd.f32 0.0, %v2888
        %2890 = vmatmul.bf16.gmra.mxu0 %v2809
        %v2891 = vpop.f32.mrf.mxu0
        %v2892 = vadd.f32 0.0, %v2891
        %v2893 = vpop.f32.mrf.mxu0
        %v2894 = vadd.f32 0.0, %v2893
        %2895 = vmatmul.bf16.gmra.mxu0 %v2812
        %v2896 = vpop.f32.mrf.mxu0
        %v2897 = vadd.f32 0.0, %v2896
        %v2898 = vpop.f32.mrf.mxu0
        %v2899 = vadd.f32 0.0, %v2898
        %2900 = vmatmul.bf16.gmra.mxu0 %v2815
        %v2901 = vpop.f32.mrf.mxu0
        %v2902 = vadd.f32 0.0, %v2901
        %v2903 = vpop.f32.mrf.mxu0
        %v2904 = vadd.f32 0.0, %v2903
        %2905 = vdwg.mxu0
        %v2914 = vunpack.c.l.b16 %v2680
        %v2915 = vunpack.c.l.b16 %v2681
        %v2916 = vunpack.c.l.b16 %v2682
        %v2917 = vunpack.c.l.b16 %v2683
        %v2918 = vunpack.c.l.b16 %v2684
        %v2919 = vunpack.c.l.b16 %v2685
        %v2920 = vunpack.c.l.b16 %v2686
        %v2921 = vunpack.c.l.b16 %v2687
        %v2922 = vpack.c.b16 %v2915, %v2914
        %v2923 = vpack.c.b16 %v2917, %v2916
        %v2924 = vpack.c.b16 %v2919, %v2918
        %v2925 = vpack.c.b16 %v2921, %v2920
        %v2931 = vsel %vm224, %v2664, 0
        %v2934 = vsel %vm224, %v2665, 0
        %v2937 = vsel %vm224, %v2666, 0
        %v2940 = vsel %vm224, %v2667, 0
        %v2943 = vsel %vm224, %v2668, 0
        %v2946 = vsel %vm224, %v2669, 0
        %v2949 = vsel %vm224, %v2670, 0
        %v2952 = vsel %vm224, %v2671, 0
        %v2955 = vsel %vm224, %v2672, 0
        %v2958 = vsel %vm224, %v2673, 0
        %v2961 = vsel %vm224, %v2674, 0
        %v2964 = vsel %vm224, %v2675, 0
        %v2967 = vsel %vm224, %v2676, 0
        %v2970 = vsel %vm224, %v2677, 0
        %v2973 = vsel %vm224, %v2678, 0
        %v2976 = vsel %vm224, %v2679, 0
        %2978 = vmatpush.bf16.msra.mxu0 0
        %2979 = vmatpush.bf16.msra.mxu0 0
        %2980 = vmatpush.bf16.msra.mxu0 0
        %2981 = vmatpush.bf16.msra.mxu0 0
        %2982 = vmatpush.bf16.msra.mxu0 %v2925
        %2983 = vmatpush.bf16.msra.mxu0 %v2924
        %2984 = vmatpush.bf16.msra.mxu0 %v2923
        %2985 = vmatpush.bf16.msra.mxu0 %v2922
        %2986 = vmatmul.bf16.gmra.mxu0 %v2931
        %v2987 = vpop.f32.mrf.mxu0
        %v2988 = vadd.f32 %v2827, %v2987
        %v2989 = vpop.f32.mrf.mxu0
        %v2990 = vadd.f32 %v2829, %v2989
        %2991 = vmatmul.bf16.gmra.mxu0 %v2934
        %v2992 = vpop.f32.mrf.mxu0
        %v2993 = vadd.f32 %v2832, %v2992
        %v2994 = vpop.f32.mrf.mxu0
        %v2995 = vadd.f32 %v2834, %v2994
        %2996 = vmatmul.bf16.gmra.mxu0 %v2937
        %v2997 = vpop.f32.mrf.mxu0
        %v2998 = vadd.f32 %v2837, %v2997
        %v2999 = vpop.f32.mrf.mxu0
        %v3000 = vadd.f32 %v2839, %v2999
        %3001 = vmatmul.bf16.gmra.mxu0 %v2940
        %v3002 = vpop.f32.mrf.mxu0
        %v3003 = vadd.f32 %v2842, %v3002
        %v3004 = vpop.f32.mrf.mxu0
        %v3005 = vadd.f32 %v2844, %v3004
        %3006 = vmatmul.bf16.gmra.mxu0 %v2943
        %v3007 = vpop.f32.mrf.mxu0
        %v3008 = vadd.f32 %v2847, %v3007
        %v3009 = vpop.f32.mrf.mxu0
        %v3010 = vadd.f32 %v2849, %v3009
        %3011 = vmatmul.bf16.gmra.mxu0 %v2946
        %v3012 = vpop.f32.mrf.mxu0
        %v3013 = vadd.f32 %v2852, %v3012
        %v3014 = vpop.f32.mrf.mxu0
        %v3015 = vadd.f32 %v2854, %v3014
        %3016 = vmatmul.bf16.gmra.mxu0 %v2949
        %v3017 = vpop.f32.mrf.mxu0
        %v3018 = vadd.f32 %v2857, %v3017
        %v3019 = vpop.f32.mrf.mxu0
        %v3020 = vadd.f32 %v2859, %v3019
        %3021 = vmatmul.bf16.gmra.mxu0 %v2952
        %v3022 = vpop.f32.mrf.mxu0
        %v3023 = vadd.f32 %v2862, %v3022
        %v3024 = vpop.f32.mrf.mxu0
        %v3025 = vadd.f32 %v2864, %v3024
        %3026 = vmatmul.bf16.gmra.mxu0 %v2955
        %v3027 = vpop.f32.mrf.mxu0
        %v3028 = vadd.f32 %v2867, %v3027
        %v3029 = vpop.f32.mrf.mxu0
        %v3030 = vadd.f32 %v2869, %v3029
        %3031 = vmatmul.bf16.gmra.mxu0 %v2958
        %v3032 = vpop.f32.mrf.mxu0
        %v3033 = vadd.f32 %v2872, %v3032
        %v3034 = vpop.f32.mrf.mxu0
        %v3035 = vadd.f32 %v2874, %v3034
        %3036 = vmatmul.bf16.gmra.mxu0 %v2961
        %v3037 = vpop.f32.mrf.mxu0
        %v3038 = vadd.f32 %v2877, %v3037
        %v3039 = vpop.f32.mrf.mxu0
        %v3040 = vadd.f32 %v2879, %v3039
        %3041 = vmatmul.bf16.gmra.mxu0 %v2964
        %v3042 = vpop.f32.mrf.mxu0
        %v3043 = vadd.f32 %v2882, %v3042
        %v3044 = vpop.f32.mrf.mxu0
        %v3045 = vadd.f32 %v2884, %v3044
        %3046 = vmatmul.bf16.gmra.mxu0 %v2967
        %v3047 = vpop.f32.mrf.mxu0
        %v3048 = vadd.f32 %v2887, %v3047
        %v3049 = vpop.f32.mrf.mxu0
        %v3050 = vadd.f32 %v2889, %v3049
        %3051 = vmatmul.bf16.gmra.mxu0 %v2970
        %v3052 = vpop.f32.mrf.mxu0
        %v3053 = vadd.f32 %v2892, %v3052
        %v3054 = vpop.f32.mrf.mxu0
        %v3055 = vadd.f32 %v2894, %v3054
        %3056 = vmatmul.bf16.gmra.mxu0 %v2973
        %v3057 = vpop.f32.mrf.mxu0
        %v3058 = vadd.f32 %v2897, %v3057
        %v3059 = vpop.f32.mrf.mxu0
        %v3060 = vadd.f32 %v2899, %v3059
        %3061 = vmatmul.bf16.gmra.mxu0 %v2976
        %v3062 = vpop.f32.mrf.mxu0
        %v3063 = vadd.f32 %v2902, %v3062
        %v3064 = vpop.f32.mrf.mxu0
        %v3065 = vadd.f32 %v2904, %v3064
        %3066 = vdwg.mxu0
        %v3067 = vld [vmem:[#allocation2 + $0x2] sm:$0xff]
        %v3068 = vld [vmem:[#allocation2 + $0xa] sm:$0xff]
        %v3069 = vld [vmem:[#allocation2 + $0x1a] sm:$0xff]
        %v3070 = vld [vmem:[#allocation2 + $0x22] sm:$0xff]
        %v3071 = vld [vmem:[#allocation2 + $0x32] sm:$0xff]
        %v3072 = vld [vmem:[#allocation2 + $0x3a] sm:$0xff]
        %v3073 = vld [vmem:[#allocation2 + $0x4a] sm:$0xff]
        %v3074 = vld [vmem:[#allocation2 + $0x52] sm:$0xff]
        %v3075 = vld [vmem:[#allocation2 + $0x62] sm:$0xff]
        %v3076 = vld [vmem:[#allocation2 + $0x6a] sm:$0xff]
        %v3077 = vld [vmem:[#allocation2 + $0x7a] sm:$0xff]
        %v3078 = vld [vmem:[#allocation2 + $0x82] sm:$0xff]
        %v3079 = vld [vmem:[#allocation2 + $0x92] sm:$0xff]
        %v3080 = vld [vmem:[#allocation2 + $0x9a] sm:$0xff]
        %v3081 = vld [vmem:[#allocation2 + $0xaa] sm:$0xff]
        %v3082 = vld [vmem:[#allocation2 + $0xb2] sm:$0xff]
        %v3083 = vld [vmem:[#allocation2 + $0xc2] sm:$0xff]
        %v3084 = vld [vmem:[#allocation2 + $0xca] sm:$0xff]
        %v3085 = vld [vmem:[#allocation2 + $0xda] sm:$0xff]
        %v3086 = vld [vmem:[#allocation2 + $0xe2] sm:$0xff]
        %v3087 = vld [vmem:[#allocation2 + $0xf2] sm:$0xff]
        %v3088 = vld [vmem:[#allocation2 + $0xfa] sm:$0xff]
        %v3089 = vld [vmem:[#allocation2 + $0x10a] sm:$0xff]
        %v3090 = vld [vmem:[#allocation2 + $0x112] sm:$0xff]
        %v3091 = vld [vmem:[#allocation2 + $0x122] sm:$0xff]
        %v3092 = vld [vmem:[#allocation2 + $0x12a] sm:$0xff]
        %v3093 = vld [vmem:[#allocation2 + $0x13a] sm:$0xff]
        %v3094 = vld [vmem:[#allocation2 + $0x142] sm:$0xff]
        %v3095 = vld [vmem:[#allocation2 + $0x152] sm:$0xff]
        %v3096 = vld [vmem:[#allocation2 + $0x15a] sm:$0xff]
        %v3097 = vld [vmem:[#allocation2 + $0x16a] sm:$0xff]
        %v3098 = vld [vmem:[#allocation2 + $0x172] sm:$0xff]
        %v3099 = vpack.c.bf16 %v3068, %v3067
        %v3100 = vpack.c.bf16 %v3070, %v3069
        %v3101 = vpack.c.bf16 %v3072, %v3071
        %v3102 = vpack.c.bf16 %v3074, %v3073
        %v3103 = vpack.c.bf16 %v3076, %v3075
        %v3104 = vpack.c.bf16 %v3078, %v3077
        %v3105 = vpack.c.bf16 %v3080, %v3079
        %v3106 = vpack.c.bf16 %v3082, %v3081
        %v3107 = vpack.c.bf16 %v3084, %v3083
        %v3108 = vpack.c.bf16 %v3086, %v3085
        %v3109 = vpack.c.bf16 %v3088, %v3087
        %v3110 = vpack.c.bf16 %v3090, %v3089
        %v3111 = vpack.c.bf16 %v3092, %v3091
        %v3112 = vpack.c.bf16 %v3094, %v3093
        %v3113 = vpack.c.bf16 %v3096, %v3095
        %v3114 = vpack.c.bf16 %v3098, %v3097
        %s3115 = scalar_lea.vmem %s3, 64
        %v3116 = vld [vmem:[%s3115] sm:$0xf]
        %v3117 = vld [vmem:[%s3115 + $0x4] sm:$0xf]
        %v3118 = vld [vmem:[%s3115 + $0x8] sm:$0xf]
        %v3119 = vld [vmem:[%s3115 + $0xc] sm:$0xf]
        %v3120 = vld [vmem:[%s3115 + $0x10] sm:$0xf]
        %v3121 = vld [vmem:[%s3115 + $0x14] sm:$0xf]
        %v3122 = vld [vmem:[%s3115 + $0x18] sm:$0xf]
        %v3123 = vld [vmem:[%s3115 + $0x1c] sm:$0xf]
        %v3132 = vunpack.c.l.b16 %v3116
        %v3133 = vunpack.c.l.b16 %v3117
        %v3134 = vunpack.c.l.b16 %v3118
        %v3135 = vunpack.c.l.b16 %v3119
        %v3136 = vunpack.c.l.b16 %v3120
        %v3137 = vunpack.c.l.b16 %v3121
        %v3138 = vunpack.c.l.b16 %v3122
        %v3139 = vunpack.c.l.b16 %v3123
        %v3140 = vpack.c.b16 %v3133, %v3132
        %v3141 = vpack.c.b16 %v3135, %v3134
        %v3142 = vpack.c.b16 %v3137, %v3136
        %v3143 = vpack.c.b16 %v3139, %v3138
        %v3149 = vsel %vm224, %v3099, 0
        %v3152 = vsel %vm224, %v3100, 0
        %v3155 = vsel %vm224, %v3101, 0
        %v3158 = vsel %vm224, %v3102, 0
        %v3161 = vsel %vm224, %v3103, 0
        %v3164 = vsel %vm224, %v3104, 0
        %v3167 = vsel %vm224, %v3105, 0
        %v3170 = vsel %vm224, %v3106, 0
        %v3173 = vsel %vm224, %v3107, 0
        %v3176 = vsel %vm224, %v3108, 0
        %v3179 = vsel %vm224, %v3109, 0
        %v3182 = vsel %vm224, %v3110, 0
        %v3185 = vsel %vm224, %v3111, 0
        %v3188 = vsel %vm224, %v3112, 0
        %v3191 = vsel %vm224, %v3113, 0
        %v3194 = vsel %vm224, %v3114, 0
        %3196 = vmatpush.bf16.msra.mxu0 0
        %3197 = vmatpush.bf16.msra.mxu0 0
        %3198 = vmatpush.bf16.msra.mxu0 0
        %3199 = vmatpush.bf16.msra.mxu0 0
        %3200 = vmatpush.bf16.msra.mxu0 %v3143
        %3201 = vmatpush.bf16.msra.mxu0 %v3142
        %3202 = vmatpush.bf16.msra.mxu0 %v3141
        %3203 = vmatpush.bf16.msra.mxu0 %v3140
        %3204 = vmatmul.bf16.gmra.mxu0 %v3149
        %v3205 = vpop.f32.mrf.mxu0
        %v3206 = vadd.f32 0.0, %v3205
        %v3207 = vpop.f32.mrf.mxu0
        %v3208 = vadd.f32 0.0, %v3207
        %3209 = vmatmul.bf16.gmra.mxu0 %v3152
        %v3210 = vpop.f32.mrf.mxu0
        %v3211 = vadd.f32 0.0, %v3210
        %v3212 = vpop.f32.mrf.mxu0
        %v3213 = vadd.f32 0.0, %v3212
        %3214 = vmatmul.bf16.gmra.mxu0 %v3155
        %v3215 = vpop.f32.mrf.mxu0
        %v3216 = vadd.f32 0.0, %v3215
        %v3217 = vpop.f32.mrf.mxu0
        %v3218 = vadd.f32 0.0, %v3217
        %3219 = vmatmul.bf16.gmra.mxu0 %v3158
        %v3220 = vpop.f32.mrf.mxu0
        %v3221 = vadd.f32 0.0, %v3220
        %v3222 = vpop.f32.mrf.mxu0
        %v3223 = vadd.f32 0.0, %v3222
        %3224 = vmatmul.bf16.gmra.mxu0 %v3161
        %v3225 = vpop.f32.mrf.mxu0
        %v3226 = vadd.f32 0.0, %v3225
        %v3227 = vpop.f32.mrf.mxu0
        %v3228 = vadd.f32 0.0, %v3227
        %3229 = vmatmul.bf16.gmra.mxu0 %v3164
        %v3230 = vpop.f32.mrf.mxu0
        %v3231 = vadd.f32 0.0, %v3230
        %v3232 = vpop.f32.mrf.mxu0
        %v3233 = vadd.f32 0.0, %v3232
        %3234 = vmatmul.bf16.gmra.mxu0 %v3167
        %v3235 = vpop.f32.mrf.mxu0
        %v3236 = vadd.f32 0.0, %v3235
        %v3237 = vpop.f32.mrf.mxu0
        %v3238 = vadd.f32 0.0, %v3237
        %3239 = vmatmul.bf16.gmra.mxu0 %v3170
        %v3240 = vpop.f32.mrf.mxu0
        %v3241 = vadd.f32 0.0, %v3240
        %v3242 = vpop.f32.mrf.mxu0
        %v3243 = vadd.f32 0.0, %v3242
        %3244 = vmatmul.bf16.gmra.mxu0 %v3173
        %v3245 = vpop.f32.mrf.mxu0
        %v3246 = vadd.f32 0.0, %v3245
        %v3247 = vpop.f32.mrf.mxu0
        %v3248 = vadd.f32 0.0, %v3247
        %3249 = vmatmul.bf16.gmra.mxu0 %v3176
        %v3250 = vpop.f32.mrf.mxu0
        %v3251 = vadd.f32 0.0, %v3250
        %v3252 = vpop.f32.mrf.mxu0
        %v3253 = vadd.f32 0.0, %v3252
        %3254 = vmatmul.bf16.gmra.mxu0 %v3179
        %v3255 = vpop.f32.mrf.mxu0
        %v3256 = vadd.f32 0.0, %v3255
        %v3257 = vpop.f32.mrf.mxu0
        %v3258 = vadd.f32 0.0, %v3257
        %3259 = vmatmul.bf16.gmra.mxu0 %v3182
        %v3260 = vpop.f32.mrf.mxu0
        %v3261 = vadd.f32 0.0, %v3260
        %v3262 = vpop.f32.mrf.mxu0
        %v3263 = vadd.f32 0.0, %v3262
        %3264 = vmatmul.bf16.gmra.mxu0 %v3185
        %v3265 = vpop.f32.mrf.mxu0
        %v3266 = vadd.f32 0.0, %v3265
        %v3267 = vpop.f32.mrf.mxu0
        %v3268 = vadd.f32 0.0, %v3267
        %3269 = vmatmul.bf16.gmra.mxu0 %v3188
        %v3270 = vpop.f32.mrf.mxu0
        %v3271 = vadd.f32 0.0, %v3270
        %v3272 = vpop.f32.mrf.mxu0
        %v3273 = vadd.f32 0.0, %v3272
        %3274 = vmatmul.bf16.gmra.mxu0 %v3191
        %v3275 = vpop.f32.mrf.mxu0
        %v3276 = vadd.f32 0.0, %v3275
        %v3277 = vpop.f32.mrf.mxu0
        %v3278 = vadd.f32 0.0, %v3277
        %3279 = vmatmul.bf16.gmra.mxu0 %v3194
        %v3280 = vpop.f32.mrf.mxu0
        %v3281 = vadd.f32 0.0, %v3280
        %v3282 = vpop.f32.mrf.mxu0
        %v3283 = vadd.f32 0.0, %v3282
        %3284 = vdwg.mxu0
        %v3285 = vadd.f32 %v2988, %v3206
        %v3286 = vadd.f32 %v2990, %v3208
        %v3287 = vadd.f32 %v2993, %v3211
        %v3288 = vadd.f32 %v2995, %v3213
        %v3289 = vadd.f32 %v2998, %v3216
        %v3290 = vadd.f32 %v3000, %v3218
        %v3291 = vadd.f32 %v3003, %v3221
        %v3292 = vadd.f32 %v3005, %v3223
        %v3293 = vadd.f32 %v3008, %v3226
        %v3294 = vadd.f32 %v3010, %v3228
        %v3295 = vadd.f32 %v3013, %v3231
        %v3296 = vadd.f32 %v3015, %v3233
        %v3297 = vadd.f32 %v3018, %v3236
        %v3298 = vadd.f32 %v3020, %v3238
        %v3299 = vadd.f32 %v3023, %v3241
        %v3300 = vadd.f32 %v3025, %v3243
        %v3301 = vadd.f32 %v3028, %v3246
        %v3302 = vadd.f32 %v3030, %v3248
        %v3303 = vadd.f32 %v3033, %v3251
        %v3304 = vadd.f32 %v3035, %v3253
        %v3305 = vadd.f32 %v3038, %v3256
        %v3306 = vadd.f32 %v3040, %v3258
        %v3307 = vadd.f32 %v3043, %v3261
        %v3308 = vadd.f32 %v3045, %v3263
        %v3309 = vadd.f32 %v3048, %v3266
        %v3310 = vadd.f32 %v3050, %v3268
        %v3311 = vadd.f32 %v3053, %v3271
        %v3312 = vadd.f32 %v3055, %v3273
        %v3313 = vadd.f32 %v3058, %v3276
        %v3314 = vadd.f32 %v3060, %v3278
        %v3315 = vadd.f32 %v3063, %v3281
        %v3316 = vadd.f32 %v3065, %v3283
        %v3317 = vld [vmem:[%s312] sm:$0xff]
        %v3318 = vld [vmem:[%s312 + $0x8] sm:$0xff]
        %v3319 = vld [vmem:[%s312 + $0x18] sm:$0xff]
        %v3320 = vld [vmem:[%s312 + $0x20] sm:$0xff]
        %v3321 = vld [vmem:[%s312 + $0x30] sm:$0xff]
        %v3322 = vld [vmem:[%s312 + $0x38] sm:$0xff]
        %v3323 = vld [vmem:[%s312 + $0x48] sm:$0xff]
        %v3324 = vld [vmem:[%s312 + $0x50] sm:$0xff]
        %v3325 = vld [vmem:[%s312 + $0x60] sm:$0xff]
        %v3326 = vld [vmem:[%s312 + $0x68] sm:$0xff]
        %v3327 = vld [vmem:[%s312 + $0x78] sm:$0xff]
        %v3328 = vld [vmem:[%s312 + $0x80] sm:$0xff]
        %v3329 = vld [vmem:[%s312 + $0x90] sm:$0xff]
        %v3330 = vld [vmem:[%s312 + $0x98] sm:$0xff]
        %v3331 = vld [vmem:[%s312 + $0xa8] sm:$0xff]
        %v3332 = vld [vmem:[%s312 + $0xb0] sm:$0xff]
        %v3333 = vld [vmem:[%s312 + $0xc0] sm:$0xff]
        %v3334 = vld [vmem:[%s312 + $0xc8] sm:$0xff]
        %v3335 = vld [vmem:[%s312 + $0xd8] sm:$0xff]
        %v3336 = vld [vmem:[%s312 + $0xe0] sm:$0xff]
        %v3337 = vld [vmem:[%s312 + $0xf0] sm:$0xff]
        %v3338 = vld [vmem:[%s312 + $0xf8] sm:$0xff]
        %v3339 = vld [vmem:[%s312 + $0x108] sm:$0xff]
        %v3340 = vld [vmem:[%s312 + $0x110] sm:$0xff]
        %v3341 = vld [vmem:[%s312 + $0x120] sm:$0xff]
        %v3342 = vld [vmem:[%s312 + $0x128] sm:$0xff]
        %v3343 = vld [vmem:[%s312 + $0x138] sm:$0xff]
        %v3344 = vld [vmem:[%s312 + $0x140] sm:$0xff]
        %v3345 = vld [vmem:[%s312 + $0x150] sm:$0xff]
        %v3346 = vld [vmem:[%s312 + $0x158] sm:$0xff]
        %v3347 = vld [vmem:[%s312 + $0x168] sm:$0xff]
        %v3348 = vld [vmem:[%s312 + $0x170] sm:$0xff]
        %v3349 = vpack.c.bf16 %v3318, %v3317
        %v3350 = vpack.c.bf16 %v3320, %v3319
        %v3351 = vpack.c.bf16 %v3322, %v3321
        %v3352 = vpack.c.bf16 %v3324, %v3323
        %v3353 = vpack.c.bf16 %v3326, %v3325
        %v3354 = vpack.c.bf16 %v3328, %v3327
        %v3355 = vpack.c.bf16 %v3330, %v3329
        %v3356 = vpack.c.bf16 %v3332, %v3331
        %v3357 = vpack.c.bf16 %v3334, %v3333
        %v3358 = vpack.c.bf16 %v3336, %v3335
        %v3359 = vpack.c.bf16 %v3338, %v3337
        %v3360 = vpack.c.bf16 %v3340, %v3339
        %v3361 = vpack.c.bf16 %v3342, %v3341
        %v3362 = vpack.c.bf16 %v3344, %v3343
        %v3363 = vpack.c.bf16 %v3346, %v3345
        %v3364 = vpack.c.bf16 %v3348, %v3347
        %s3365 = scalar_lea.vmem %s3, 96
        %v3366 = vld [vmem:[%s3365] sm:$0xf]
        %v3367 = vld [vmem:[%s3365 + $0x4] sm:$0xf]
        %v3368 = vld [vmem:[%s3365 + $0x8] sm:$0xf]
        %v3369 = vld [vmem:[%s3365 + $0xc] sm:$0xf]
        %v3370 = vld [vmem:[%s3365 + $0x10] sm:$0xf]
        %v3371 = vld [vmem:[%s3365 + $0x14] sm:$0xf]
        %v3372 = vld [vmem:[%s3365 + $0x18] sm:$0xf]
        %v3373 = vld [vmem:[%s3365 + $0x1c] sm:$0xf]
        %v3382 = vunpack.c.l.b16 %v3366
        %v3383 = vunpack.c.l.b16 %v3367
        %v3384 = vunpack.c.l.b16 %v3368
        %v3385 = vunpack.c.l.b16 %v3369
        %v3386 = vunpack.c.l.b16 %v3370
        %v3387 = vunpack.c.l.b16 %v3371
        %v3388 = vunpack.c.l.b16 %v3372
        %v3389 = vunpack.c.l.b16 %v3373
        %v3390 = vpack.c.b16 %v3383, %v3382
        %v3391 = vpack.c.b16 %v3385, %v3384
        %v3392 = vpack.c.b16 %v3387, %v3386
        %v3393 = vpack.c.b16 %v3389, %v3388
        %v3399 = vsel %vm224, %v3349, 0
        %v3402 = vsel %vm224, %v3350, 0
        %v3405 = vsel %vm224, %v3351, 0
        %v3408 = vsel %vm224, %v3352, 0
        %v3411 = vsel %vm224, %v3353, 0
        %v3414 = vsel %vm224, %v3354, 0
        %v3417 = vsel %vm224, %v3355, 0
        %v3420 = vsel %vm224, %v3356, 0
        %v3423 = vsel %vm224, %v3357, 0
        %v3426 = vsel %vm224, %v3358, 0
        %v3429 = vsel %vm224, %v3359, 0
        %v3432 = vsel %vm224, %v3360, 0
        %v3435 = vsel %vm224, %v3361, 0
        %v3438 = vsel %vm224, %v3362, 0
        %v3441 = vsel %vm224, %v3363, 0
        %v3444 = vsel %vm224, %v3364, 0
        %3446 = vmatpush.bf16.msra.mxu0 0
        %3447 = vmatpush.bf16.msra.mxu0 0
        %3448 = vmatpush.bf16.msra.mxu0 0
        %3449 = vmatpush.bf16.msra.mxu0 0
        %3450 = vmatpush.bf16.msra.mxu0 %v3393
        %3451 = vmatpush.bf16.msra.mxu0 %v3392
        %3452 = vmatpush.bf16.msra.mxu0 %v3391
        %3453 = vmatpush.bf16.msra.mxu0 %v3390
        %3454 = vmatmul.bf16.gmra.mxu0 %v3399
        %v3455 = vpop.f32.mrf.mxu0
        %v3456 = vadd.f32 0.0, %v3455
        %v3457 = vpop.f32.mrf.mxu0
        %v3458 = vadd.f32 0.0, %v3457
        %3459 = vmatmul.bf16.gmra.mxu0 %v3402
        %v3460 = vpop.f32.mrf.mxu0
        %v3461 = vadd.f32 0.0, %v3460
        %v3462 = vpop.f32.mrf.mxu0
        %v3463 = vadd.f32 0.0, %v3462
        %3464 = vmatmul.bf16.gmra.mxu0 %v3405
        %v3465 = vpop.f32.mrf.mxu0
        %v3466 = vadd.f32 0.0, %v3465
        %v3467 = vpop.f32.mrf.mxu0
        %v3468 = vadd.f32 0.0, %v3467
        %3469 = vmatmul.bf16.gmra.mxu0 %v3408
        %v3470 = vpop.f32.mrf.mxu0
        %v3471 = vadd.f32 0.0, %v3470
        %v3472 = vpop.f32.mrf.mxu0
        %v3473 = vadd.f32 0.0, %v3472
        %3474 = vmatmul.bf16.gmra.mxu0 %v3411
        %v3475 = vpop.f32.mrf.mxu0
        %v3476 = vadd.f32 0.0, %v3475
        %v3477 = vpop.f32.mrf.mxu0
        %v3478 = vadd.f32 0.0, %v3477
        %3479 = vmatmul.bf16.gmra.mxu0 %v3414
        %v3480 = vpop.f32.mrf.mxu0
        %v3481 = vadd.f32 0.0, %v3480
        %v3482 = vpop.f32.mrf.mxu0
        %v3483 = vadd.f32 0.0, %v3482
        %3484 = vmatmul.bf16.gmra.mxu0 %v3417
        %v3485 = vpop.f32.mrf.mxu0
        %v3486 = vadd.f32 0.0, %v3485
        %v3487 = vpop.f32.mrf.mxu0
        %v3488 = vadd.f32 0.0, %v3487
        %3489 = vmatmul.bf16.gmra.mxu0 %v3420
        %v3490 = vpop.f32.mrf.mxu0
        %v3491 = vadd.f32 0.0, %v3490
        %v3492 = vpop.f32.mrf.mxu0
        %v3493 = vadd.f32 0.0, %v3492
        %3494 = vmatmul.bf16.gmra.mxu0 %v3423
        %v3495 = vpop.f32.mrf.mxu0
        %v3496 = vadd.f32 0.0, %v3495
        %v3497 = vpop.f32.mrf.mxu0
        %v3498 = vadd.f32 0.0, %v3497
        %3499 = vmatmul.bf16.gmra.mxu0 %v3426
        %v3500 = vpop.f32.mrf.mxu0
        %v3501 = vadd.f32 0.0, %v3500
        %v3502 = vpop.f32.mrf.mxu0
        %v3503 = vadd.f32 0.0, %v3502
        %3504 = vmatmul.bf16.gmra.mxu0 %v3429
        %v3505 = vpop.f32.mrf.mxu0
        %v3506 = vadd.f32 0.0, %v3505
        %v3507 = vpop.f32.mrf.mxu0
        %v3508 = vadd.f32 0.0, %v3507
        %3509 = vmatmul.bf16.gmra.mxu0 %v3432
        %v3510 = vpop.f32.mrf.mxu0
        %v3511 = vadd.f32 0.0, %v3510
        %v3512 = vpop.f32.mrf.mxu0
        %v3513 = vadd.f32 0.0, %v3512
        %3514 = vmatmul.bf16.gmra.mxu0 %v3435
        %v3515 = vpop.f32.mrf.mxu0
        %v3516 = vadd.f32 0.0, %v3515
        %v3517 = vpop.f32.mrf.mxu0
        %v3518 = vadd.f32 0.0, %v3517
        %3519 = vmatmul.bf16.gmra.mxu0 %v3438
        %v3520 = vpop.f32.mrf.mxu0
        %v3521 = vadd.f32 0.0, %v3520
        %v3522 = vpop.f32.mrf.mxu0
        %v3523 = vadd.f32 0.0, %v3522
        %3524 = vmatmul.bf16.gmra.mxu0 %v3441
        %v3525 = vpop.f32.mrf.mxu0
        %v3526 = vadd.f32 0.0, %v3525
        %v3527 = vpop.f32.mrf.mxu0
        %v3528 = vadd.f32 0.0, %v3527
        %3529 = vmatmul.bf16.gmra.mxu0 %v3444
        %v3530 = vpop.f32.mrf.mxu0
        %v3531 = vadd.f32 0.0, %v3530
        %v3532 = vpop.f32.mrf.mxu0
        %v3533 = vadd.f32 0.0, %v3532
        %3534 = vdwg.mxu0
        %v3535 = vadd.f32 %v3285, %v3456
        %v3536 = vadd.f32 %v3286, %v3458
        %v3537 = vadd.f32 %v3287, %v3461
        %v3538 = vadd.f32 %v3288, %v3463
        %v3539 = vadd.f32 %v3289, %v3466
        %v3540 = vadd.f32 %v3290, %v3468
        %v3541 = vadd.f32 %v3291, %v3471
        %v3542 = vadd.f32 %v3292, %v3473
        %v3543 = vadd.f32 %v3293, %v3476
        %v3544 = vadd.f32 %v3294, %v3478
        %v3545 = vadd.f32 %v3295, %v3481
        %v3546 = vadd.f32 %v3296, %v3483
        %v3547 = vadd.f32 %v3297, %v3486
        %v3548 = vadd.f32 %v3298, %v3488
        %v3549 = vadd.f32 %v3299, %v3491
        %v3550 = vadd.f32 %v3300, %v3493
        %v3551 = vadd.f32 %v3301, %v3496
        %v3552 = vadd.f32 %v3302, %v3498
        %v3553 = vadd.f32 %v3303, %v3501
        %v3554 = vadd.f32 %v3304, %v3503
        %v3555 = vadd.f32 %v3305, %v3506
        %v3556 = vadd.f32 %v3306, %v3508
        %v3557 = vadd.f32 %v3307, %v3511
        %v3558 = vadd.f32 %v3308, %v3513
        %v3559 = vadd.f32 %v3309, %v3516
        %v3560 = vadd.f32 %v3310, %v3518
        %v3561 = vadd.f32 %v3311, %v3521
        %v3562 = vadd.f32 %v3312, %v3523
        %v3563 = vadd.f32 %v3313, %v3526
        %v3564 = vadd.f32 %v3314, %v3528
        %v3565 = vadd.f32 %v3315, %v3531
        %v3566 = vadd.f32 %v3316, %v3533
        %v3567 = vld [vmem:[%s312 + $0x1] sm:$0xff]
        %v3568 = vld [vmem:[%s312 + $0x9] sm:$0xff]
        %v3569 = vld [vmem:[%s312 + $0x19] sm:$0xff]
        %v3570 = vld [vmem:[%s312 + $0x21] sm:$0xff]
        %v3571 = vld [vmem:[%s312 + $0x31] sm:$0xff]
        %v3572 = vld [vmem:[%s312 + $0x39] sm:$0xff]
        %v3573 = vld [vmem:[%s312 + $0x49] sm:$0xff]
        %v3574 = vld [vmem:[%s312 + $0x51] sm:$0xff]
        %v3575 = vld [vmem:[%s312 + $0x61] sm:$0xff]
        %v3576 = vld [vmem:[%s312 + $0x69] sm:$0xff]
        %v3577 = vld [vmem:[%s312 + $0x79] sm:$0xff]
        %v3578 = vld [vmem:[%s312 + $0x81] sm:$0xff]
        %v3579 = vld [vmem:[%s312 + $0x91] sm:$0xff]
        %v3580 = vld [vmem:[%s312 + $0x99] sm:$0xff]
        %v3581 = vld [vmem:[%s312 + $0xa9] sm:$0xff]
        %v3582 = vld [vmem:[%s312 + $0xb1] sm:$0xff]
        %v3583 = vld [vmem:[%s312 + $0xc1] sm:$0xff]
        %v3584 = vld [vmem:[%s312 + $0xc9] sm:$0xff]
        %v3585 = vld [vmem:[%s312 + $0xd9] sm:$0xff]
        %v3586 = vld [vmem:[%s312 + $0xe1] sm:$0xff]
        %v3587 = vld [vmem:[%s312 + $0xf1] sm:$0xff]
        %v3588 = vld [vmem:[%s312 + $0xf9] sm:$0xff]
        %v3589 = vld [vmem:[%s312 + $0x109] sm:$0xff]
        %v3590 = vld [vmem:[%s312 + $0x111] sm:$0xff]
        %v3591 = vld [vmem:[%s312 + $0x121] sm:$0xff]
        %v3592 = vld [vmem:[%s312 + $0x129] sm:$0xff]
        %v3593 = vld [vmem:[%s312 + $0x139] sm:$0xff]
        %v3594 = vld [vmem:[%s312 + $0x141] sm:$0xff]
        %v3595 = vld [vmem:[%s312 + $0x151] sm:$0xff]
        %v3596 = vld [vmem:[%s312 + $0x159] sm:$0xff]
        %v3597 = vld [vmem:[%s312 + $0x169] sm:$0xff]
        %v3598 = vld [vmem:[%s312 + $0x171] sm:$0xff]
        %v3599 = vpack.c.bf16 %v3568, %v3567
        %v3600 = vpack.c.bf16 %v3570, %v3569
        %v3601 = vpack.c.bf16 %v3572, %v3571
        %v3602 = vpack.c.bf16 %v3574, %v3573
        %v3603 = vpack.c.bf16 %v3576, %v3575
        %v3604 = vpack.c.bf16 %v3578, %v3577
        %v3605 = vpack.c.bf16 %v3580, %v3579
        %v3606 = vpack.c.bf16 %v3582, %v3581
        %v3607 = vpack.c.bf16 %v3584, %v3583
        %v3608 = vpack.c.bf16 %v3586, %v3585
        %v3609 = vpack.c.bf16 %v3588, %v3587
        %v3610 = vpack.c.bf16 %v3590, %v3589
        %v3611 = vpack.c.bf16 %v3592, %v3591
        %v3612 = vpack.c.bf16 %v3594, %v3593
        %v3613 = vpack.c.bf16 %v3596, %v3595
        %v3614 = vpack.c.bf16 %v3598, %v3597
        %s3615 = scalar_lea.vmem %s3, 128
        %v3616 = vld [vmem:[%s3615] sm:$0xf]
        %v3617 = vld [vmem:[%s3615 + $0x4] sm:$0xf]
        %v3618 = vld [vmem:[%s3615 + $0x8] sm:$0xf]
        %v3619 = vld [vmem:[%s3615 + $0xc] sm:$0xf]
        %v3620 = vld [vmem:[%s3615 + $0x10] sm:$0xf]
        %v3621 = vld [vmem:[%s3615 + $0x14] sm:$0xf]
        %v3622 = vld [vmem:[%s3615 + $0x18] sm:$0xf]
        %v3623 = vld [vmem:[%s3615 + $0x1c] sm:$0xf]
        %v3632 = vunpack.c.l.b16 %v3616
        %v3633 = vunpack.c.l.b16 %v3617
        %v3634 = vunpack.c.l.b16 %v3618
        %v3635 = vunpack.c.l.b16 %v3619
        %v3636 = vunpack.c.l.b16 %v3620
        %v3637 = vunpack.c.l.b16 %v3621
        %v3638 = vunpack.c.l.b16 %v3622
        %v3639 = vunpack.c.l.b16 %v3623
        %v3640 = vpack.c.b16 %v3633, %v3632
        %v3641 = vpack.c.b16 %v3635, %v3634
        %v3642 = vpack.c.b16 %v3637, %v3636
        %v3643 = vpack.c.b16 %v3639, %v3638
        %v3649 = vsel %vm224, %v3599, 0
        %v3652 = vsel %vm224, %v3600, 0
        %v3655 = vsel %vm224, %v3601, 0
        %v3658 = vsel %vm224, %v3602, 0
        %v3661 = vsel %vm224, %v3603, 0
        %v3664 = vsel %vm224, %v3604, 0
        %v3667 = vsel %vm224, %v3605, 0
        %v3670 = vsel %vm224, %v3606, 0
        %v3673 = vsel %vm224, %v3607, 0
        %v3676 = vsel %vm224, %v3608, 0
        %v3679 = vsel %vm224, %v3609, 0
        %v3682 = vsel %vm224, %v3610, 0
        %v3685 = vsel %vm224, %v3611, 0
        %v3688 = vsel %vm224, %v3612, 0
        %v3691 = vsel %vm224, %v3613, 0
        %v3694 = vsel %vm224, %v3614, 0
        %3696 = vmatpush.bf16.msra.mxu0 0
        %3697 = vmatpush.bf16.msra.mxu0 0
        %3698 = vmatpush.bf16.msra.mxu0 0
        %3699 = vmatpush.bf16.msra.mxu0 0
        %3700 = vmatpush.bf16.msra.mxu0 %v3643
        %3701 = vmatpush.bf16.msra.mxu0 %v3642
        %3702 = vmatpush.bf16.msra.mxu0 %v3641
        %3703 = vmatpush.bf16.msra.mxu0 %v3640
        %3704 = vmatmul.bf16.gmra.mxu0 %v3649
        %v3705 = vpop.f32.mrf.mxu0
        %v3706 = vadd.f32 0.0, %v3705
        %v3707 = vpop.f32.mrf.mxu0
        %v3708 = vadd.f32 0.0, %v3707
        %3709 = vmatmul.bf16.gmra.mxu0 %v3652
        %v3710 = vpop.f32.mrf.mxu0
        %v3711 = vadd.f32 0.0, %v3710
        %v3712 = vpop.f32.mrf.mxu0
        %v3713 = vadd.f32 0.0, %v3712
        %3714 = vmatmul.bf16.gmra.mxu0 %v3655
        %v3715 = vpop.f32.mrf.mxu0
        %v3716 = vadd.f32 0.0, %v3715
        %v3717 = vpop.f32.mrf.mxu0
        %v3718 = vadd.f32 0.0, %v3717
        %3719 = vmatmul.bf16.gmra.mxu0 %v3658
        %v3720 = vpop.f32.mrf.mxu0
        %v3721 = vadd.f32 0.0, %v3720
        %v3722 = vpop.f32.mrf.mxu0
        %v3723 = vadd.f32 0.0, %v3722
        %3724 = vmatmul.bf16.gmra.mxu0 %v3661
        %v3725 = vpop.f32.mrf.mxu0
        %v3726 = vadd.f32 0.0, %v3725
        %v3727 = vpop.f32.mrf.mxu0
        %v3728 = vadd.f32 0.0, %v3727
        %3729 = vmatmul.bf16.gmra.mxu0 %v3664
        %v3730 = vpop.f32.mrf.mxu0
        %v3731 = vadd.f32 0.0, %v3730
        %v3732 = vpop.f32.mrf.mxu0
        %v3733 = vadd.f32 0.0, %v3732
        %3734 = vmatmul.bf16.gmra.mxu0 %v3667
        %v3735 = vpop.f32.mrf.mxu0
        %v3736 = vadd.f32 0.0, %v3735
        %v3737 = vpop.f32.mrf.mxu0
        %v3738 = vadd.f32 0.0, %v3737
        %3739 = vmatmul.bf16.gmra.mxu0 %v3670
        %v3740 = vpop.f32.mrf.mxu0
        %v3741 = vadd.f32 0.0, %v3740
        %v3742 = vpop.f32.mrf.mxu0
        %v3743 = vadd.f32 0.0, %v3742
        %3744 = vmatmul.bf16.gmra.mxu0 %v3673
        %v3745 = vpop.f32.mrf.mxu0
        %v3746 = vadd.f32 0.0, %v3745
        %v3747 = vpop.f32.mrf.mxu0
        %v3748 = vadd.f32 0.0, %v3747
        %3749 = vmatmul.bf16.gmra.mxu0 %v3676
        %v3750 = vpop.f32.mrf.mxu0
        %v3751 = vadd.f32 0.0, %v3750
        %v3752 = vpop.f32.mrf.mxu0
        %v3753 = vadd.f32 0.0, %v3752
        %3754 = vmatmul.bf16.gmra.mxu0 %v3679
        %v3755 = vpop.f32.mrf.mxu0
        %v3756 = vadd.f32 0.0, %v3755
        %v3757 = vpop.f32.mrf.mxu0
        %v3758 = vadd.f32 0.0, %v3757
        %3759 = vmatmul.bf16.gmra.mxu0 %v3682
        %v3760 = vpop.f32.mrf.mxu0
        %v3761 = vadd.f32 0.0, %v3760
        %v3762 = vpop.f32.mrf.mxu0
        %v3763 = vadd.f32 0.0, %v3762
        %3764 = vmatmul.bf16.gmra.mxu0 %v3685
        %v3765 = vpop.f32.mrf.mxu0
        %v3766 = vadd.f32 0.0, %v3765
        %v3767 = vpop.f32.mrf.mxu0
        %v3768 = vadd.f32 0.0, %v3767
        %3769 = vmatmul.bf16.gmra.mxu0 %v3688
        %v3770 = vpop.f32.mrf.mxu0
        %v3771 = vadd.f32 0.0, %v3770
        %v3772 = vpop.f32.mrf.mxu0
        %v3773 = vadd.f32 0.0, %v3772
        %3774 = vmatmul.bf16.gmra.mxu0 %v3691
        %v3775 = vpop.f32.mrf.mxu0
        %v3776 = vadd.f32 0.0, %v3775
        %v3777 = vpop.f32.mrf.mxu0
        %v3778 = vadd.f32 0.0, %v3777
        %3779 = vmatmul.bf16.gmra.mxu0 %v3694
        %v3780 = vpop.f32.mrf.mxu0
        %v3781 = vadd.f32 0.0, %v3780
        %v3782 = vpop.f32.mrf.mxu0
        %v3783 = vadd.f32 0.0, %v3782
        %3784 = vdwg.mxu0
        %v3785 = vadd.f32 %v3535, %v3706
        %v3786 = vadd.f32 %v3536, %v3708
        %v3787 = vadd.f32 %v3537, %v3711
        %v3788 = vadd.f32 %v3538, %v3713
        %v3789 = vadd.f32 %v3539, %v3716
        %v3790 = vadd.f32 %v3540, %v3718
        %v3791 = vadd.f32 %v3541, %v3721
        %v3792 = vadd.f32 %v3542, %v3723
        %v3793 = vadd.f32 %v3543, %v3726
        %v3794 = vadd.f32 %v3544, %v3728
        %v3795 = vadd.f32 %v3545, %v3731
        %v3796 = vadd.f32 %v3546, %v3733
        %v3797 = vadd.f32 %v3547, %v3736
        %v3798 = vadd.f32 %v3548, %v3738
        %v3799 = vadd.f32 %v3549, %v3741
        %v3800 = vadd.f32 %v3550, %v3743
        %v3801 = vadd.f32 %v3551, %v3746
        %v3802 = vadd.f32 %v3552, %v3748
        %v3803 = vadd.f32 %v3553, %v3751
        %v3804 = vadd.f32 %v3554, %v3753
        %v3805 = vadd.f32 %v3555, %v3756
        %v3806 = vadd.f32 %v3556, %v3758
        %v3807 = vadd.f32 %v3557, %v3761
        %v3808 = vadd.f32 %v3558, %v3763
        %v3809 = vadd.f32 %v3559, %v3766
        %v3810 = vadd.f32 %v3560, %v3768
        %v3811 = vadd.f32 %v3561, %v3771
        %v3812 = vadd.f32 %v3562, %v3773
        %v3813 = vadd.f32 %v3563, %v3776
        %v3814 = vadd.f32 %v3564, %v3778
        %v3815 = vadd.f32 %v3565, %v3781
        %v3816 = vadd.f32 %v3566, %v3783
        %v3817 = vld [vmem:[%s312 + $0x2] sm:$0xff]
        %v3818 = vld [vmem:[%s312 + $0xa] sm:$0xff]
        %v3819 = vld [vmem:[%s312 + $0x1a] sm:$0xff]
        %v3820 = vld [vmem:[%s312 + $0x22] sm:$0xff]
        %v3821 = vld [vmem:[%s312 + $0x32] sm:$0xff]
        %v3822 = vld [vmem:[%s312 + $0x3a] sm:$0xff]
        %v3823 = vld [vmem:[%s312 + $0x4a] sm:$0xff]
        %v3824 = vld [vmem:[%s312 + $0x52] sm:$0xff]
        %v3825 = vld [vmem:[%s312 + $0x62] sm:$0xff]
        %v3826 = vld [vmem:[%s312 + $0x6a] sm:$0xff]
        %v3827 = vld [vmem:[%s312 + $0x7a] sm:$0xff]
        %v3828 = vld [vmem:[%s312 + $0x82] sm:$0xff]
        %v3829 = vld [vmem:[%s312 + $0x92] sm:$0xff]
        %v3830 = vld [vmem:[%s312 + $0x9a] sm:$0xff]
        %v3831 = vld [vmem:[%s312 + $0xaa] sm:$0xff]
        %v3832 = vld [vmem:[%s312 + $0xb2] sm:$0xff]
        %v3833 = vld [vmem:[%s312 + $0xc2] sm:$0xff]
        %v3834 = vld [vmem:[%s312 + $0xca] sm:$0xff]
        %v3835 = vld [vmem:[%s312 + $0xda] sm:$0xff]
        %v3836 = vld [vmem:[%s312 + $0xe2] sm:$0xff]
        %v3837 = vld [vmem:[%s312 + $0xf2] sm:$0xff]
        %v3838 = vld [vmem:[%s312 + $0xfa] sm:$0xff]
        %v3839 = vld [vmem:[%s312 + $0x10a] sm:$0xff]
        %v3840 = vld [vmem:[%s312 + $0x112] sm:$0xff]
        %v3841 = vld [vmem:[%s312 + $0x122] sm:$0xff]
        %v3842 = vld [vmem:[%s312 + $0x12a] sm:$0xff]
        %v3843 = vld [vmem:[%s312 + $0x13a] sm:$0xff]
        %v3844 = vld [vmem:[%s312 + $0x142] sm:$0xff]
        %v3845 = vld [vmem:[%s312 + $0x152] sm:$0xff]
        %v3846 = vld [vmem:[%s312 + $0x15a] sm:$0xff]
        %v3847 = vld [vmem:[%s312 + $0x16a] sm:$0xff]
        %v3848 = vld [vmem:[%s312 + $0x172] sm:$0xff]
        %v3849 = vpack.c.bf16 %v3818, %v3817
        %v3850 = vpack.c.bf16 %v3820, %v3819
        %v3851 = vpack.c.bf16 %v3822, %v3821
        %v3852 = vpack.c.bf16 %v3824, %v3823
        %v3853 = vpack.c.bf16 %v3826, %v3825
        %v3854 = vpack.c.bf16 %v3828, %v3827
        %v3855 = vpack.c.bf16 %v3830, %v3829
        %v3856 = vpack.c.bf16 %v3832, %v3831
        %v3857 = vpack.c.bf16 %v3834, %v3833
        %v3858 = vpack.c.bf16 %v3836, %v3835
        %v3859 = vpack.c.bf16 %v3838, %v3837
        %v3860 = vpack.c.bf16 %v3840, %v3839
        %v3861 = vpack.c.bf16 %v3842, %v3841
        %v3862 = vpack.c.bf16 %v3844, %v3843
        %v3863 = vpack.c.bf16 %v3846, %v3845
        %v3864 = vpack.c.bf16 %v3848, %v3847
        %s3865 = scalar_lea.vmem %s3, 160
        %v3866 = vld [vmem:[%s3865] sm:$0xf]
        %v3867 = vld [vmem:[%s3865 + $0x4] sm:$0xf]
        %v3868 = vld [vmem:[%s3865 + $0x8] sm:$0xf]
        %v3869 = vld [vmem:[%s3865 + $0xc] sm:$0xf]
        %v3870 = vld [vmem:[%s3865 + $0x10] sm:$0xf]
        %v3871 = vld [vmem:[%s3865 + $0x14] sm:$0xf]
        %v3872 = vld [vmem:[%s3865 + $0x18] sm:$0xf]
        %v3873 = vld [vmem:[%s3865 + $0x1c] sm:$0xf]
        %v3882 = vunpack.c.l.b16 %v3866
        %v3883 = vunpack.c.l.b16 %v3867
        %v3884 = vunpack.c.l.b16 %v3868
        %v3885 = vunpack.c.l.b16 %v3869
        %v3886 = vunpack.c.l.b16 %v3870
        %v3887 = vunpack.c.l.b16 %v3871
        %v3888 = vunpack.c.l.b16 %v3872
        %v3889 = vunpack.c.l.b16 %v3873
        %v3890 = vpack.c.b16 %v3883, %v3882
        %v3891 = vpack.c.b16 %v3885, %v3884
        %v3892 = vpack.c.b16 %v3887, %v3886
        %v3893 = vpack.c.b16 %v3889, %v3888
        %v3899 = vsel %vm224, %v3849, 0
        %v3902 = vsel %vm224, %v3850, 0
        %v3905 = vsel %vm224, %v3851, 0
        %v3908 = vsel %vm224, %v3852, 0
        %v3911 = vsel %vm224, %v3853, 0
        %v3914 = vsel %vm224, %v3854, 0
        %v3917 = vsel %vm224, %v3855, 0
        %v3920 = vsel %vm224, %v3856, 0
        %v3923 = vsel %vm224, %v3857, 0
        %v3926 = vsel %vm224, %v3858, 0
        %v3929 = vsel %vm224, %v3859, 0
        %v3932 = vsel %vm224, %v3860, 0
        %v3935 = vsel %vm224, %v3861, 0
        %v3938 = vsel %vm224, %v3862, 0
        %v3941 = vsel %vm224, %v3863, 0
        %v3944 = vsel %vm224, %v3864, 0
        %3946 = vmatpush.bf16.msra.mxu0 0
        %3947 = vmatpush.bf16.msra.mxu0 0
        %3948 = vmatpush.bf16.msra.mxu0 0
        %3949 = vmatpush.bf16.msra.mxu0 0
        %3950 = vmatpush.bf16.msra.mxu0 %v3893
        %3951 = vmatpush.bf16.msra.mxu0 %v3892
        %3952 = vmatpush.bf16.msra.mxu0 %v3891
        %3953 = vmatpush.bf16.msra.mxu0 %v3890
        %3954 = vmatmul.bf16.gmra.mxu0 %v3899
        %v3955 = vpop.f32.mrf.mxu0
        %v3956 = vadd.f32 0.0, %v3955
        %v3957 = vpop.f32.mrf.mxu0
        %v3958 = vadd.f32 0.0, %v3957
        %3959 = vmatmul.bf16.gmra.mxu0 %v3902
        %v3960 = vpop.f32.mrf.mxu0
        %v3961 = vadd.f32 0.0, %v3960
        %v3962 = vpop.f32.mrf.mxu0
        %v3963 = vadd.f32 0.0, %v3962
        %3964 = vmatmul.bf16.gmra.mxu0 %v3905
        %v3965 = vpop.f32.mrf.mxu0
        %v3966 = vadd.f32 0.0, %v3965
        %v3967 = vpop.f32.mrf.mxu0
        %v3968 = vadd.f32 0.0, %v3967
        %3969 = vmatmul.bf16.gmra.mxu0 %v3908
        %v3970 = vpop.f32.mrf.mxu0
        %v3971 = vadd.f32 0.0, %v3970
        %v3972 = vpop.f32.mrf.mxu0
        %v3973 = vadd.f32 0.0, %v3972
        %3974 = vmatmul.bf16.gmra.mxu0 %v3911
        %v3975 = vpop.f32.mrf.mxu0
        %v3976 = vadd.f32 0.0, %v3975
        %v3977 = vpop.f32.mrf.mxu0
        %v3978 = vadd.f32 0.0, %v3977
        %3979 = vmatmul.bf16.gmra.mxu0 %v3914
        %v3980 = vpop.f32.mrf.mxu0
        %v3981 = vadd.f32 0.0, %v3980
        %v3982 = vpop.f32.mrf.mxu0
        %v3983 = vadd.f32 0.0, %v3982
        %3984 = vmatmul.bf16.gmra.mxu0 %v3917
        %v3985 = vpop.f32.mrf.mxu0
        %v3986 = vadd.f32 0.0, %v3985
        %v3987 = vpop.f32.mrf.mxu0
        %v3988 = vadd.f32 0.0, %v3987
        %3989 = vmatmul.bf16.gmra.mxu0 %v3920
        %v3990 = vpop.f32.mrf.mxu0
        %v3991 = vadd.f32 0.0, %v3990
        %v3992 = vpop.f32.mrf.mxu0
        %v3993 = vadd.f32 0.0, %v3992
        %3994 = vmatmul.bf16.gmra.mxu0 %v3923
        %v3995 = vpop.f32.mrf.mxu0
        %v3996 = vadd.f32 0.0, %v3995
        %v3997 = vpop.f32.mrf.mxu0
        %v3998 = vadd.f32 0.0, %v3997
        %3999 = vmatmul.bf16.gmra.mxu0 %v3926
        %v4000 = vpop.f32.mrf.mxu0
        %v4001 = vadd.f32 0.0, %v4000
        %v4002 = vpop.f32.mrf.mxu0
        %v4003 = vadd.f32 0.0, %v4002
        %4004 = vmatmul.bf16.gmra.mxu0 %v3929
        %v4005 = vpop.f32.mrf.mxu0
        %v4006 = vadd.f32 0.0, %v4005
        %v4007 = vpop.f32.mrf.mxu0
        %v4008 = vadd.f32 0.0, %v4007
        %4009 = vmatmul.bf16.gmra.mxu0 %v3932
        %v4010 = vpop.f32.mrf.mxu0
        %v4011 = vadd.f32 0.0, %v4010
        %v4012 = vpop.f32.mrf.mxu0
        %v4013 = vadd.f32 0.0, %v4012
        %4014 = vmatmul.bf16.gmra.mxu0 %v3935
        %v4015 = vpop.f32.mrf.mxu0
        %v4016 = vadd.f32 0.0, %v4015
        %v4017 = vpop.f32.mrf.mxu0
        %v4018 = vadd.f32 0.0, %v4017
        %4019 = vmatmul.bf16.gmra.mxu0 %v3938
        %v4020 = vpop.f32.mrf.mxu0
        %v4021 = vadd.f32 0.0, %v4020
        %v4022 = vpop.f32.mrf.mxu0
        %v4023 = vadd.f32 0.0, %v4022
        %4024 = vmatmul.bf16.gmra.mxu0 %v3941
        %v4025 = vpop.f32.mrf.mxu0
        %v4026 = vadd.f32 0.0, %v4025
        %v4027 = vpop.f32.mrf.mxu0
        %v4028 = vadd.f32 0.0, %v4027
        %4029 = vmatmul.bf16.gmra.mxu0 %v3944
        %v4030 = vpop.f32.mrf.mxu0
        %v4031 = vadd.f32 0.0, %v4030
        %v4032 = vpop.f32.mrf.mxu0
        %v4033 = vadd.f32 0.0, %v4032
        %4034 = vdwg.mxu0
        %v4035 = vadd.f32 %v3785, %v3956
        %v4036 = vadd.f32 %v3786, %v3958
        %v4037 = vadd.f32 %v3787, %v3961
        %v4038 = vadd.f32 %v3788, %v3963
        %v4039 = vadd.f32 %v3789, %v3966
        %v4040 = vadd.f32 %v3790, %v3968
        %v4041 = vadd.f32 %v3791, %v3971
        %v4042 = vadd.f32 %v3792, %v3973
        %v4043 = vadd.f32 %v3793, %v3976
        %v4044 = vadd.f32 %v3794, %v3978
        %v4045 = vadd.f32 %v3795, %v3981
        %v4046 = vadd.f32 %v3796, %v3983
        %v4047 = vadd.f32 %v3797, %v3986
        %v4048 = vadd.f32 %v3798, %v3988
        %v4049 = vadd.f32 %v3799, %v3991
        %v4050 = vadd.f32 %v3800, %v3993
        %v4051 = vadd.f32 %v3801, %v3996
        %v4052 = vadd.f32 %v3802, %v3998
        %v4053 = vadd.f32 %v3803, %v4001
        %v4054 = vadd.f32 %v3804, %v4003
        %v4055 = vadd.f32 %v3805, %v4006
        %v4056 = vadd.f32 %v3806, %v4008
        %v4057 = vadd.f32 %v3807, %v4011
        %v4058 = vadd.f32 %v3808, %v4013
        %v4059 = vadd.f32 %v3809, %v4016
        %v4060 = vadd.f32 %v3810, %v4018
        %v4061 = vadd.f32 %v3811, %v4021
        %v4062 = vadd.f32 %v3812, %v4023
        %v4063 = vadd.f32 %v3813, %v4026
        %v4064 = vadd.f32 %v3814, %v4028
        %v4065 = vadd.f32 %v3815, %v4031
        %v4066 = vadd.f32 %v3816, %v4033
        %v4067 = vld [vmem:[%s1781] sm:$0xff]
        %v4068 = vld [vmem:[%s1781 + $0x8] sm:$0xff]
        %v4069 = vld [vmem:[%s1781 + $0x18] sm:$0xff]
        %v4070 = vld [vmem:[%s1781 + $0x20] sm:$0xff]
        %v4071 = vld [vmem:[%s1781 + $0x30] sm:$0xff]
        %v4072 = vld [vmem:[%s1781 + $0x38] sm:$0xff]
        %v4073 = vld [vmem:[%s1781 + $0x48] sm:$0xff]
        %v4074 = vld [vmem:[%s1781 + $0x50] sm:$0xff]
        %v4075 = vld [vmem:[%s1781 + $0x60] sm:$0xff]
        %v4076 = vld [vmem:[%s1781 + $0x68] sm:$0xff]
        %v4077 = vld [vmem:[%s1781 + $0x78] sm:$0xff]
        %v4078 = vld [vmem:[%s1781 + $0x80] sm:$0xff]
        %v4079 = vld [vmem:[%s1781 + $0x90] sm:$0xff]
        %v4080 = vld [vmem:[%s1781 + $0x98] sm:$0xff]
        %v4081 = vld [vmem:[%s1781 + $0xa8] sm:$0xff]
        %v4082 = vld [vmem:[%s1781 + $0xb0] sm:$0xff]
        %v4083 = vld [vmem:[%s1781 + $0xc0] sm:$0xff]
        %v4084 = vld [vmem:[%s1781 + $0xc8] sm:$0xff]
        %v4085 = vld [vmem:[%s1781 + $0xd8] sm:$0xff]
        %v4086 = vld [vmem:[%s1781 + $0xe0] sm:$0xff]
        %v4087 = vld [vmem:[%s1781 + $0xf0] sm:$0xff]
        %v4088 = vld [vmem:[%s1781 + $0xf8] sm:$0xff]
        %v4089 = vld [vmem:[%s1781 + $0x108] sm:$0xff]
        %v4090 = vld [vmem:[%s1781 + $0x110] sm:$0xff]
        %v4091 = vld [vmem:[%s1781 + $0x120] sm:$0xff]
        %v4092 = vld [vmem:[%s1781 + $0x128] sm:$0xff]
        %v4093 = vld [vmem:[%s1781 + $0x138] sm:$0xff]
        %v4094 = vld [vmem:[%s1781 + $0x140] sm:$0xff]
        %v4095 = vld [vmem:[%s1781 + $0x150] sm:$0xff]
        %v4096 = vld [vmem:[%s1781 + $0x158] sm:$0xff]
        %v4097 = vld [vmem:[%s1781 + $0x168] sm:$0xff]
        %v4098 = vld [vmem:[%s1781 + $0x170] sm:$0xff]
        %v4099 = vpack.c.bf16 %v4068, %v4067
        %v4100 = vpack.c.bf16 %v4070, %v4069
        %v4101 = vpack.c.bf16 %v4072, %v4071
        %v4102 = vpack.c.bf16 %v4074, %v4073
        %v4103 = vpack.c.bf16 %v4076, %v4075
        %v4104 = vpack.c.bf16 %v4078, %v4077
        %v4105 = vpack.c.bf16 %v4080, %v4079
        %v4106 = vpack.c.bf16 %v4082, %v4081
        %v4107 = vpack.c.bf16 %v4084, %v4083
        %v4108 = vpack.c.bf16 %v4086, %v4085
        %v4109 = vpack.c.bf16 %v4088, %v4087
        %v4110 = vpack.c.bf16 %v4090, %v4089
        %v4111 = vpack.c.bf16 %v4092, %v4091
        %v4112 = vpack.c.bf16 %v4094, %v4093
        %v4113 = vpack.c.bf16 %v4096, %v4095
        %v4114 = vpack.c.bf16 %v4098, %v4097
        %s4115 = scalar_lea.vmem %s3, 192
        %v4116 = vld [vmem:[%s4115] sm:$0xf]
        %v4117 = vld [vmem:[%s4115 + $0x4] sm:$0xf]
        %v4118 = vld [vmem:[%s4115 + $0x8] sm:$0xf]
        %v4119 = vld [vmem:[%s4115 + $0xc] sm:$0xf]
        %v4120 = vld [vmem:[%s4115 + $0x10] sm:$0xf]
        %v4121 = vld [vmem:[%s4115 + $0x14] sm:$0xf]
        %v4122 = vld [vmem:[%s4115 + $0x18] sm:$0xf]
        %v4123 = vld [vmem:[%s4115 + $0x1c] sm:$0xf]
        %v4132 = vunpack.c.l.b16 %v4116
        %v4133 = vunpack.c.l.b16 %v4117
        %v4134 = vunpack.c.l.b16 %v4118
        %v4135 = vunpack.c.l.b16 %v4119
        %v4136 = vunpack.c.l.b16 %v4120
        %v4137 = vunpack.c.l.b16 %v4121
        %v4138 = vunpack.c.l.b16 %v4122
        %v4139 = vunpack.c.l.b16 %v4123
        %v4140 = vpack.c.b16 %v4133, %v4132
        %v4141 = vpack.c.b16 %v4135, %v4134
        %v4142 = vpack.c.b16 %v4137, %v4136
        %v4143 = vpack.c.b16 %v4139, %v4138
        %v4149 = vsel %vm224, %v4099, 0
        %v4152 = vsel %vm224, %v4100, 0
        %v4155 = vsel %vm224, %v4101, 0
        %v4158 = vsel %vm224, %v4102, 0
        %v4161 = vsel %vm224, %v4103, 0
        %v4164 = vsel %vm224, %v4104, 0
        %v4167 = vsel %vm224, %v4105, 0
        %v4170 = vsel %vm224, %v4106, 0
        %v4173 = vsel %vm224, %v4107, 0
        %v4176 = vsel %vm224, %v4108, 0
        %v4179 = vsel %vm224, %v4109, 0
        %v4182 = vsel %vm224, %v4110, 0
        %v4185 = vsel %vm224, %v4111, 0
        %v4188 = vsel %vm224, %v4112, 0
        %v4191 = vsel %vm224, %v4113, 0
        %v4194 = vsel %vm224, %v4114, 0
        %4196 = vmatpush.bf16.msra.mxu0 0
        %4197 = vmatpush.bf16.msra.mxu0 0
        %4198 = vmatpush.bf16.msra.mxu0 0
        %4199 = vmatpush.bf16.msra.mxu0 0
        %4200 = vmatpush.bf16.msra.mxu0 %v4143
        %4201 = vmatpush.bf16.msra.mxu0 %v4142
        %4202 = vmatpush.bf16.msra.mxu0 %v4141
        %4203 = vmatpush.bf16.msra.mxu0 %v4140
        %4204 = vmatmul.bf16.gmra.mxu0 %v4149
        %v4205 = vpop.f32.mrf.mxu0
        %v4206 = vadd.f32 0.0, %v4205
        %v4207 = vpop.f32.mrf.mxu0
        %v4208 = vadd.f32 0.0, %v4207
        %4209 = vmatmul.bf16.gmra.mxu0 %v4152
        %v4210 = vpop.f32.mrf.mxu0
        %v4211 = vadd.f32 0.0, %v4210
        %v4212 = vpop.f32.mrf.mxu0
        %v4213 = vadd.f32 0.0, %v4212
        %4214 = vmatmul.bf16.gmra.mxu0 %v4155
        %v4215 = vpop.f32.mrf.mxu0
        %v4216 = vadd.f32 0.0, %v4215
        %v4217 = vpop.f32.mrf.mxu0
        %v4218 = vadd.f32 0.0, %v4217
        %4219 = vmatmul.bf16.gmra.mxu0 %v4158
        %v4220 = vpop.f32.mrf.mxu0
        %v4221 = vadd.f32 0.0, %v4220
        %v4222 = vpop.f32.mrf.mxu0
        %v4223 = vadd.f32 0.0, %v4222
        %4224 = vmatmul.bf16.gmra.mxu0 %v4161
        %v4225 = vpop.f32.mrf.mxu0
        %v4226 = vadd.f32 0.0, %v4225
        %v4227 = vpop.f32.mrf.mxu0
        %v4228 = vadd.f32 0.0, %v4227
        %4229 = vmatmul.bf16.gmra.mxu0 %v4164
        %v4230 = vpop.f32.mrf.mxu0
        %v4231 = vadd.f32 0.0, %v4230
        %v4232 = vpop.f32.mrf.mxu0
        %v4233 = vadd.f32 0.0, %v4232
        %4234 = vmatmul.bf16.gmra.mxu0 %v4167
        %v4235 = vpop.f32.mrf.mxu0
        %v4236 = vadd.f32 0.0, %v4235
        %v4237 = vpop.f32.mrf.mxu0
        %v4238 = vadd.f32 0.0, %v4237
        %4239 = vmatmul.bf16.gmra.mxu0 %v4170
        %v4240 = vpop.f32.mrf.mxu0
        %v4241 = vadd.f32 0.0, %v4240
        %v4242 = vpop.f32.mrf.mxu0
        %v4243 = vadd.f32 0.0, %v4242
        %4244 = vmatmul.bf16.gmra.mxu0 %v4173
        %v4245 = vpop.f32.mrf.mxu0
        %v4246 = vadd.f32 0.0, %v4245
        %v4247 = vpop.f32.mrf.mxu0
        %v4248 = vadd.f32 0.0, %v4247
        %4249 = vmatmul.bf16.gmra.mxu0 %v4176
        %v4250 = vpop.f32.mrf.mxu0
        %v4251 = vadd.f32 0.0, %v4250
        %v4252 = vpop.f32.mrf.mxu0
        %v4253 = vadd.f32 0.0, %v4252
        %4254 = vmatmul.bf16.gmra.mxu0 %v4179
        %v4255 = vpop.f32.mrf.mxu0
        %v4256 = vadd.f32 0.0, %v4255
        %v4257 = vpop.f32.mrf.mxu0
        %v4258 = vadd.f32 0.0, %v4257
        %4259 = vmatmul.bf16.gmra.mxu0 %v4182
        %v4260 = vpop.f32.mrf.mxu0
        %v4261 = vadd.f32 0.0, %v4260
        %v4262 = vpop.f32.mrf.mxu0
        %v4263 = vadd.f32 0.0, %v4262
        %4264 = vmatmul.bf16.gmra.mxu0 %v4185
        %v4265 = vpop.f32.mrf.mxu0
        %v4266 = vadd.f32 0.0, %v4265
        %v4267 = vpop.f32.mrf.mxu0
        %v4268 = vadd.f32 0.0, %v4267
        %4269 = vmatmul.bf16.gmra.mxu0 %v4188
        %v4270 = vpop.f32.mrf.mxu0
        %v4271 = vadd.f32 0.0, %v4270
        %v4272 = vpop.f32.mrf.mxu0
        %v4273 = vadd.f32 0.0, %v4272
        %4274 = vmatmul.bf16.gmra.mxu0 %v4191
        %v4275 = vpop.f32.mrf.mxu0
        %v4276 = vadd.f32 0.0, %v4275
        %v4277 = vpop.f32.mrf.mxu0
        %v4278 = vadd.f32 0.0, %v4277
        %4279 = vmatmul.bf16.gmra.mxu0 %v4194
        %v4280 = vpop.f32.mrf.mxu0
        %v4281 = vadd.f32 0.0, %v4280
        %v4282 = vpop.f32.mrf.mxu0
        %v4283 = vadd.f32 0.0, %v4282
        %4284 = vdwg.mxu0
        %v4285 = vadd.f32 %v4035, %v4206
        %v4286 = vadd.f32 %v4036, %v4208
        %v4287 = vadd.f32 %v4037, %v4211
        %v4288 = vadd.f32 %v4038, %v4213
        %v4289 = vadd.f32 %v4039, %v4216
        %v4290 = vadd.f32 %v4040, %v4218
        %v4291 = vadd.f32 %v4041, %v4221
        %v4292 = vadd.f32 %v4042, %v4223
        %v4293 = vadd.f32 %v4043, %v4226
        %v4294 = vadd.f32 %v4044, %v4228
        %v4295 = vadd.f32 %v4045, %v4231
        %v4296 = vadd.f32 %v4046, %v4233
        %v4297 = vadd.f32 %v4047, %v4236
        %v4298 = vadd.f32 %v4048, %v4238
        %v4299 = vadd.f32 %v4049, %v4241
        %v4300 = vadd.f32 %v4050, %v4243
        %v4301 = vadd.f32 %v4051, %v4246
        %v4302 = vadd.f32 %v4052, %v4248
        %v4303 = vadd.f32 %v4053, %v4251
        %v4304 = vadd.f32 %v4054, %v4253
        %v4305 = vadd.f32 %v4055, %v4256
        %v4306 = vadd.f32 %v4056, %v4258
        %v4307 = vadd.f32 %v4057, %v4261
        %v4308 = vadd.f32 %v4058, %v4263
        %v4309 = vadd.f32 %v4059, %v4266
        %v4310 = vadd.f32 %v4060, %v4268
        %v4311 = vadd.f32 %v4061, %v4271
        %v4312 = vadd.f32 %v4062, %v4273
        %v4313 = vadd.f32 %v4063, %v4276
        %v4314 = vadd.f32 %v4064, %v4278
        %v4315 = vadd.f32 %v4065, %v4281
        %v4316 = vadd.f32 %v4066, %v4283
        %v4317 = vld [vmem:[%s1781 + $0x1] sm:$0xff]
        %v4318 = vld [vmem:[%s1781 + $0x9] sm:$0xff]
        %v4319 = vld [vmem:[%s1781 + $0x19] sm:$0xff]
        %v4320 = vld [vmem:[%s1781 + $0x21] sm:$0xff]
        %v4321 = vld [vmem:[%s1781 + $0x31] sm:$0xff]
        %v4322 = vld [vmem:[%s1781 + $0x39] sm:$0xff]
        %v4323 = vld [vmem:[%s1781 + $0x49] sm:$0xff]
        %v4324 = vld [vmem:[%s1781 + $0x51] sm:$0xff]
        %v4325 = vld [vmem:[%s1781 + $0x61] sm:$0xff]
        %v4326 = vld [vmem:[%s1781 + $0x69] sm:$0xff]
        %v4327 = vld [vmem:[%s1781 + $0x79] sm:$0xff]
        %v4328 = vld [vmem:[%s1781 + $0x81] sm:$0xff]
        %v4329 = vld [vmem:[%s1781 + $0x91] sm:$0xff]
        %v4330 = vld [vmem:[%s1781 + $0x99] sm:$0xff]
        %v4331 = vld [vmem:[%s1781 + $0xa9] sm:$0xff]
        %v4332 = vld [vmem:[%s1781 + $0xb1] sm:$0xff]
        %v4333 = vld [vmem:[%s1781 + $0xc1] sm:$0xff]
        %v4334 = vld [vmem:[%s1781 + $0xc9] sm:$0xff]
        %v4335 = vld [vmem:[%s1781 + $0xd9] sm:$0xff]
        %v4336 = vld [vmem:[%s1781 + $0xe1] sm:$0xff]
        %v4337 = vld [vmem:[%s1781 + $0xf1] sm:$0xff]
        %v4338 = vld [vmem:[%s1781 + $0xf9] sm:$0xff]
        %v4339 = vld [vmem:[%s1781 + $0x109] sm:$0xff]
        %v4340 = vld [vmem:[%s1781 + $0x111] sm:$0xff]
        %v4341 = vld [vmem:[%s1781 + $0x121] sm:$0xff]
        %v4342 = vld [vmem:[%s1781 + $0x129] sm:$0xff]
        %v4343 = vld [vmem:[%s1781 + $0x139] sm:$0xff]
        %v4344 = vld [vmem:[%s1781 + $0x141] sm:$0xff]
        %v4345 = vld [vmem:[%s1781 + $0x151] sm:$0xff]
        %v4346 = vld [vmem:[%s1781 + $0x159] sm:$0xff]
        %v4347 = vld [vmem:[%s1781 + $0x169] sm:$0xff]
        %v4348 = vld [vmem:[%s1781 + $0x171] sm:$0xff]
        %v4349 = vpack.c.bf16 %v4318, %v4317
        %v4350 = vpack.c.bf16 %v4320, %v4319
        %v4351 = vpack.c.bf16 %v4322, %v4321
        %v4352 = vpack.c.bf16 %v4324, %v4323
        %v4353 = vpack.c.bf16 %v4326, %v4325
        %v4354 = vpack.c.bf16 %v4328, %v4327
        %v4355 = vpack.c.bf16 %v4330, %v4329
        %v4356 = vpack.c.bf16 %v4332, %v4331
        %v4357 = vpack.c.bf16 %v4334, %v4333
        %v4358 = vpack.c.bf16 %v4336, %v4335
        %v4359 = vpack.c.bf16 %v4338, %v4337
        %v4360 = vpack.c.bf16 %v4340, %v4339
        %v4361 = vpack.c.bf16 %v4342, %v4341
        %v4362 = vpack.c.bf16 %v4344, %v4343
        %v4363 = vpack.c.bf16 %v4346, %v4345
        %v4364 = vpack.c.bf16 %v4348, %v4347
        %s4365 = scalar_lea.vmem %s3, 224
        %v4366 = vld [vmem:[%s4365] sm:$0xf]
        %v4367 = vld [vmem:[%s4365 + $0x4] sm:$0xf]
        %v4368 = vld [vmem:[%s4365 + $0x8] sm:$0xf]
        %v4369 = vld [vmem:[%s4365 + $0xc] sm:$0xf]
        %v4370 = vld [vmem:[%s4365 + $0x10] sm:$0xf]
        %v4371 = vld [vmem:[%s4365 + $0x14] sm:$0xf]
        %v4372 = vld [vmem:[%s4365 + $0x18] sm:$0xf]
        %v4373 = vld [vmem:[%s4365 + $0x1c] sm:$0xf]
        %v4382 = vunpack.c.l.b16 %v4366
        %v4383 = vunpack.c.l.b16 %v4367
        %v4384 = vunpack.c.l.b16 %v4368
        %v4385 = vunpack.c.l.b16 %v4369
        %v4386 = vunpack.c.l.b16 %v4370
        %v4387 = vunpack.c.l.b16 %v4371
        %v4388 = vunpack.c.l.b16 %v4372
        %v4389 = vunpack.c.l.b16 %v4373
        %v4390 = vpack.c.b16 %v4383, %v4382
        %v4391 = vpack.c.b16 %v4385, %v4384
        %v4392 = vpack.c.b16 %v4387, %v4386
        %v4393 = vpack.c.b16 %v4389, %v4388
        %v4399 = vsel %vm224, %v4349, 0
        %v4402 = vsel %vm224, %v4350, 0
        %v4405 = vsel %vm224, %v4351, 0
        %v4408 = vsel %vm224, %v4352, 0
        %v4411 = vsel %vm224, %v4353, 0
        %v4414 = vsel %vm224, %v4354, 0
        %v4417 = vsel %vm224, %v4355, 0
        %v4420 = vsel %vm224, %v4356, 0
        %v4423 = vsel %vm224, %v4357, 0
        %v4426 = vsel %vm224, %v4358, 0
        %v4429 = vsel %vm224, %v4359, 0
        %v4432 = vsel %vm224, %v4360, 0
        %v4435 = vsel %vm224, %v4361, 0
        %v4438 = vsel %vm224, %v4362, 0
        %v4441 = vsel %vm224, %v4363, 0
        %v4444 = vsel %vm224, %v4364, 0
        %4446 = vmatpush.bf16.msra.mxu0 0
        %4447 = vmatpush.bf16.msra.mxu0 0
        %4448 = vmatpush.bf16.msra.mxu0 0
        %4449 = vmatpush.bf16.msra.mxu0 0
        %4450 = vmatpush.bf16.msra.mxu0 %v4393
        %4451 = vmatpush.bf16.msra.mxu0 %v4392
        %4452 = vmatpush.bf16.msra.mxu0 %v4391
        %4453 = vmatpush.bf16.msra.mxu0 %v4390
        %4454 = vmatmul.bf16.gmra.mxu0 %v4399
        %v4455 = vpop.f32.mrf.mxu0
        %v4456 = vadd.f32 0.0, %v4455
        %v4457 = vpop.f32.mrf.mxu0
        %v4458 = vadd.f32 0.0, %v4457
        %4459 = vmatmul.bf16.gmra.mxu0 %v4402
        %v4460 = vpop.f32.mrf.mxu0
        %v4461 = vadd.f32 0.0, %v4460
        %v4462 = vpop.f32.mrf.mxu0
        %v4463 = vadd.f32 0.0, %v4462
        %4464 = vmatmul.bf16.gmra.mxu0 %v4405
        %v4465 = vpop.f32.mrf.mxu0
        %v4466 = vadd.f32 0.0, %v4465
        %v4467 = vpop.f32.mrf.mxu0
        %v4468 = vadd.f32 0.0, %v4467
        %4469 = vmatmul.bf16.gmra.mxu0 %v4408
        %v4470 = vpop.f32.mrf.mxu0
        %v4471 = vadd.f32 0.0, %v4470
        %v4472 = vpop.f32.mrf.mxu0
        %v4473 = vadd.f32 0.0, %v4472
        %4474 = vmatmul.bf16.gmra.mxu0 %v4411
        %v4475 = vpop.f32.mrf.mxu0
        %v4476 = vadd.f32 0.0, %v4475
        %v4477 = vpop.f32.mrf.mxu0
        %v4478 = vadd.f32 0.0, %v4477
        %4479 = vmatmul.bf16.gmra.mxu0 %v4414
        %v4480 = vpop.f32.mrf.mxu0
        %v4481 = vadd.f32 0.0, %v4480
        %v4482 = vpop.f32.mrf.mxu0
        %v4483 = vadd.f32 0.0, %v4482
        %4484 = vmatmul.bf16.gmra.mxu0 %v4417
        %v4485 = vpop.f32.mrf.mxu0
        %v4486 = vadd.f32 0.0, %v4485
        %v4487 = vpop.f32.mrf.mxu0
        %v4488 = vadd.f32 0.0, %v4487
        %4489 = vmatmul.bf16.gmra.mxu0 %v4420
        %v4490 = vpop.f32.mrf.mxu0
        %v4491 = vadd.f32 0.0, %v4490
        %v4492 = vpop.f32.mrf.mxu0
        %v4493 = vadd.f32 0.0, %v4492
        %4494 = vmatmul.bf16.gmra.mxu0 %v4423
        %v4495 = vpop.f32.mrf.mxu0
        %v4496 = vadd.f32 0.0, %v4495
        %v4497 = vpop.f32.mrf.mxu0
        %v4498 = vadd.f32 0.0, %v4497
        %4499 = vmatmul.bf16.gmra.mxu0 %v4426
        %v4500 = vpop.f32.mrf.mxu0
        %v4501 = vadd.f32 0.0, %v4500
        %v4502 = vpop.f32.mrf.mxu0
        %v4503 = vadd.f32 0.0, %v4502
        %4504 = vmatmul.bf16.gmra.mxu0 %v4429
        %v4505 = vpop.f32.mrf.mxu0
        %v4506 = vadd.f32 0.0, %v4505
        %v4507 = vpop.f32.mrf.mxu0
        %v4508 = vadd.f32 0.0, %v4507
        %4509 = vmatmul.bf16.gmra.mxu0 %v4432
        %v4510 = vpop.f32.mrf.mxu0
        %v4511 = vadd.f32 0.0, %v4510
        %v4512 = vpop.f32.mrf.mxu0
        %v4513 = vadd.f32 0.0, %v4512
        %4514 = vmatmul.bf16.gmra.mxu0 %v4435
        %v4515 = vpop.f32.mrf.mxu0
        %v4516 = vadd.f32 0.0, %v4515
        %v4517 = vpop.f32.mrf.mxu0
        %v4518 = vadd.f32 0.0, %v4517
        %4519 = vmatmul.bf16.gmra.mxu0 %v4438
        %v4520 = vpop.f32.mrf.mxu0
        %v4521 = vadd.f32 0.0, %v4520
        %v4522 = vpop.f32.mrf.mxu0
        %v4523 = vadd.f32 0.0, %v4522
        %4524 = vmatmul.bf16.gmra.mxu0 %v4441
        %v4525 = vpop.f32.mrf.mxu0
        %v4526 = vadd.f32 0.0, %v4525
        %v4527 = vpop.f32.mrf.mxu0
        %v4528 = vadd.f32 0.0, %v4527
        %4529 = vmatmul.bf16.gmra.mxu0 %v4444
        %v4530 = vpop.f32.mrf.mxu0
        %v4531 = vadd.f32 0.0, %v4530
        %v4532 = vpop.f32.mrf.mxu0
        %v4533 = vadd.f32 0.0, %v4532
        %4534 = vdwg.mxu0
        %v4535 = vadd.f32 %v4285, %v4456
        %v4536 = vadd.f32 %v4286, %v4458
        %v4537 = vadd.f32 %v4287, %v4461
        %v4538 = vadd.f32 %v4288, %v4463
        %v4539 = vadd.f32 %v4289, %v4466
        %v4540 = vadd.f32 %v4290, %v4468
        %v4541 = vadd.f32 %v4291, %v4471
        %v4542 = vadd.f32 %v4292, %v4473
        %v4543 = vadd.f32 %v4293, %v4476
        %v4544 = vadd.f32 %v4294, %v4478
        %v4545 = vadd.f32 %v4295, %v4481
        %v4546 = vadd.f32 %v4296, %v4483
        %v4547 = vadd.f32 %v4297, %v4486
        %v4548 = vadd.f32 %v4298, %v4488
        %v4549 = vadd.f32 %v4299, %v4491
        %v4550 = vadd.f32 %v4300, %v4493
        %v4551 = vadd.f32 %v4301, %v4496
        %v4552 = vadd.f32 %v4302, %v4498
        %v4553 = vadd.f32 %v4303, %v4501
        %v4554 = vadd.f32 %v4304, %v4503
        %v4555 = vadd.f32 %v4305, %v4506
        %v4556 = vadd.f32 %v4306, %v4508
        %v4557 = vadd.f32 %v4307, %v4511
        %v4558 = vadd.f32 %v4308, %v4513
        %v4559 = vadd.f32 %v4309, %v4516
        %v4560 = vadd.f32 %v4310, %v4518
        %v4561 = vadd.f32 %v4311, %v4521
        %v4562 = vadd.f32 %v4312, %v4523
        %v4563 = vadd.f32 %v4313, %v4526
        %v4564 = vadd.f32 %v4314, %v4528
        %v4565 = vadd.f32 %v4315, %v4531
        %v4566 = vadd.f32 %v4316, %v4533
        %v4567 = vld [vmem:[%s1781 + $0x2] sm:$0xff]
        %v4568 = vld [vmem:[%s1781 + $0xa] sm:$0xff]
        %v4569 = vld [vmem:[%s1781 + $0x1a] sm:$0xff]
        %v4570 = vld [vmem:[%s1781 + $0x22] sm:$0xff]
        %v4571 = vld [vmem:[%s1781 + $0x32] sm:$0xff]
        %v4572 = vld [vmem:[%s1781 + $0x3a] sm:$0xff]
        %v4573 = vld [vmem:[%s1781 + $0x4a] sm:$0xff]
        %v4574 = vld [vmem:[%s1781 + $0x52] sm:$0xff]
        %v4575 = vld [vmem:[%s1781 + $0x62] sm:$0xff]
        %v4576 = vld [vmem:[%s1781 + $0x6a] sm:$0xff]
        %v4577 = vld [vmem:[%s1781 + $0x7a] sm:$0xff]
        %v4578 = vld [vmem:[%s1781 + $0x82] sm:$0xff]
        %v4579 = vld [vmem:[%s1781 + $0x92] sm:$0xff]
        %v4580 = vld [vmem:[%s1781 + $0x9a] sm:$0xff]
        %v4581 = vld [vmem:[%s1781 + $0xaa] sm:$0xff]
        %v4582 = vld [vmem:[%s1781 + $0xb2] sm:$0xff]
        %v4583 = vld [vmem:[%s1781 + $0xc2] sm:$0xff]
        %v4584 = vld [vmem:[%s1781 + $0xca] sm:$0xff]
        %v4585 = vld [vmem:[%s1781 + $0xda] sm:$0xff]
        %v4586 = vld [vmem:[%s1781 + $0xe2] sm:$0xff]
        %v4587 = vld [vmem:[%s1781 + $0xf2] sm:$0xff]
        %v4588 = vld [vmem:[%s1781 + $0xfa] sm:$0xff]
        %v4589 = vld [vmem:[%s1781 + $0x10a] sm:$0xff]
        %v4590 = vld [vmem:[%s1781 + $0x112] sm:$0xff]
        %v4591 = vld [vmem:[%s1781 + $0x122] sm:$0xff]
        %v4592 = vld [vmem:[%s1781 + $0x12a] sm:$0xff]
        %v4593 = vld [vmem:[%s1781 + $0x13a] sm:$0xff]
        %v4594 = vld [vmem:[%s1781 + $0x142] sm:$0xff]
        %v4595 = vld [vmem:[%s1781 + $0x152] sm:$0xff]
        %v4596 = vld [vmem:[%s1781 + $0x15a] sm:$0xff]
        %v4597 = vld [vmem:[%s1781 + $0x16a] sm:$0xff]
        %v4598 = vld [vmem:[%s1781 + $0x172] sm:$0xff]
        %v4599 = vpack.c.bf16 %v4568, %v4567
        %v4600 = vpack.c.bf16 %v4570, %v4569
        %v4601 = vpack.c.bf16 %v4572, %v4571
        %v4602 = vpack.c.bf16 %v4574, %v4573
        %v4603 = vpack.c.bf16 %v4576, %v4575
        %v4604 = vpack.c.bf16 %v4578, %v4577
        %v4605 = vpack.c.bf16 %v4580, %v4579
        %v4606 = vpack.c.bf16 %v4582, %v4581
        %v4607 = vpack.c.bf16 %v4584, %v4583
        %v4608 = vpack.c.bf16 %v4586, %v4585
        %v4609 = vpack.c.bf16 %v4588, %v4587
        %v4610 = vpack.c.bf16 %v4590, %v4589
        %v4611 = vpack.c.bf16 %v4592, %v4591
        %v4612 = vpack.c.bf16 %v4594, %v4593
        %v4613 = vpack.c.bf16 %v4596, %v4595
        %v4614 = vpack.c.bf16 %v4598, %v4597
        %s4615 = scalar_lea.vmem %s3, 256
        %v4616 = vld [vmem:[%s4615] sm:$0xf]
        %v4617 = vld [vmem:[%s4615 + $0x4] sm:$0xf]
        %v4618 = vld [vmem:[%s4615 + $0x8] sm:$0xf]
        %v4619 = vld [vmem:[%s4615 + $0xc] sm:$0xf]
        %v4620 = vld [vmem:[%s4615 + $0x10] sm:$0xf]
        %v4621 = vld [vmem:[%s4615 + $0x14] sm:$0xf]
        %v4622 = vld [vmem:[%s4615 + $0x18] sm:$0xf]
        %v4623 = vld [vmem:[%s4615 + $0x1c] sm:$0xf]
        %v4632 = vunpack.c.l.b16 %v4616
        %v4633 = vunpack.c.l.b16 %v4617
        %v4634 = vunpack.c.l.b16 %v4618
        %v4635 = vunpack.c.l.b16 %v4619
        %v4636 = vunpack.c.l.b16 %v4620
        %v4637 = vunpack.c.l.b16 %v4621
        %v4638 = vunpack.c.l.b16 %v4622
        %v4639 = vunpack.c.l.b16 %v4623
        %v4640 = vpack.c.b16 %v4633, %v4632
        %v4641 = vpack.c.b16 %v4635, %v4634
        %v4642 = vpack.c.b16 %v4637, %v4636
        %v4643 = vpack.c.b16 %v4639, %v4638
        %v4649 = vsel %vm224, %v4599, 0
        %v4652 = vsel %vm224, %v4600, 0
        %v4655 = vsel %vm224, %v4601, 0
        %v4658 = vsel %vm224, %v4602, 0
        %v4661 = vsel %vm224, %v4603, 0
        %v4664 = vsel %vm224, %v4604, 0
        %v4667 = vsel %vm224, %v4605, 0
        %v4670 = vsel %vm224, %v4606, 0
        %v4673 = vsel %vm224, %v4607, 0
        %v4676 = vsel %vm224, %v4608, 0
        %v4679 = vsel %vm224, %v4609, 0
        %v4682 = vsel %vm224, %v4610, 0
        %v4685 = vsel %vm224, %v4611, 0
        %v4688 = vsel %vm224, %v4612, 0
        %v4691 = vsel %vm224, %v4613, 0
        %v4694 = vsel %vm224, %v4614, 0
        %4696 = vmatpush.bf16.msra.mxu0 0
        %4697 = vmatpush.bf16.msra.mxu0 0
        %4698 = vmatpush.bf16.msra.mxu0 0
        %4699 = vmatpush.bf16.msra.mxu0 0
        %4700 = vmatpush.bf16.msra.mxu0 %v4643
        %4701 = vmatpush.bf16.msra.mxu0 %v4642
        %4702 = vmatpush.bf16.msra.mxu0 %v4641
        %4703 = vmatpush.bf16.msra.mxu0 %v4640
        %4704 = vmatmul.bf16.gmra.mxu0 %v4649
        %v4705 = vpop.f32.mrf.mxu0
        %v4706 = vadd.f32 0.0, %v4705
        %v4707 = vpop.f32.mrf.mxu0
        %v4708 = vadd.f32 0.0, %v4707
        %4709 = vmatmul.bf16.gmra.mxu0 %v4652
        %v4710 = vpop.f32.mrf.mxu0
        %v4711 = vadd.f32 0.0, %v4710
        %v4712 = vpop.f32.mrf.mxu0
        %v4713 = vadd.f32 0.0, %v4712
        %4714 = vmatmul.bf16.gmra.mxu0 %v4655
        %v4715 = vpop.f32.mrf.mxu0
        %v4716 = vadd.f32 0.0, %v4715
        %v4717 = vpop.f32.mrf.mxu0
        %v4718 = vadd.f32 0.0, %v4717
        %4719 = vmatmul.bf16.gmra.mxu0 %v4658
        %v4720 = vpop.f32.mrf.mxu0
        %v4721 = vadd.f32 0.0, %v4720
        %v4722 = vpop.f32.mrf.mxu0
        %v4723 = vadd.f32 0.0, %v4722
        %4724 = vmatmul.bf16.gmra.mxu0 %v4661
        %v4725 = vpop.f32.mrf.mxu0
        %v4726 = vadd.f32 0.0, %v4725
        %v4727 = vpop.f32.mrf.mxu0
        %v4728 = vadd.f32 0.0, %v4727
        %4729 = vmatmul.bf16.gmra.mxu0 %v4664
        %v4730 = vpop.f32.mrf.mxu0
        %v4731 = vadd.f32 0.0, %v4730
        %v4732 = vpop.f32.mrf.mxu0
        %v4733 = vadd.f32 0.0, %v4732
        %4734 = vmatmul.bf16.gmra.mxu0 %v4667
        %v4735 = vpop.f32.mrf.mxu0
        %v4736 = vadd.f32 0.0, %v4735
        %v4737 = vpop.f32.mrf.mxu0
        %v4738 = vadd.f32 0.0, %v4737
        %4739 = vmatmul.bf16.gmra.mxu0 %v4670
        %v4740 = vpop.f32.mrf.mxu0
        %v4741 = vadd.f32 0.0, %v4740
        %v4742 = vpop.f32.mrf.mxu0
        %v4743 = vadd.f32 0.0, %v4742
        %4744 = vmatmul.bf16.gmra.mxu0 %v4673
        %v4745 = vpop.f32.mrf.mxu0
        %v4746 = vadd.f32 0.0, %v4745
        %v4747 = vpop.f32.mrf.mxu0
        %v4748 = vadd.f32 0.0, %v4747
        %4749 = vmatmul.bf16.gmra.mxu0 %v4676
        %v4750 = vpop.f32.mrf.mxu0
        %v4751 = vadd.f32 0.0, %v4750
        %v4752 = vpop.f32.mrf.mxu0
        %v4753 = vadd.f32 0.0, %v4752
        %4754 = vmatmul.bf16.gmra.mxu0 %v4679
        %v4755 = vpop.f32.mrf.mxu0
        %v4756 = vadd.f32 0.0, %v4755
        %v4757 = vpop.f32.mrf.mxu0
        %v4758 = vadd.f32 0.0, %v4757
        %4759 = vmatmul.bf16.gmra.mxu0 %v4682
        %v4760 = vpop.f32.mrf.mxu0
        %v4761 = vadd.f32 0.0, %v4760
        %v4762 = vpop.f32.mrf.mxu0
        %v4763 = vadd.f32 0.0, %v4762
        %4764 = vmatmul.bf16.gmra.mxu0 %v4685
        %v4765 = vpop.f32.mrf.mxu0
        %v4766 = vadd.f32 0.0, %v4765
        %v4767 = vpop.f32.mrf.mxu0
        %v4768 = vadd.f32 0.0, %v4767
        %4769 = vmatmul.bf16.gmra.mxu0 %v4688
        %v4770 = vpop.f32.mrf.mxu0
        %v4771 = vadd.f32 0.0, %v4770
        %v4772 = vpop.f32.mrf.mxu0
        %v4773 = vadd.f32 0.0, %v4772
        %4774 = vmatmul.bf16.gmra.mxu0 %v4691
        %v4775 = vpop.f32.mrf.mxu0
        %v4776 = vadd.f32 0.0, %v4775
        %v4777 = vpop.f32.mrf.mxu0
        %v4778 = vadd.f32 0.0, %v4777
        %4779 = vmatmul.bf16.gmra.mxu0 %v4694
        %v4780 = vpop.f32.mrf.mxu0
        %v4781 = vadd.f32 0.0, %v4780
        %v4782 = vpop.f32.mrf.mxu0
        %v4783 = vadd.f32 0.0, %v4782
        %4784 = vdwg.mxu0
        %v4785 = vadd.f32 %v4535, %v4706
        %v4786 = vadd.f32 %v4536, %v4708
        %v4787 = vadd.f32 %v4537, %v4711
        %v4788 = vadd.f32 %v4538, %v4713
        %v4789 = vadd.f32 %v4539, %v4716
        %v4790 = vadd.f32 %v4540, %v4718
        %v4791 = vadd.f32 %v4541, %v4721
        %v4792 = vadd.f32 %v4542, %v4723
        %v4793 = vadd.f32 %v4543, %v4726
        %v4794 = vadd.f32 %v4544, %v4728
        %v4795 = vadd.f32 %v4545, %v4731
        %v4796 = vadd.f32 %v4546, %v4733
        %v4797 = vadd.f32 %v4547, %v4736
        %v4798 = vadd.f32 %v4548, %v4738
        %v4799 = vadd.f32 %v4549, %v4741
        %v4800 = vadd.f32 %v4550, %v4743
        %v4801 = vadd.f32 %v4551, %v4746
        %v4802 = vadd.f32 %v4552, %v4748
        %v4803 = vadd.f32 %v4553, %v4751
        %v4804 = vadd.f32 %v4554, %v4753
        %v4805 = vadd.f32 %v4555, %v4756
        %v4806 = vadd.f32 %v4556, %v4758
        %v4807 = vadd.f32 %v4557, %v4761
        %v4808 = vadd.f32 %v4558, %v4763
        %v4809 = vadd.f32 %v4559, %v4766
        %v4810 = vadd.f32 %v4560, %v4768
        %v4811 = vadd.f32 %v4561, %v4771
        %v4812 = vadd.f32 %v4562, %v4773
        %v4813 = vadd.f32 %v4563, %v4776
        %v4814 = vadd.f32 %v4564, %v4778
        %v4815 = vadd.f32 %v4565, %v4781
        %v4816 = vadd.f32 %v4566, %v4783
        %v4817 = vld [vmem:[%s4] sm:$0x1]
        %v4819 = vperm.slane %v4817, 0
        %v4821 = vadd.f32 %v4785, %v4819
        %v4822 = vadd.f32 %v4786, %v4819
        %v4823 = vadd.f32 %v4787, %v4819
        %v4824 = vadd.f32 %v4788, %v4819
        %v4825 = vadd.f32 %v4789, %v4819
        %v4826 = vadd.f32 %v4790, %v4819
        %v4827 = vadd.f32 %v4791, %v4819
        %v4828 = vadd.f32 %v4792, %v4819
        %v4829 = vadd.f32 %v4793, %v4819
        %v4830 = vadd.f32 %v4794, %v4819
        %v4831 = vadd.f32 %v4795, %v4819
        %v4832 = vadd.f32 %v4796, %v4819
        %v4833 = vadd.f32 %v4797, %v4819
        %v4834 = vadd.f32 %v4798, %v4819
        %v4835 = vadd.f32 %v4799, %v4819
        %v4836 = vadd.f32 %v4800, %v4819
        %v4837 = vadd.f32 %v4801, %v4819
        %v4838 = vadd.f32 %v4802, %v4819
        %v4839 = vadd.f32 %v4803, %v4819
        %v4840 = vadd.f32 %v4804, %v4819
        %v4841 = vadd.f32 %v4805, %v4819
        %v4842 = vadd.f32 %v4806, %v4819
        %v4843 = vadd.f32 %v4807, %v4819
        %v4844 = vadd.f32 %v4808, %v4819
        %v4845 = vadd.f32 %v4809, %v4819
        %v4846 = vadd.f32 %v4810, %v4819
        %v4847 = vadd.f32 %v4811, %v4819
        %v4848 = vadd.f32 %v4812, %v4819
        %v4849 = vadd.f32 %v4813, %v4819
        %v4850 = vadd.f32 %v4814, %v4819
        %v4851 = vadd.f32 %v4815, %v4819
        %v4852 = vadd.f32 %v4816, %v4819
        %v4853 = vmax.f32 %v4821, 0.0
        %v4854 = vmax.f32 %v4822, 0.0
        %v4855 = vmax.f32 %v4823, 0.0
        %v4856 = vmax.f32 %v4824, 0.0
        %v4857 = vmax.f32 %v4825, 0.0
        %v4858 = vmax.f32 %v4826, 0.0
        %v4859 = vmax.f32 %v4827, 0.0
        %v4860 = vmax.f32 %v4828, 0.0
        %v4861 = vmax.f32 %v4829, 0.0
        %v4862 = vmax.f32 %v4830, 0.0
        %v4863 = vmax.f32 %v4831, 0.0
        %v4864 = vmax.f32 %v4832, 0.0
        %v4865 = vmax.f32 %v4833, 0.0
        %v4866 = vmax.f32 %v4834, 0.0
        %v4867 = vmax.f32 %v4835, 0.0
        %v4868 = vmax.f32 %v4836, 0.0
        %v4869 = vmax.f32 %v4837, 0.0
        %v4870 = vmax.f32 %v4838, 0.0
        %v4871 = vmax.f32 %v4839, 0.0
        %v4872 = vmax.f32 %v4840, 0.0
        %v4873 = vmax.f32 %v4841, 0.0
        %v4874 = vmax.f32 %v4842, 0.0
        %v4875 = vmax.f32 %v4843, 0.0
        %v4876 = vmax.f32 %v4844, 0.0
        %v4877 = vmax.f32 %v4845, 0.0
        %v4878 = vmax.f32 %v4846, 0.0
        %v4879 = vmax.f32 %v4847, 0.0
        %v4880 = vmax.f32 %v4848, 0.0
        %v4881 = vmax.f32 %v4849, 0.0
        %v4882 = vmax.f32 %v4850, 0.0
        %v4883 = vmax.f32 %v4851, 0.0
        %v4884 = vmax.f32 %v4852, 0.0
        %v4917 = vrot.slane %v4853, 2
        %v4918 = vrot.slane %v4853, 4
        %v4919 = vrot.slane %v4853, 6
        %v4920 = vrot.slane %v4854, 2
        %v4921 = vrot.slane %v4854, 4
        %v4922 = vrot.slane %v4854, 6
        %v4923 = vrot.slane %v4855, 2
        %v4924 = vrot.slane %v4855, 4
        %v4925 = vrot.slane %v4855, 6
        %v4926 = vrot.slane %v4856, 2
        %v4927 = vrot.slane %v4856, 4
        %v4928 = vrot.slane %v4856, 6
        %v4929 = vrot.slane %v4857, 2
        %v4930 = vrot.slane %v4857, 4
        %v4931 = vrot.slane %v4857, 6
        %v4932 = vrot.slane %v4858, 2
        %v4933 = vrot.slane %v4858, 4
        %v4934 = vrot.slane %v4858, 6
        %v4935 = vrot.slane %v4859, 2
        %v4936 = vrot.slane %v4859, 4
        %v4937 = vrot.slane %v4859, 6
        %v4938 = vrot.slane %v4860, 2
        %v4939 = vrot.slane %v4860, 4
        %v4940 = vrot.slane %v4860, 6
        %v4941 = vrot.slane %v4861, 2
        %v4942 = vrot.slane %v4861, 4
        %v4943 = vrot.slane %v4861, 6
        %v4944 = vrot.slane %v4862, 2
        %v4945 = vrot.slane %v4862, 4
        %v4946 = vrot.slane %v4862, 6
        %v4947 = vrot.slane %v4863, 2
        %v4948 = vrot.slane %v4863, 4
        %v4949 = vrot.slane %v4863, 6
        %v4950 = vrot.slane %v4864, 2
        %v4951 = vrot.slane %v4864, 4
        %v4952 = vrot.slane %v4864, 6
        %v4953 = vrot.slane %v4865, 2
        %v4954 = vrot.slane %v4865, 4
        %v4955 = vrot.slane %v4865, 6
        %v4956 = vrot.slane %v4866, 2
        %v4957 = vrot.slane %v4866, 4
        %v4958 = vrot.slane %v4866, 6
        %v4959 = vrot.slane %v4867, 2
        %v4960 = vrot.slane %v4867, 4
        %v4961 = vrot.slane %v4867, 6
        %v4962 = vrot.slane %v4868, 2
        %v4963 = vrot.slane %v4868, 4
        %v4964 = vrot.slane %v4868, 6
        %v4965 = vrot.slane %v4869, 2
        %v4966 = vrot.slane %v4869, 4
        %v4967 = vrot.slane %v4869, 6
        %v4968 = vrot.slane %v4870, 2
        %v4969 = vrot.slane %v4870, 4
        %v4970 = vrot.slane %v4870, 6
        %v4971 = vrot.slane %v4871, 2
        %v4972 = vrot.slane %v4871, 4
        %v4973 = vrot.slane %v4871, 6
        %v4974 = vrot.slane %v4872, 2
        %v4975 = vrot.slane %v4872, 4
        %v4976 = vrot.slane %v4872, 6
        %v4977 = vrot.slane %v4873, 2
        %v4978 = vrot.slane %v4873, 4
        %v4979 = vrot.slane %v4873, 6
        %v4980 = vrot.slane %v4874, 2
        %v4981 = vrot.slane %v4874, 4
        %v4982 = vrot.slane %v4874, 6
        %v4983 = vrot.slane %v4875, 2
        %v4984 = vrot.slane %v4875, 4
        %v4985 = vrot.slane %v4875, 6
        %v4986 = vrot.slane %v4876, 2
        %v4987 = vrot.slane %v4876, 4
        %v4988 = vrot.slane %v4876, 6
        %v4989 = vrot.slane %v4877, 2
        %v4990 = vrot.slane %v4877, 4
        %v4991 = vrot.slane %v4877, 6
        %v4992 = vrot.slane %v4878, 2
        %v4993 = vrot.slane %v4878, 4
        %v4994 = vrot.slane %v4878, 6
        %v4995 = vrot.slane %v4879, 2
        %v4996 = vrot.slane %v4879, 4
        %v4997 = vrot.slane %v4879, 6
        %v4998 = vrot.slane %v4880, 2
        %v4999 = vrot.slane %v4880, 4
        %v5000 = vrot.slane %v4880, 6
        %v5001 = vrot.slane %v4881, 2
        %v5002 = vrot.slane %v4881, 4
        %v5003 = vrot.slane %v4881, 6
        %v5004 = vrot.slane %v4882, 2
        %v5005 = vrot.slane %v4882, 4
        %v5006 = vrot.slane %v4882, 6
        %v5007 = vrot.slane %v4883, 2
        %v5008 = vrot.slane %v4883, 4
        %v5009 = vrot.slane %v4883, 6
        %v5010 = vrot.slane %v4884, 2
        %v5011 = vrot.slane %v4884, 4
        %v5012 = vrot.slane %v4884, 6
        %v5109 = vsel %vm227, %v4853, -inf
        %v5110 = vrot.slane %v5109, 4
        %v5111 = vmax.f32 %v5109, %v5110
        %v5112 = vrot.slane %v5111, 2
        %v5113 = vmax.f32 %v5111, %v5112
        %v5114 = vrot.slane %v5113, 1
        %v5115 = vmax.f32 %v5113, %v5114
        %v5116 = vsel %vm227, %v4917, -inf
        %v5117 = vrot.slane %v5116, 4
        %v5118 = vmax.f32 %v5116, %v5117
        %v5119 = vrot.slane %v5118, 2
        %v5120 = vmax.f32 %v5118, %v5119
        %v5121 = vrot.slane %v5120, 1
        %v5122 = vmax.f32 %v5120, %v5121
        %v5123 = vsel %vm227, %v4918, -inf
        %v5124 = vrot.slane %v5123, 4
        %v5125 = vmax.f32 %v5123, %v5124
        %v5126 = vrot.slane %v5125, 2
        %v5127 = vmax.f32 %v5125, %v5126
        %v5128 = vrot.slane %v5127, 1
        %v5129 = vmax.f32 %v5127, %v5128
        %v5130 = vsel %vm227, %v4919, -inf
        %v5131 = vrot.slane %v5130, 4
        %v5132 = vmax.f32 %v5130, %v5131
        %v5133 = vrot.slane %v5132, 2
        %v5134 = vmax.f32 %v5132, %v5133
        %v5135 = vrot.slane %v5134, 1
        %v5136 = vmax.f32 %v5134, %v5135
        %v5137 = vsel %vm227, %v4854, -inf
        %v5138 = vrot.slane %v5137, 4
        %v5139 = vmax.f32 %v5137, %v5138
        %v5140 = vrot.slane %v5139, 2
        %v5141 = vmax.f32 %v5139, %v5140
        %v5142 = vrot.slane %v5141, 1
        %v5143 = vmax.f32 %v5141, %v5142
        %v5144 = vsel %vm227, %v4920, -inf
        %v5145 = vrot.slane %v5144, 4
        %v5146 = vmax.f32 %v5144, %v5145
        %v5147 = vrot.slane %v5146, 2
        %v5148 = vmax.f32 %v5146, %v5147
        %v5149 = vrot.slane %v5148, 1
        %v5150 = vmax.f32 %v5148, %v5149
        %v5151 = vsel %vm227, %v4921, -inf
        %v5152 = vrot.slane %v5151, 4
        %v5153 = vmax.f32 %v5151, %v5152
        %v5154 = vrot.slane %v5153, 2
        %v5155 = vmax.f32 %v5153, %v5154
        %v5156 = vrot.slane %v5155, 1
        %v5157 = vmax.f32 %v5155, %v5156
        %v5158 = vsel %vm227, %v4922, -inf
        %v5159 = vrot.slane %v5158, 4
        %v5160 = vmax.f32 %v5158, %v5159
        %v5161 = vrot.slane %v5160, 2
        %v5162 = vmax.f32 %v5160, %v5161
        %v5163 = vrot.slane %v5162, 1
        %v5164 = vmax.f32 %v5162, %v5163
        %v5165 = vsel %vm227, %v4855, -inf
        %v5166 = vrot.slane %v5165, 4
        %v5167 = vmax.f32 %v5165, %v5166
        %v5168 = vrot.slane %v5167, 2
        %v5169 = vmax.f32 %v5167, %v5168
        %v5170 = vrot.slane %v5169, 1
        %v5171 = vmax.f32 %v5169, %v5170
        %v5172 = vsel %vm227, %v4923, -inf
        %v5173 = vrot.slane %v5172, 4
        %v5174 = vmax.f32 %v5172, %v5173
        %v5175 = vrot.slane %v5174, 2
        %v5176 = vmax.f32 %v5174, %v5175
        %v5177 = vrot.slane %v5176, 1
        %v5178 = vmax.f32 %v5176, %v5177
        %v5179 = vsel %vm227, %v4924, -inf
        %v5180 = vrot.slane %v5179, 4
        %v5181 = vmax.f32 %v5179, %v5180
        %v5182 = vrot.slane %v5181, 2
        %v5183 = vmax.f32 %v5181, %v5182
        %v5184 = vrot.slane %v5183, 1
        %v5185 = vmax.f32 %v5183, %v5184
        %v5186 = vsel %vm227, %v4925, -inf
        %v5187 = vrot.slane %v5186, 4
        %v5188 = vmax.f32 %v5186, %v5187
        %v5189 = vrot.slane %v5188, 2
        %v5190 = vmax.f32 %v5188, %v5189
        %v5191 = vrot.slane %v5190, 1
        %v5192 = vmax.f32 %v5190, %v5191
        %v5193 = vsel %vm227, %v4856, -inf
        %v5194 = vrot.slane %v5193, 4
        %v5195 = vmax.f32 %v5193, %v5194
        %v5196 = vrot.slane %v5195, 2
        %v5197 = vmax.f32 %v5195, %v5196
        %v5198 = vrot.slane %v5197, 1
        %v5199 = vmax.f32 %v5197, %v5198
        %v5200 = vsel %vm227, %v4926, -inf
        %v5201 = vrot.slane %v5200, 4
        %v5202 = vmax.f32 %v5200, %v5201
        %v5203 = vrot.slane %v5202, 2
        %v5204 = vmax.f32 %v5202, %v5203
        %v5205 = vrot.slane %v5204, 1
        %v5206 = vmax.f32 %v5204, %v5205
        %v5207 = vsel %vm227, %v4927, -inf
        %v5208 = vrot.slane %v5207, 4
        %v5209 = vmax.f32 %v5207, %v5208
        %v5210 = vrot.slane %v5209, 2
        %v5211 = vmax.f32 %v5209, %v5210
        %v5212 = vrot.slane %v5211, 1
        %v5213 = vmax.f32 %v5211, %v5212
        %v5214 = vsel %vm227, %v4928, -inf
        %v5215 = vrot.slane %v5214, 4
        %v5216 = vmax.f32 %v5214, %v5215
        %v5217 = vrot.slane %v5216, 2
        %v5218 = vmax.f32 %v5216, %v5217
        %v5219 = vrot.slane %v5218, 1
        %v5220 = vmax.f32 %v5218, %v5219
        %v5221 = vsel %vm227, %v4857, -inf
        %v5222 = vrot.slane %v5221, 4
        %v5223 = vmax.f32 %v5221, %v5222
        %v5224 = vrot.slane %v5223, 2
        %v5225 = vmax.f32 %v5223, %v5224
        %v5226 = vrot.slane %v5225, 1
        %v5227 = vmax.f32 %v5225, %v5226
        %v5228 = vsel %vm227, %v4929, -inf
        %v5229 = vrot.slane %v5228, 4
        %v5230 = vmax.f32 %v5228, %v5229
        %v5231 = vrot.slane %v5230, 2
        %v5232 = vmax.f32 %v5230, %v5231
        %v5233 = vrot.slane %v5232, 1
        %v5234 = vmax.f32 %v5232, %v5233
        %v5235 = vsel %vm227, %v4930, -inf
        %v5236 = vrot.slane %v5235, 4
        %v5237 = vmax.f32 %v5235, %v5236
        %v5238 = vrot.slane %v5237, 2
        %v5239 = vmax.f32 %v5237, %v5238
        %v5240 = vrot.slane %v5239, 1
        %v5241 = vmax.f32 %v5239, %v5240
        %v5242 = vsel %vm227, %v4931, -inf
        %v5243 = vrot.slane %v5242, 4
        %v5244 = vmax.f32 %v5242, %v5243
        %v5245 = vrot.slane %v5244, 2
        %v5246 = vmax.f32 %v5244, %v5245
        %v5247 = vrot.slane %v5246, 1
        %v5248 = vmax.f32 %v5246, %v5247
        %v5249 = vsel %vm227, %v4858, -inf
        %v5250 = vrot.slane %v5249, 4
        %v5251 = vmax.f32 %v5249, %v5250
        %v5252 = vrot.slane %v5251, 2
        %v5253 = vmax.f32 %v5251, %v5252
        %v5254 = vrot.slane %v5253, 1
        %v5255 = vmax.f32 %v5253, %v5254
        %v5256 = vsel %vm227, %v4932, -inf
        %v5257 = vrot.slane %v5256, 4
        %v5258 = vmax.f32 %v5256, %v5257
        %v5259 = vrot.slane %v5258, 2
        %v5260 = vmax.f32 %v5258, %v5259
        %v5261 = vrot.slane %v5260, 1
        %v5262 = vmax.f32 %v5260, %v5261
        %v5263 = vsel %vm227, %v4933, -inf
        %v5264 = vrot.slane %v5263, 4
        %v5265 = vmax.f32 %v5263, %v5264
        %v5266 = vrot.slane %v5265, 2
        %v5267 = vmax.f32 %v5265, %v5266
        %v5268 = vrot.slane %v5267, 1
        %v5269 = vmax.f32 %v5267, %v5268
        %v5270 = vsel %vm227, %v4934, -inf
        %v5271 = vrot.slane %v5270, 4
        %v5272 = vmax.f32 %v5270, %v5271
        %v5273 = vrot.slane %v5272, 2
        %v5274 = vmax.f32 %v5272, %v5273
        %v5275 = vrot.slane %v5274, 1
        %v5276 = vmax.f32 %v5274, %v5275
        %v5277 = vsel %vm227, %v4859, -inf
        %v5278 = vrot.slane %v5277, 4
        %v5279 = vmax.f32 %v5277, %v5278
        %v5280 = vrot.slane %v5279, 2
        %v5281 = vmax.f32 %v5279, %v5280
        %v5282 = vrot.slane %v5281, 1
        %v5283 = vmax.f32 %v5281, %v5282
        %v5284 = vsel %vm227, %v4935, -inf
        %v5285 = vrot.slane %v5284, 4
        %v5286 = vmax.f32 %v5284, %v5285
        %v5287 = vrot.slane %v5286, 2
        %v5288 = vmax.f32 %v5286, %v5287
        %v5289 = vrot.slane %v5288, 1
        %v5290 = vmax.f32 %v5288, %v5289
        %v5291 = vsel %vm227, %v4936, -inf
        %v5292 = vrot.slane %v5291, 4
        %v5293 = vmax.f32 %v5291, %v5292
        %v5294 = vrot.slane %v5293, 2
        %v5295 = vmax.f32 %v5293, %v5294
        %v5296 = vrot.slane %v5295, 1
        %v5297 = vmax.f32 %v5295, %v5296
        %v5298 = vsel %vm227, %v4937, -inf
        %v5299 = vrot.slane %v5298, 4
        %v5300 = vmax.f32 %v5298, %v5299
        %v5301 = vrot.slane %v5300, 2
        %v5302 = vmax.f32 %v5300, %v5301
        %v5303 = vrot.slane %v5302, 1
        %v5304 = vmax.f32 %v5302, %v5303
        %v5305 = vsel %vm227, %v4860, -inf
        %v5306 = vrot.slane %v5305, 4
        %v5307 = vmax.f32 %v5305, %v5306
        %v5308 = vrot.slane %v5307, 2
        %v5309 = vmax.f32 %v5307, %v5308
        %v5310 = vrot.slane %v5309, 1
        %v5311 = vmax.f32 %v5309, %v5310
        %v5312 = vsel %vm227, %v4938, -inf
        %v5313 = vrot.slane %v5312, 4
        %v5314 = vmax.f32 %v5312, %v5313
        %v5315 = vrot.slane %v5314, 2
        %v5316 = vmax.f32 %v5314, %v5315
        %v5317 = vrot.slane %v5316, 1
        %v5318 = vmax.f32 %v5316, %v5317
        %v5319 = vsel %vm227, %v4939, -inf
        %v5320 = vrot.slane %v5319, 4
        %v5321 = vmax.f32 %v5319, %v5320
        %v5322 = vrot.slane %v5321, 2
        %v5323 = vmax.f32 %v5321, %v5322
        %v5324 = vrot.slane %v5323, 1
        %v5325 = vmax.f32 %v5323, %v5324
        %v5326 = vsel %vm227, %v4940, -inf
        %v5327 = vrot.slane %v5326, 4
        %v5328 = vmax.f32 %v5326, %v5327
        %v5329 = vrot.slane %v5328, 2
        %v5330 = vmax.f32 %v5328, %v5329
        %v5331 = vrot.slane %v5330, 1
        %v5332 = vmax.f32 %v5330, %v5331
        %v5333 = vsel %vm227, %v4861, -inf
        %v5334 = vrot.slane %v5333, 4
        %v5335 = vmax.f32 %v5333, %v5334
        %v5336 = vrot.slane %v5335, 2
        %v5337 = vmax.f32 %v5335, %v5336
        %v5338 = vrot.slane %v5337, 1
        %v5339 = vmax.f32 %v5337, %v5338
        %v5340 = vsel %vm227, %v4941, -inf
        %v5341 = vrot.slane %v5340, 4
        %v5342 = vmax.f32 %v5340, %v5341
        %v5343 = vrot.slane %v5342, 2
        %v5344 = vmax.f32 %v5342, %v5343
        %v5345 = vrot.slane %v5344, 1
        %v5346 = vmax.f32 %v5344, %v5345
        %v5347 = vsel %vm227, %v4942, -inf
        %v5348 = vrot.slane %v5347, 4
        %v5349 = vmax.f32 %v5347, %v5348
        %v5350 = vrot.slane %v5349, 2
        %v5351 = vmax.f32 %v5349, %v5350
        %v5352 = vrot.slane %v5351, 1
        %v5353 = vmax.f32 %v5351, %v5352
        %v5354 = vsel %vm227, %v4943, -inf
        %v5355 = vrot.slane %v5354, 4
        %v5356 = vmax.f32 %v5354, %v5355
        %v5357 = vrot.slane %v5356, 2
        %v5358 = vmax.f32 %v5356, %v5357
        %v5359 = vrot.slane %v5358, 1
        %v5360 = vmax.f32 %v5358, %v5359
        %v5361 = vsel %vm227, %v4862, -inf
        %v5362 = vrot.slane %v5361, 4
        %v5363 = vmax.f32 %v5361, %v5362
        %v5364 = vrot.slane %v5363, 2
        %v5365 = vmax.f32 %v5363, %v5364
        %v5366 = vrot.slane %v5365, 1
        %v5367 = vmax.f32 %v5365, %v5366
        %v5368 = vsel %vm227, %v4944, -inf
        %v5369 = vrot.slane %v5368, 4
        %v5370 = vmax.f32 %v5368, %v5369
        %v5371 = vrot.slane %v5370, 2
        %v5372 = vmax.f32 %v5370, %v5371
        %v5373 = vrot.slane %v5372, 1
        %v5374 = vmax.f32 %v5372, %v5373
        %v5375 = vsel %vm227, %v4945, -inf
        %v5376 = vrot.slane %v5375, 4
        %v5377 = vmax.f32 %v5375, %v5376
        %v5378 = vrot.slane %v5377, 2
        %v5379 = vmax.f32 %v5377, %v5378
        %v5380 = vrot.slane %v5379, 1
        %v5381 = vmax.f32 %v5379, %v5380
        %v5382 = vsel %vm227, %v4946, -inf
        %v5383 = vrot.slane %v5382, 4
        %v5384 = vmax.f32 %v5382, %v5383
        %v5385 = vrot.slane %v5384, 2
        %v5386 = vmax.f32 %v5384, %v5385
        %v5387 = vrot.slane %v5386, 1
        %v5388 = vmax.f32 %v5386, %v5387
        %v5389 = vsel %vm227, %v4863, -inf
        %v5390 = vrot.slane %v5389, 4
        %v5391 = vmax.f32 %v5389, %v5390
        %v5392 = vrot.slane %v5391, 2
        %v5393 = vmax.f32 %v5391, %v5392
        %v5394 = vrot.slane %v5393, 1
        %v5395 = vmax.f32 %v5393, %v5394
        %v5396 = vsel %vm227, %v4947, -inf
        %v5397 = vrot.slane %v5396, 4
        %v5398 = vmax.f32 %v5396, %v5397
        %v5399 = vrot.slane %v5398, 2
        %v5400 = vmax.f32 %v5398, %v5399
        %v5401 = vrot.slane %v5400, 1
        %v5402 = vmax.f32 %v5400, %v5401
        %v5403 = vsel %vm227, %v4948, -inf
        %v5404 = vrot.slane %v5403, 4
        %v5405 = vmax.f32 %v5403, %v5404
        %v5406 = vrot.slane %v5405, 2
        %v5407 = vmax.f32 %v5405, %v5406
        %v5408 = vrot.slane %v5407, 1
        %v5409 = vmax.f32 %v5407, %v5408
        %v5410 = vsel %vm227, %v4949, -inf
        %v5411 = vrot.slane %v5410, 4
        %v5412 = vmax.f32 %v5410, %v5411
        %v5413 = vrot.slane %v5412, 2
        %v5414 = vmax.f32 %v5412, %v5413
        %v5415 = vrot.slane %v5414, 1
        %v5416 = vmax.f32 %v5414, %v5415
        %v5417 = vsel %vm227, %v4864, -inf
        %v5418 = vrot.slane %v5417, 4
        %v5419 = vmax.f32 %v5417, %v5418
        %v5420 = vrot.slane %v5419, 2
        %v5421 = vmax.f32 %v5419, %v5420
        %v5422 = vrot.slane %v5421, 1
        %v5423 = vmax.f32 %v5421, %v5422
        %v5424 = vsel %vm227, %v4950, -inf
        %v5425 = vrot.slane %v5424, 4
        %v5426 = vmax.f32 %v5424, %v5425
        %v5427 = vrot.slane %v5426, 2
        %v5428 = vmax.f32 %v5426, %v5427
        %v5429 = vrot.slane %v5428, 1
        %v5430 = vmax.f32 %v5428, %v5429
        %v5431 = vsel %vm227, %v4951, -inf
        %v5432 = vrot.slane %v5431, 4
        %v5433 = vmax.f32 %v5431, %v5432
        %v5434 = vrot.slane %v5433, 2
        %v5435 = vmax.f32 %v5433, %v5434
        %v5436 = vrot.slane %v5435, 1
        %v5437 = vmax.f32 %v5435, %v5436
        %v5438 = vsel %vm227, %v4952, -inf
        %v5439 = vrot.slane %v5438, 4
        %v5440 = vmax.f32 %v5438, %v5439
        %v5441 = vrot.slane %v5440, 2
        %v5442 = vmax.f32 %v5440, %v5441
        %v5443 = vrot.slane %v5442, 1
        %v5444 = vmax.f32 %v5442, %v5443
        %v5445 = vsel %vm227, %v4865, -inf
        %v5446 = vrot.slane %v5445, 4
        %v5447 = vmax.f32 %v5445, %v5446
        %v5448 = vrot.slane %v5447, 2
        %v5449 = vmax.f32 %v5447, %v5448
        %v5450 = vrot.slane %v5449, 1
        %v5451 = vmax.f32 %v5449, %v5450
        %v5452 = vsel %vm227, %v4953, -inf
        %v5453 = vrot.slane %v5452, 4
        %v5454 = vmax.f32 %v5452, %v5453
        %v5455 = vrot.slane %v5454, 2
        %v5456 = vmax.f32 %v5454, %v5455
        %v5457 = vrot.slane %v5456, 1
        %v5458 = vmax.f32 %v5456, %v5457
        %v5459 = vsel %vm227, %v4954, -inf
        %v5460 = vrot.slane %v5459, 4
        %v5461 = vmax.f32 %v5459, %v5460
        %v5462 = vrot.slane %v5461, 2
        %v5463 = vmax.f32 %v5461, %v5462
        %v5464 = vrot.slane %v5463, 1
        %v5465 = vmax.f32 %v5463, %v5464
        %v5466 = vsel %vm227, %v4955, -inf
        %v5467 = vrot.slane %v5466, 4
        %v5468 = vmax.f32 %v5466, %v5467
        %v5469 = vrot.slane %v5468, 2
        %v5470 = vmax.f32 %v5468, %v5469
        %v5471 = vrot.slane %v5470, 1
        %v5472 = vmax.f32 %v5470, %v5471
        %v5473 = vsel %vm227, %v4866, -inf
        %v5474 = vrot.slane %v5473, 4
        %v5475 = vmax.f32 %v5473, %v5474
        %v5476 = vrot.slane %v5475, 2
        %v5477 = vmax.f32 %v5475, %v5476
        %v5478 = vrot.slane %v5477, 1
        %v5479 = vmax.f32 %v5477, %v5478
        %v5480 = vsel %vm227, %v4956, -inf
        %v5481 = vrot.slane %v5480, 4
        %v5482 = vmax.f32 %v5480, %v5481
        %v5483 = vrot.slane %v5482, 2
        %v5484 = vmax.f32 %v5482, %v5483
        %v5485 = vrot.slane %v5484, 1
        %v5486 = vmax.f32 %v5484, %v5485
        %v5487 = vsel %vm227, %v4957, -inf
        %v5488 = vrot.slane %v5487, 4
        %v5489 = vmax.f32 %v5487, %v5488
        %v5490 = vrot.slane %v5489, 2
        %v5491 = vmax.f32 %v5489, %v5490
        %v5492 = vrot.slane %v5491, 1
        %v5493 = vmax.f32 %v5491, %v5492
        %v5494 = vsel %vm227, %v4958, -inf
        %v5495 = vrot.slane %v5494, 4
        %v5496 = vmax.f32 %v5494, %v5495
        %v5497 = vrot.slane %v5496, 2
        %v5498 = vmax.f32 %v5496, %v5497
        %v5499 = vrot.slane %v5498, 1
        %v5500 = vmax.f32 %v5498, %v5499
        %v5501 = vsel %vm227, %v4867, -inf
        %v5502 = vrot.slane %v5501, 4
        %v5503 = vmax.f32 %v5501, %v5502
        %v5504 = vrot.slane %v5503, 2
        %v5505 = vmax.f32 %v5503, %v5504
        %v5506 = vrot.slane %v5505, 1
        %v5507 = vmax.f32 %v5505, %v5506
        %v5508 = vsel %vm227, %v4959, -inf
        %v5509 = vrot.slane %v5508, 4
        %v5510 = vmax.f32 %v5508, %v5509
        %v5511 = vrot.slane %v5510, 2
        %v5512 = vmax.f32 %v5510, %v5511
        %v5513 = vrot.slane %v5512, 1
        %v5514 = vmax.f32 %v5512, %v5513
        %v5515 = vsel %vm227, %v4960, -inf
        %v5516 = vrot.slane %v5515, 4
        %v5517 = vmax.f32 %v5515, %v5516
        %v5518 = vrot.slane %v5517, 2
        %v5519 = vmax.f32 %v5517, %v5518
        %v5520 = vrot.slane %v5519, 1
        %v5521 = vmax.f32 %v5519, %v5520
        %v5522 = vsel %vm227, %v4961, -inf
        %v5523 = vrot.slane %v5522, 4
        %v5524 = vmax.f32 %v5522, %v5523
        %v5525 = vrot.slane %v5524, 2
        %v5526 = vmax.f32 %v5524, %v5525
        %v5527 = vrot.slane %v5526, 1
        %v5528 = vmax.f32 %v5526, %v5527
        %v5529 = vsel %vm227, %v4868, -inf
        %v5530 = vrot.slane %v5529, 4
        %v5531 = vmax.f32 %v5529, %v5530
        %v5532 = vrot.slane %v5531, 2
        %v5533 = vmax.f32 %v5531, %v5532
        %v5534 = vrot.slane %v5533, 1
        %v5535 = vmax.f32 %v5533, %v5534
        %v5536 = vsel %vm227, %v4962, -inf
        %v5537 = vrot.slane %v5536, 4
        %v5538 = vmax.f32 %v5536, %v5537
        %v5539 = vrot.slane %v5538, 2
        %v5540 = vmax.f32 %v5538, %v5539
        %v5541 = vrot.slane %v5540, 1
        %v5542 = vmax.f32 %v5540, %v5541
        %v5543 = vsel %vm227, %v4963, -inf
        %v5544 = vrot.slane %v5543, 4
        %v5545 = vmax.f32 %v5543, %v5544
        %v5546 = vrot.slane %v5545, 2
        %v5547 = vmax.f32 %v5545, %v5546
        %v5548 = vrot.slane %v5547, 1
        %v5549 = vmax.f32 %v5547, %v5548
        %v5550 = vsel %vm227, %v4964, -inf
        %v5551 = vrot.slane %v5550, 4
        %v5552 = vmax.f32 %v5550, %v5551
        %v5553 = vrot.slane %v5552, 2
        %v5554 = vmax.f32 %v5552, %v5553
        %v5555 = vrot.slane %v5554, 1
        %v5556 = vmax.f32 %v5554, %v5555
        %v5557 = vsel %vm227, %v4869, -inf
        %v5558 = vrot.slane %v5557, 4
        %v5559 = vmax.f32 %v5557, %v5558
        %v5560 = vrot.slane %v5559, 2
        %v5561 = vmax.f32 %v5559, %v5560
        %v5562 = vrot.slane %v5561, 1
        %v5563 = vmax.f32 %v5561, %v5562
        %v5564 = vsel %vm227, %v4965, -inf
        %v5565 = vrot.slane %v5564, 4
        %v5566 = vmax.f32 %v5564, %v5565
        %v5567 = vrot.slane %v5566, 2
        %v5568 = vmax.f32 %v5566, %v5567
        %v5569 = vrot.slane %v5568, 1
        %v5570 = vmax.f32 %v5568, %v5569
        %v5571 = vsel %vm227, %v4966, -inf
        %v5572 = vrot.slane %v5571, 4
        %v5573 = vmax.f32 %v5571, %v5572
        %v5574 = vrot.slane %v5573, 2
        %v5575 = vmax.f32 %v5573, %v5574
        %v5576 = vrot.slane %v5575, 1
        %v5577 = vmax.f32 %v5575, %v5576
        %v5578 = vsel %vm227, %v4967, -inf
        %v5579 = vrot.slane %v5578, 4
        %v5580 = vmax.f32 %v5578, %v5579
        %v5581 = vrot.slane %v5580, 2
        %v5582 = vmax.f32 %v5580, %v5581
        %v5583 = vrot.slane %v5582, 1
        %v5584 = vmax.f32 %v5582, %v5583
        %v5585 = vsel %vm227, %v4870, -inf
        %v5586 = vrot.slane %v5585, 4
        %v5587 = vmax.f32 %v5585, %v5586
        %v5588 = vrot.slane %v5587, 2
        %v5589 = vmax.f32 %v5587, %v5588
        %v5590 = vrot.slane %v5589, 1
        %v5591 = vmax.f32 %v5589, %v5590
        %v5592 = vsel %vm227, %v4968, -inf
        %v5593 = vrot.slane %v5592, 4
        %v5594 = vmax.f32 %v5592, %v5593
        %v5595 = vrot.slane %v5594, 2
        %v5596 = vmax.f32 %v5594, %v5595
        %v5597 = vrot.slane %v5596, 1
        %v5598 = vmax.f32 %v5596, %v5597
        %v5599 = vsel %vm227, %v4969, -inf
        %v5600 = vrot.slane %v5599, 4
        %v5601 = vmax.f32 %v5599, %v5600
        %v5602 = vrot.slane %v5601, 2
        %v5603 = vmax.f32 %v5601, %v5602
        %v5604 = vrot.slane %v5603, 1
        %v5605 = vmax.f32 %v5603, %v5604
        %v5606 = vsel %vm227, %v4970, -inf
        %v5607 = vrot.slane %v5606, 4
        %v5608 = vmax.f32 %v5606, %v5607
        %v5609 = vrot.slane %v5608, 2
        %v5610 = vmax.f32 %v5608, %v5609
        %v5611 = vrot.slane %v5610, 1
        %v5612 = vmax.f32 %v5610, %v5611
        %v5613 = vsel %vm227, %v4871, -inf
        %v5614 = vrot.slane %v5613, 4
        %v5615 = vmax.f32 %v5613, %v5614
        %v5616 = vrot.slane %v5615, 2
        %v5617 = vmax.f32 %v5615, %v5616
        %v5618 = vrot.slane %v5617, 1
        %v5619 = vmax.f32 %v5617, %v5618
        %v5620 = vsel %vm227, %v4971, -inf
        %v5621 = vrot.slane %v5620, 4
        %v5622 = vmax.f32 %v5620, %v5621
        %v5623 = vrot.slane %v5622, 2
        %v5624 = vmax.f32 %v5622, %v5623
        %v5625 = vrot.slane %v5624, 1
        %v5626 = vmax.f32 %v5624, %v5625
        %v5627 = vsel %vm227, %v4972, -inf
        %v5628 = vrot.slane %v5627, 4
        %v5629 = vmax.f32 %v5627, %v5628
        %v5630 = vrot.slane %v5629, 2
        %v5631 = vmax.f32 %v5629, %v5630
        %v5632 = vrot.slane %v5631, 1
        %v5633 = vmax.f32 %v5631, %v5632
        %v5634 = vsel %vm227, %v4973, -inf
        %v5635 = vrot.slane %v5634, 4
        %v5636 = vmax.f32 %v5634, %v5635
        %v5637 = vrot.slane %v5636, 2
        %v5638 = vmax.f32 %v5636, %v5637
        %v5639 = vrot.slane %v5638, 1
        %v5640 = vmax.f32 %v5638, %v5639
        %v5641 = vsel %vm227, %v4872, -inf
        %v5642 = vrot.slane %v5641, 4
        %v5643 = vmax.f32 %v5641, %v5642
        %v5644 = vrot.slane %v5643, 2
        %v5645 = vmax.f32 %v5643, %v5644
        %v5646 = vrot.slane %v5645, 1
        %v5647 = vmax.f32 %v5645, %v5646
        %v5648 = vsel %vm227, %v4974, -inf
        %v5649 = vrot.slane %v5648, 4
        %v5650 = vmax.f32 %v5648, %v5649
        %v5651 = vrot.slane %v5650, 2
        %v5652 = vmax.f32 %v5650, %v5651
        %v5653 = vrot.slane %v5652, 1
        %v5654 = vmax.f32 %v5652, %v5653
        %v5655 = vsel %vm227, %v4975, -inf
        %v5656 = vrot.slane %v5655, 4
        %v5657 = vmax.f32 %v5655, %v5656
        %v5658 = vrot.slane %v5657, 2
        %v5659 = vmax.f32 %v5657, %v5658
        %v5660 = vrot.slane %v5659, 1
        %v5661 = vmax.f32 %v5659, %v5660
        %v5662 = vsel %vm227, %v4976, -inf
        %v5663 = vrot.slane %v5662, 4
        %v5664 = vmax.f32 %v5662, %v5663
        %v5665 = vrot.slane %v5664, 2
        %v5666 = vmax.f32 %v5664, %v5665
        %v5667 = vrot.slane %v5666, 1
        %v5668 = vmax.f32 %v5666, %v5667
        %v5669 = vsel %vm227, %v4873, -inf
        %v5670 = vrot.slane %v5669, 4
        %v5671 = vmax.f32 %v5669, %v5670
        %v5672 = vrot.slane %v5671, 2
        %v5673 = vmax.f32 %v5671, %v5672
        %v5674 = vrot.slane %v5673, 1
        %v5675 = vmax.f32 %v5673, %v5674
        %v5676 = vsel %vm227, %v4977, -inf
        %v5677 = vrot.slane %v5676, 4
        %v5678 = vmax.f32 %v5676, %v5677
        %v5679 = vrot.slane %v5678, 2
        %v5680 = vmax.f32 %v5678, %v5679
        %v5681 = vrot.slane %v5680, 1
        %v5682 = vmax.f32 %v5680, %v5681
        %v5683 = vsel %vm227, %v4978, -inf
        %v5684 = vrot.slane %v5683, 4
        %v5685 = vmax.f32 %v5683, %v5684
        %v5686 = vrot.slane %v5685, 2
        %v5687 = vmax.f32 %v5685, %v5686
        %v5688 = vrot.slane %v5687, 1
        %v5689 = vmax.f32 %v5687, %v5688
        %v5690 = vsel %vm227, %v4979, -inf
        %v5691 = vrot.slane %v5690, 4
        %v5692 = vmax.f32 %v5690, %v5691
        %v5693 = vrot.slane %v5692, 2
        %v5694 = vmax.f32 %v5692, %v5693
        %v5695 = vrot.slane %v5694, 1
        %v5696 = vmax.f32 %v5694, %v5695
        %v5697 = vsel %vm227, %v4874, -inf
        %v5698 = vrot.slane %v5697, 4
        %v5699 = vmax.f32 %v5697, %v5698
        %v5700 = vrot.slane %v5699, 2
        %v5701 = vmax.f32 %v5699, %v5700
        %v5702 = vrot.slane %v5701, 1
        %v5703 = vmax.f32 %v5701, %v5702
        %v5704 = vsel %vm227, %v4980, -inf
        %v5705 = vrot.slane %v5704, 4
        %v5706 = vmax.f32 %v5704, %v5705
        %v5707 = vrot.slane %v5706, 2
        %v5708 = vmax.f32 %v5706, %v5707
        %v5709 = vrot.slane %v5708, 1
        %v5710 = vmax.f32 %v5708, %v5709
        %v5711 = vsel %vm227, %v4981, -inf
        %v5712 = vrot.slane %v5711, 4
        %v5713 = vmax.f32 %v5711, %v5712
        %v5714 = vrot.slane %v5713, 2
        %v5715 = vmax.f32 %v5713, %v5714
        %v5716 = vrot.slane %v5715, 1
        %v5717 = vmax.f32 %v5715, %v5716
        %v5718 = vsel %vm227, %v4982, -inf
        %v5719 = vrot.slane %v5718, 4
        %v5720 = vmax.f32 %v5718, %v5719
        %v5721 = vrot.slane %v5720, 2
        %v5722 = vmax.f32 %v5720, %v5721
        %v5723 = vrot.slane %v5722, 1
        %v5724 = vmax.f32 %v5722, %v5723
        %v5725 = vsel %vm227, %v4875, -inf
        %v5726 = vrot.slane %v5725, 4
        %v5727 = vmax.f32 %v5725, %v5726
        %v5728 = vrot.slane %v5727, 2
        %v5729 = vmax.f32 %v5727, %v5728
        %v5730 = vrot.slane %v5729, 1
        %v5731 = vmax.f32 %v5729, %v5730
        %v5732 = vsel %vm227, %v4983, -inf
        %v5733 = vrot.slane %v5732, 4
        %v5734 = vmax.f32 %v5732, %v5733
        %v5735 = vrot.slane %v5734, 2
        %v5736 = vmax.f32 %v5734, %v5735
        %v5737 = vrot.slane %v5736, 1
        %v5738 = vmax.f32 %v5736, %v5737
        %v5739 = vsel %vm227, %v4984, -inf
        %v5740 = vrot.slane %v5739, 4
        %v5741 = vmax.f32 %v5739, %v5740
        %v5742 = vrot.slane %v5741, 2
        %v5743 = vmax.f32 %v5741, %v5742
        %v5744 = vrot.slane %v5743, 1
        %v5745 = vmax.f32 %v5743, %v5744
        %v5746 = vsel %vm227, %v4985, -inf
        %v5747 = vrot.slane %v5746, 4
        %v5748 = vmax.f32 %v5746, %v5747
        %v5749 = vrot.slane %v5748, 2
        %v5750 = vmax.f32 %v5748, %v5749
        %v5751 = vrot.slane %v5750, 1
        %v5752 = vmax.f32 %v5750, %v5751
        %v5753 = vsel %vm227, %v4876, -inf
        %v5754 = vrot.slane %v5753, 4
        %v5755 = vmax.f32 %v5753, %v5754
        %v5756 = vrot.slane %v5755, 2
        %v5757 = vmax.f32 %v5755, %v5756
        %v5758 = vrot.slane %v5757, 1
        %v5759 = vmax.f32 %v5757, %v5758
        %v5760 = vsel %vm227, %v4986, -inf
        %v5761 = vrot.slane %v5760, 4
        %v5762 = vmax.f32 %v5760, %v5761
        %v5763 = vrot.slane %v5762, 2
        %v5764 = vmax.f32 %v5762, %v5763
        %v5765 = vrot.slane %v5764, 1
        %v5766 = vmax.f32 %v5764, %v5765
        %v5767 = vsel %vm227, %v4987, -inf
        %v5768 = vrot.slane %v5767, 4
        %v5769 = vmax.f32 %v5767, %v5768
        %v5770 = vrot.slane %v5769, 2
        %v5771 = vmax.f32 %v5769, %v5770
        %v5772 = vrot.slane %v5771, 1
        %v5773 = vmax.f32 %v5771, %v5772
        %v5774 = vsel %vm227, %v4988, -inf
        %v5775 = vrot.slane %v5774, 4
        %v5776 = vmax.f32 %v5774, %v5775
        %v5777 = vrot.slane %v5776, 2
        %v5778 = vmax.f32 %v5776, %v5777
        %v5779 = vrot.slane %v5778, 1
        %v5780 = vmax.f32 %v5778, %v5779
        %v5781 = vsel %vm227, %v4877, -inf
        %v5782 = vrot.slane %v5781, 4
        %v5783 = vmax.f32 %v5781, %v5782
        %v5784 = vrot.slane %v5783, 2
        %v5785 = vmax.f32 %v5783, %v5784
        %v5786 = vrot.slane %v5785, 1
        %v5787 = vmax.f32 %v5785, %v5786
        %v5788 = vsel %vm227, %v4989, -inf
        %v5789 = vrot.slane %v5788, 4
        %v5790 = vmax.f32 %v5788, %v5789
        %v5791 = vrot.slane %v5790, 2
        %v5792 = vmax.f32 %v5790, %v5791
        %v5793 = vrot.slane %v5792, 1
        %v5794 = vmax.f32 %v5792, %v5793
        %v5795 = vsel %vm227, %v4990, -inf
        %v5796 = vrot.slane %v5795, 4
        %v5797 = vmax.f32 %v5795, %v5796
        %v5798 = vrot.slane %v5797, 2
        %v5799 = vmax.f32 %v5797, %v5798
        %v5800 = vrot.slane %v5799, 1
        %v5801 = vmax.f32 %v5799, %v5800
        %v5802 = vsel %vm227, %v4991, -inf
        %v5803 = vrot.slane %v5802, 4
        %v5804 = vmax.f32 %v5802, %v5803
        %v5805 = vrot.slane %v5804, 2
        %v5806 = vmax.f32 %v5804, %v5805
        %v5807 = vrot.slane %v5806, 1
        %v5808 = vmax.f32 %v5806, %v5807
        %v5809 = vsel %vm227, %v4878, -inf
        %v5810 = vrot.slane %v5809, 4
        %v5811 = vmax.f32 %v5809, %v5810
        %v5812 = vrot.slane %v5811, 2
        %v5813 = vmax.f32 %v5811, %v5812
        %v5814 = vrot.slane %v5813, 1
        %v5815 = vmax.f32 %v5813, %v5814
        %v5816 = vsel %vm227, %v4992, -inf
        %v5817 = vrot.slane %v5816, 4
        %v5818 = vmax.f32 %v5816, %v5817
        %v5819 = vrot.slane %v5818, 2
        %v5820 = vmax.f32 %v5818, %v5819
        %v5821 = vrot.slane %v5820, 1
        %v5822 = vmax.f32 %v5820, %v5821
        %v5823 = vsel %vm227, %v4993, -inf
        %v5824 = vrot.slane %v5823, 4
        %v5825 = vmax.f32 %v5823, %v5824
        %v5826 = vrot.slane %v5825, 2
        %v5827 = vmax.f32 %v5825, %v5826
        %v5828 = vrot.slane %v5827, 1
        %v5829 = vmax.f32 %v5827, %v5828
        %v5830 = vsel %vm227, %v4994, -inf
        %v5831 = vrot.slane %v5830, 4
        %v5832 = vmax.f32 %v5830, %v5831
        %v5833 = vrot.slane %v5832, 2
        %v5834 = vmax.f32 %v5832, %v5833
        %v5835 = vrot.slane %v5834, 1
        %v5836 = vmax.f32 %v5834, %v5835
        %v5837 = vsel %vm227, %v4879, -inf
        %v5838 = vrot.slane %v5837, 4
        %v5839 = vmax.f32 %v5837, %v5838
        %v5840 = vrot.slane %v5839, 2
        %v5841 = vmax.f32 %v5839, %v5840
        %v5842 = vrot.slane %v5841, 1
        %v5843 = vmax.f32 %v5841, %v5842
        %v5844 = vsel %vm227, %v4995, -inf
        %v5845 = vrot.slane %v5844, 4
        %v5846 = vmax.f32 %v5844, %v5845
        %v5847 = vrot.slane %v5846, 2
        %v5848 = vmax.f32 %v5846, %v5847
        %v5849 = vrot.slane %v5848, 1
        %v5850 = vmax.f32 %v5848, %v5849
        %v5851 = vsel %vm227, %v4996, -inf
        %v5852 = vrot.slane %v5851, 4
        %v5853 = vmax.f32 %v5851, %v5852
        %v5854 = vrot.slane %v5853, 2
        %v5855 = vmax.f32 %v5853, %v5854
        %v5856 = vrot.slane %v5855, 1
        %v5857 = vmax.f32 %v5855, %v5856
        %v5858 = vsel %vm227, %v4997, -inf
        %v5859 = vrot.slane %v5858, 4
        %v5860 = vmax.f32 %v5858, %v5859
        %v5861 = vrot.slane %v5860, 2
        %v5862 = vmax.f32 %v5860, %v5861
        %v5863 = vrot.slane %v5862, 1
        %v5864 = vmax.f32 %v5862, %v5863
        %v5865 = vsel %vm227, %v4880, -inf
        %v5866 = vrot.slane %v5865, 4
        %v5867 = vmax.f32 %v5865, %v5866
        %v5868 = vrot.slane %v5867, 2
        %v5869 = vmax.f32 %v5867, %v5868
        %v5870 = vrot.slane %v5869, 1
        %v5871 = vmax.f32 %v5869, %v5870
        %v5872 = vsel %vm227, %v4998, -inf
        %v5873 = vrot.slane %v5872, 4
        %v5874 = vmax.f32 %v5872, %v5873
        %v5875 = vrot.slane %v5874, 2
        %v5876 = vmax.f32 %v5874, %v5875
        %v5877 = vrot.slane %v5876, 1
        %v5878 = vmax.f32 %v5876, %v5877
        %v5879 = vsel %vm227, %v4999, -inf
        %v5880 = vrot.slane %v5879, 4
        %v5881 = vmax.f32 %v5879, %v5880
        %v5882 = vrot.slane %v5881, 2
        %v5883 = vmax.f32 %v5881, %v5882
        %v5884 = vrot.slane %v5883, 1
        %v5885 = vmax.f32 %v5883, %v5884
        %v5886 = vsel %vm227, %v5000, -inf
        %v5887 = vrot.slane %v5886, 4
        %v5888 = vmax.f32 %v5886, %v5887
        %v5889 = vrot.slane %v5888, 2
        %v5890 = vmax.f32 %v5888, %v5889
        %v5891 = vrot.slane %v5890, 1
        %v5892 = vmax.f32 %v5890, %v5891
        %v5893 = vsel %vm227, %v4881, -inf
        %v5894 = vrot.slane %v5893, 4
        %v5895 = vmax.f32 %v5893, %v5894
        %v5896 = vrot.slane %v5895, 2
        %v5897 = vmax.f32 %v5895, %v5896
        %v5898 = vrot.slane %v5897, 1
        %v5899 = vmax.f32 %v5897, %v5898
        %v5900 = vsel %vm227, %v5001, -inf
        %v5901 = vrot.slane %v5900, 4
        %v5902 = vmax.f32 %v5900, %v5901
        %v5903 = vrot.slane %v5902, 2
        %v5904 = vmax.f32 %v5902, %v5903
        %v5905 = vrot.slane %v5904, 1
        %v5906 = vmax.f32 %v5904, %v5905
        %v5907 = vsel %vm227, %v5002, -inf
        %v5908 = vrot.slane %v5907, 4
        %v5909 = vmax.f32 %v5907, %v5908
        %v5910 = vrot.slane %v5909, 2
        %v5911 = vmax.f32 %v5909, %v5910
        %v5912 = vrot.slane %v5911, 1
        %v5913 = vmax.f32 %v5911, %v5912
        %v5914 = vsel %vm227, %v5003, -inf
        %v5915 = vrot.slane %v5914, 4
        %v5916 = vmax.f32 %v5914, %v5915
        %v5917 = vrot.slane %v5916, 2
        %v5918 = vmax.f32 %v5916, %v5917
        %v5919 = vrot.slane %v5918, 1
        %v5920 = vmax.f32 %v5918, %v5919
        %v5921 = vsel %vm227, %v4882, -inf
        %v5922 = vrot.slane %v5921, 4
        %v5923 = vmax.f32 %v5921, %v5922
        %v5924 = vrot.slane %v5923, 2
        %v5925 = vmax.f32 %v5923, %v5924
        %v5926 = vrot.slane %v5925, 1
        %v5927 = vmax.f32 %v5925, %v5926
        %v5928 = vsel %vm227, %v5004, -inf
        %v5929 = vrot.slane %v5928, 4
        %v5930 = vmax.f32 %v5928, %v5929
        %v5931 = vrot.slane %v5930, 2
        %v5932 = vmax.f32 %v5930, %v5931
        %v5933 = vrot.slane %v5932, 1
        %v5934 = vmax.f32 %v5932, %v5933
        %v5935 = vsel %vm227, %v5005, -inf
        %v5936 = vrot.slane %v5935, 4
        %v5937 = vmax.f32 %v5935, %v5936
        %v5938 = vrot.slane %v5937, 2
        %v5939 = vmax.f32 %v5937, %v5938
        %v5940 = vrot.slane %v5939, 1
        %v5941 = vmax.f32 %v5939, %v5940
        %v5942 = vsel %vm227, %v5006, -inf
        %v5943 = vrot.slane %v5942, 4
        %v5944 = vmax.f32 %v5942, %v5943
        %v5945 = vrot.slane %v5944, 2
        %v5946 = vmax.f32 %v5944, %v5945
        %v5947 = vrot.slane %v5946, 1
        %v5948 = vmax.f32 %v5946, %v5947
        %v5949 = vsel %vm227, %v4883, -inf
        %v5950 = vrot.slane %v5949, 4
        %v5951 = vmax.f32 %v5949, %v5950
        %v5952 = vrot.slane %v5951, 2
        %v5953 = vmax.f32 %v5951, %v5952
        %v5954 = vrot.slane %v5953, 1
        %v5955 = vmax.f32 %v5953, %v5954
        %v5956 = vsel %vm227, %v5007, -inf
        %v5957 = vrot.slane %v5956, 4
        %v5958 = vmax.f32 %v5956, %v5957
        %v5959 = vrot.slane %v5958, 2
        %v5960 = vmax.f32 %v5958, %v5959
        %v5961 = vrot.slane %v5960, 1
        %v5962 = vmax.f32 %v5960, %v5961
        %v5963 = vsel %vm227, %v5008, -inf
        %v5964 = vrot.slane %v5963, 4
        %v5965 = vmax.f32 %v5963, %v5964
        %v5966 = vrot.slane %v5965, 2
        %v5967 = vmax.f32 %v5965, %v5966
        %v5968 = vrot.slane %v5967, 1
        %v5969 = vmax.f32 %v5967, %v5968
        %v5970 = vsel %vm227, %v5009, -inf
        %v5971 = vrot.slane %v5970, 4
        %v5972 = vmax.f32 %v5970, %v5971
        %v5973 = vrot.slane %v5972, 2
        %v5974 = vmax.f32 %v5972, %v5973
        %v5975 = vrot.slane %v5974, 1
        %v5976 = vmax.f32 %v5974, %v5975
        %v5977 = vsel %vm227, %v4884, -inf
        %v5978 = vrot.slane %v5977, 4
        %v5979 = vmax.f32 %v5977, %v5978
        %v5980 = vrot.slane %v5979, 2
        %v5981 = vmax.f32 %v5979, %v5980
        %v5982 = vrot.slane %v5981, 1
        %v5983 = vmax.f32 %v5981, %v5982
        %v5984 = vsel %vm227, %v5010, -inf
        %v5985 = vrot.slane %v5984, 4
        %v5986 = vmax.f32 %v5984, %v5985
        %v5987 = vrot.slane %v5986, 2
        %v5988 = vmax.f32 %v5986, %v5987
        %v5989 = vrot.slane %v5988, 1
        %v5990 = vmax.f32 %v5988, %v5989
        %v5991 = vsel %vm227, %v5011, -inf
        %v5992 = vrot.slane %v5991, 4
        %v5993 = vmax.f32 %v5991, %v5992
        %v5994 = vrot.slane %v5993, 2
        %v5995 = vmax.f32 %v5993, %v5994
        %v5996 = vrot.slane %v5995, 1
        %v5997 = vmax.f32 %v5995, %v5996
        %v5998 = vsel %vm227, %v5012, -inf
        %v5999 = vrot.slane %v5998, 4
        %v6000 = vmax.f32 %v5998, %v5999
        %v6001 = vrot.slane %v6000, 2
        %v6002 = vmax.f32 %v6000, %v6001
        %v6003 = vrot.slane %v6002, 1
        %v6004 = vmax.f32 %v6002, %v6003
        %v6005 = vmax.f32 %v5115, %v5171
        %v6006 = vmax.f32 %v5122, %v5178
        %v6007 = vmax.f32 %v5129, %v5185
        %v6008 = vmax.f32 %v5136, %v5192
        %v6009 = vmax.f32 %v5143, %v5199
        %v6010 = vmax.f32 %v5150, %v5206
        %v6011 = vmax.f32 %v5157, %v5213
        %v6012 = vmax.f32 %v5164, %v5220
        %v6013 = vmax.f32 %v5227, %v5283
        %v6014 = vmax.f32 %v5234, %v5290
        %v6015 = vmax.f32 %v5241, %v5297
        %v6016 = vmax.f32 %v5248, %v5304
        %v6017 = vmax.f32 %v5255, %v5311
        %v6018 = vmax.f32 %v5262, %v5318
        %v6019 = vmax.f32 %v5269, %v5325
        %v6020 = vmax.f32 %v5276, %v5332
        %v6021 = vmax.f32 %v5339, %v5395
        %v6022 = vmax.f32 %v5346, %v5402
        %v6023 = vmax.f32 %v5353, %v5409
        %v6024 = vmax.f32 %v5360, %v5416
        %v6025 = vmax.f32 %v5367, %v5423
        %v6026 = vmax.f32 %v5374, %v5430
        %v6027 = vmax.f32 %v5381, %v5437
        %v6028 = vmax.f32 %v5388, %v5444
        %v6029 = vmax.f32 %v5451, %v5507
        %v6030 = vmax.f32 %v5458, %v5514
        %v6031 = vmax.f32 %v5465, %v5521
        %v6032 = vmax.f32 %v5472, %v5528
        %v6033 = vmax.f32 %v5479, %v5535
        %v6034 = vmax.f32 %v5486, %v5542
        %v6035 = vmax.f32 %v5493, %v5549
        %v6036 = vmax.f32 %v5500, %v5556
        %v6037 = vmax.f32 %v5563, %v5619
        %v6038 = vmax.f32 %v5570, %v5626
        %v6039 = vmax.f32 %v5577, %v5633
        %v6040 = vmax.f32 %v5584, %v5640
        %v6041 = vmax.f32 %v5591, %v5647
        %v6042 = vmax.f32 %v5598, %v5654
        %v6043 = vmax.f32 %v5605, %v5661
        %v6044 = vmax.f32 %v5612, %v5668
        %v6045 = vmax.f32 %v5675, %v5731
        %v6046 = vmax.f32 %v5682, %v5738
        %v6047 = vmax.f32 %v5689, %v5745
        %v6048 = vmax.f32 %v5696, %v5752
        %v6049 = vmax.f32 %v5703, %v5759
        %v6050 = vmax.f32 %v5710, %v5766
        %v6051 = vmax.f32 %v5717, %v5773
        %v6052 = vmax.f32 %v5724, %v5780
        %v6053 = vmax.f32 %v5787, %v5843
        %v6054 = vmax.f32 %v5794, %v5850
        %v6055 = vmax.f32 %v5801, %v5857
        %v6056 = vmax.f32 %v5808, %v5864
        %v6057 = vmax.f32 %v5815, %v5871
        %v6058 = vmax.f32 %v5822, %v5878
        %v6059 = vmax.f32 %v5829, %v5885
        %v6060 = vmax.f32 %v5836, %v5892
        %v6061 = vmax.f32 %v5899, %v5955
        %v6062 = vmax.f32 %v5906, %v5962
        %v6063 = vmax.f32 %v5913, %v5969
        %v6064 = vmax.f32 %v5920, %v5976
        %v6065 = vmax.f32 %v5927, %v5983
        %v6066 = vmax.f32 %v5934, %v5990
        %v6067 = vmax.f32 %v5941, %v5997
        %v6068 = vmax.f32 %v5948, %v6004
        %vm6133 = vcmask 1041409
        %v6134 = vsel %vm6133, %v6006, %v6005
        %vm6135 = vcmask 1042434
        %v6136 = vsel %vm6135, %v6007, %v6134
        %vm6137 = vcmask 1043459
        %v6138 = vsel %vm6137, %v6008, %v6136
        %vm6139 = vcmask 1044484
        %v6140 = vsel %vm6139, %v6009, %v6138
        %vm6141 = vcmask 1045509
        %v6142 = vsel %vm6141, %v6010, %v6140
        %vm6143 = vcmask 1046534
        %v6144 = vsel %vm6143, %v6011, %v6142
        %vm6145 = vcmask 1047559
        %v6146 = vsel %vm6145, %v6012, %v6144
        %v6147 = vsel %vm6133, %v6014, %v6013
        %v6148 = vsel %vm6135, %v6015, %v6147
        %v6149 = vsel %vm6137, %v6016, %v6148
        %v6150 = vsel %vm6139, %v6017, %v6149
        %v6151 = vsel %vm6141, %v6018, %v6150
        %v6152 = vsel %vm6143, %v6019, %v6151
        %v6153 = vsel %vm6145, %v6020, %v6152
        %v6154 = vsel %vm6133, %v6022, %v6021
        %v6155 = vsel %vm6135, %v6023, %v6154
        %v6156 = vsel %vm6137, %v6024, %v6155
        %v6157 = vsel %vm6139, %v6025, %v6156
        %v6158 = vsel %vm6141, %v6026, %v6157
        %v6159 = vsel %vm6143, %v6027, %v6158
        %v6160 = vsel %vm6145, %v6028, %v6159
        %v6161 = vsel %vm6133, %v6030, %v6029
        %v6162 = vsel %vm6135, %v6031, %v6161
        %v6163 = vsel %vm6137, %v6032, %v6162
        %v6164 = vsel %vm6139, %v6033, %v6163
        %v6165 = vsel %vm6141, %v6034, %v6164
        %v6166 = vsel %vm6143, %v6035, %v6165
        %v6167 = vsel %vm6145, %v6036, %v6166
        %v6168 = vsel %vm6133, %v6038, %v6037
        %v6169 = vsel %vm6135, %v6039, %v6168
        %v6170 = vsel %vm6137, %v6040, %v6169
        %v6171 = vsel %vm6139, %v6041, %v6170
        %v6172 = vsel %vm6141, %v6042, %v6171
        %v6173 = vsel %vm6143, %v6043, %v6172
        %v6174 = vsel %vm6145, %v6044, %v6173
        %v6175 = vsel %vm6133, %v6046, %v6045
        %v6176 = vsel %vm6135, %v6047, %v6175
        %v6177 = vsel %vm6137, %v6048, %v6176
        %v6178 = vsel %vm6139, %v6049, %v6177
        %v6179 = vsel %vm6141, %v6050, %v6178
        %v6180 = vsel %vm6143, %v6051, %v6179
        %v6181 = vsel %vm6145, %v6052, %v6180
        %v6182 = vsel %vm6133, %v6054, %v6053
        %v6183 = vsel %vm6135, %v6055, %v6182
        %v6184 = vsel %vm6137, %v6056, %v6183
        %v6185 = vsel %vm6139, %v6057, %v6184
        %v6186 = vsel %vm6141, %v6058, %v6185
        %v6187 = vsel %vm6143, %v6059, %v6186
        %v6188 = vsel %vm6145, %v6060, %v6187
        %v6189 = vsel %vm6133, %v6062, %v6061
        %v6190 = vsel %vm6135, %v6063, %v6189
        %v6191 = vsel %vm6137, %v6064, %v6190
        %v6192 = vsel %vm6139, %v6065, %v6191
        %v6193 = vsel %vm6141, %v6066, %v6192
        %v6194 = vsel %vm6143, %v6067, %v6193
        %v6195 = vsel %vm6145, %v6068, %v6194
        %6204 = vst.msk [vmem:[%s217] sm:$0xff] %vm224, %v6146
        %6205 = vst.msk [vmem:[%s217 + $0x8] sm:$0xff] %vm224, %v6153
        %6206 = vst.msk [vmem:[%s217 + $0x10] sm:$0xff] %vm224, %v6160
        %6207 = vst.msk [vmem:[%s217 + $0x18] sm:$0xff] %vm224, %v6167
        %6208 = vst.msk [vmem:[%s217 + $0x20] sm:$0xff] %vm224, %v6174
        %6209 = vst.msk [vmem:[%s217 + $0x28] sm:$0xff] %vm224, %v6181
        %6210 = vst.msk [vmem:[%s217 + $0x30] sm:$0xff] %vm224, %v6188
        %6211 = vst.msk [vmem:[%s217 + $0x38] sm:$0xff] %vm224, %v6195
        %s6212 = sand.u32 %s137, 1
        %s6213 = scalar_lea.sflag [#allocation4], %s6212
        %s6214 = sand.u32 %s137, 1
        %s6215 = smul.addr %s6214, 64
        %s6216 = scalar_lea.vmem [#allocation3], %s6215
        // Predicated region
        $region41: #{tpu_custom_call.1} parent=39 // pred_check
          %p6217 = pneg %p147
        $region42: #{tpu_custom_call.1} parent=39 // pred_check_branch
          %6219 = sbr.rel (%p6217) target = $region44
        $region43: #{tpu_custom_call.1} parent=39 // pred_region
          %6221 = vsyncadd %s6213, 0
          %s6222 = smul.addr %s19, 8
          %s6223 = smul.addr %s6222, 8
          %s6224 = scalar_lea.hbm %s5, %s6223
          %s6225 = sshll.u32 %s6216, 4
          %s6226 = int_to_ptr.vmem [resolvable:$true] %s6225
          %s6227 = sshll.u32 %s6224, 4
          %s6228 = int_to_ptr.hbm [resolvable:$true] %s6227
          %6233 = dma.vmem_to_hbm [thread:$0]  %s6226, 1024, %s6228, %s6213, 128, 128, 8
        $region44: #{tpu_custom_call.1} parent=39 // pred_fallthru
          _
      $region40: #{tpu_custom_call.1} parent=5 // pred_fallthru
        _
      %p6234 = scmp.le.s32.totalorder 2, %s14
      // Predicated region
      $region45: #{tpu_custom_call.1} parent=5 // pred_check
        %p6235 = pneg %p6234
      $region46: #{tpu_custom_call.1} parent=5 // pred_check_branch
        %6237 = sbr.rel (%p6235) target = $region48
      $region47: #{tpu_custom_call.1} parent=5 // pred_region
        %s6238 = ssub.s32 %s14, 2
        // Predicated region
        $region49: #{tpu_custom_call.1} parent=47 // pred_check
          %p6239 = pneg %p153
        $region50: #{tpu_custom_call.1} parent=47 // pred_check_branch
          %6241 = sbr.rel (%p6239) target = $region52
        $region51: #{tpu_custom_call.1} parent=47 // pred_region
          %s6242 = sand.u32 %s138, 1
          %s6243 = scalar_lea.sflag [#allocation4], %s6242
          %s6244 = sand.u32 %s138, 1
          %s6245 = smul.addr %s6244, 64
          %s6246 = scalar_lea.vmem [#allocation3], %s6245
          %6248 = dma.done %s6243, 1024
        $region52: #{tpu_custom_call.1} parent=47 // pred_fallthru
          _
      $region48: #{tpu_custom_call.1} parent=5 // pred_fallthru
        _
    $region6: #{tpu_custom_call.1} parent=1 // loop_footer
      %s18 = sadd.s32 1, %s14
    $region7: #{tpu_custom_call.1} parent=1 // loop_footer_branch
      %13 = sbr.rel target = $region3
    $region8: #{tpu_custom_call.1} parent=1 // loop_exit
      _
    %6249 = vsyncpa [#allocation4], 1
    %s6250 = scalar_lea.sflag [#allocation4], 1
    %6251 = vsyncpa %s6250, 1

</llo_original>
